<compile_context>
chip_gen: v7x
topology: tpu7x:2x2x1
jax: 0.10.0
libtpu: 0.0.40
codegen_flags: <defaults>
</compile_context>

<pallas_src>
import functools

import jax
import jax.numpy as jnp
from jax.experimental import pallas as pl
from jax.experimental.pallas import tpu as pltpu


def _round_up(x, m):
    return ((x + m - 1) // m) * m


def _pair(v):
    return tuple(v) if isinstance(v, (tuple, list)) else (v, v)


# ---------------------------------------------------------------------------
# Primary path: direct conv with the patch gather fused into the kernel.
# ---------------------------------------------------------------------------
def _direct_conv_kernel(x_ref, w_ref, b_ref, o_ref, *, kh, kw, dh, dw, Ho, Wo):
    """One batch image per grid step (stride == 1 path).

    x_ref : (1, Hp, Wp, C)     padded NHWC image, compute dtype (bf16)
    w_ref : (kh*kw, C, Coutp)  per-tap weights, resident across the grid
    b_ref : (1, Coutp)         f32 bias, resident
    o_ref : (1, Ho*Wo, Coutp)  f32 output; doubles as the accumulator
    """
    c_in = x_ref.shape[-1]
    coutp = o_ref.shape[-1]
    m = Ho * Wo
    # Bias init (single hoisted broadcast per output tile).
    o_ref[0] = jnp.broadcast_to(b_ref[...], (m, coutp))
    # Unrolled tap loop: contiguous (Ho, Wo, C) windows of the padded image,
    # all slice starts static (i*dh, j*dw); accumulate straight into o_ref.
    for t in range(kh * kw):
        i, j = divmod(t, kw)
        xs = x_ref[0, i * dh:i * dh + Ho, j * dw:j * dw + Wo, :]
        o_ref[0] += jnp.dot(xs.reshape(m, c_in), w_ref[t],
                            preferred_element_type=jnp.float32)


def _fused_vmem_bytes(Hp, Wp, C, m, coutp, khkw):
    # Double-buffered VMEM footprint including (sublane, lane) tile padding of
    # the last two dims (bf16 tiles are (16, 128), f32 tiles (8, 128)).
    in_blk = Hp * _round_up(Wp, 16) * _round_up(C, 128) * 2
    w_blk = khkw * _round_up(C, 16) * coutp * 2
    out_blk = _round_up(m, 8) * coutp * 4
    b_blk = 8 * coutp * 4
    return 2 * (in_blk + w_blk + out_blk + b_blk)


def _direct_conv(xp, w_taps, bias2d, *, kh, kw, dh, dw, Ho, Wo, vmem_limit):
    N, Hp, Wp, C = xp.shape
    coutp = w_taps.shape[-1]
    m = Ho * Wo
    kernel = functools.partial(_direct_conv_kernel, kh=kh, kw=kw, dh=dh, dw=dw,
                               Ho=Ho, Wo=Wo)
    cost = pl.CostEstimate(
        flops=2 * N * m * C * kh * kw * coutp,
        transcendentals=0,
        bytes_accessed=(xp.size * xp.dtype.itemsize
                        + w_taps.size * w_taps.dtype.itemsize
                        + bias2d.size * bias2d.dtype.itemsize
                        + N * m * coutp * 4))
    return pl.pallas_call(
        kernel,
        out_shape=jax.ShapeDtypeStruct((N, m, coutp), jnp.float32),
        grid_spec=pltpu.PrefetchScalarGridSpec(
            num_scalar_prefetch=0,
            grid=(N,),                                    # batch on the grid
            in_specs=[
                pl.BlockSpec((1, Hp, Wp, C), lambda n: (n, 0, 0, 0)),
                pl.BlockSpec((kh * kw, C, coutp), lambda n: (0, 0, 0)),
                pl.BlockSpec((1, coutp), lambda n: (0, 0)),
            ],
            out_specs=pl.BlockSpec((1, m, coutp), lambda n: (n, 0, 0)),
        ),
        compiler_params=pltpu.CompilerParams(
            dimension_semantics=("parallel",),            # megacore over batch
            vmem_limit_bytes=vmem_limit,
        ),
        cost_estimate=cost,
    )(xp, w_taps, bias2d)


# ---------------------------------------------------------------------------
# Fallback path (stride != 1 or oversized image): im2col + resident-weight
# single-pass matmul (no reduction grid axis, no accumulator scratch).
# ---------------------------------------------------------------------------
def _matmul_bias_kernel(a_ref, w_ref, b_ref, o_ref):
    # NOTE: when M % tm != 0 the last block contains out-of-range input rows;
    # matmul rows are independent and Pallas masks the partial store, so the
    # garbage only feeds discarded output rows.  Keep this kernel free of any
    # cross-row reduction/normalization (documented invariant).
    o_ref[...] = (jnp.dot(a_ref[...], w_ref[...],
                          preferred_element_type=jnp.float32)
                  + b_ref[...]).astype(o_ref.dtype)


def _pallas_matmul_bias(patches, w_mat, bias2d, *, tm, out_dtype, vmem_limit):
    M, kp = patches.shape
    coutp = w_mat.shape[1]
    cost = pl.CostEstimate(
        flops=2 * M * kp * coutp,
        transcendentals=0,
        bytes_accessed=(patches.size * patches.dtype.itemsize
                        + w_mat.size * w_mat.dtype.itemsize
                        + bias2d.size * bias2d.dtype.itemsize
                        + M * coutp * jnp.dtype(out_dtype).itemsize))
    return pl.pallas_call(
        _matmul_bias_kernel,
        out_shape=jax.ShapeDtypeStruct((M, coutp), out_dtype),
        grid_spec=pltpu.PrefetchScalarGridSpec(
            num_scalar_prefetch=0,
            grid=(pl.cdiv(M, tm),),
            in_specs=[
                pl.BlockSpec((tm, kp), lambda i: (i, 0)),         # streamed A
                pl.BlockSpec((kp, coutp), lambda i: (0, 0)),      # resident W
                pl.BlockSpec((1, coutp), lambda i: (0, 0)),       # resident b
            ],
            out_specs=pl.BlockSpec((tm, coutp), lambda i: (i, 0)),
        ),
        compiler_params=pltpu.CompilerParams(
            dimension_semantics=("parallel",),
            vmem_limit_bytes=vmem_limit,
        ),
        cost_estimate=cost,
    )(patches, w_mat, bias2d)


def _im2col(x_nchw, kernel_size, stride, padding, dilation, compute_dtype,
            k_pad):
    """Lane-dense unfold matching torch.nn.functional.unfold: K order (c,i,j),
    rows row-major over (n, ho, wo).  K is zero-padded to `k_pad` lanes."""
    N, C, H, W = x_nchw.shape
    kh, kw = kernel_size
    sh, sw = stride
    ph, pw = padding
    dh, dw = dilation
    Ho = (H + 2 * ph - dh * (kh - 1) - 1) // sh + 1
    Wo = (W + 2 * pw - dw * (kw - 1) - 1) // sw + 1

    xt = jnp.transpose(x_nchw, (0, 2, 3, 1)).astype(compute_dtype)
    xp = jnp.pad(xt, ((0, 0), (ph, ph), (pw, pw), (0, 0)))
    slices = []
    for i in range(kh):
        for j in range(kw):
            h0, w0 = i * dh, j * dw
            slices.append(xp[:, h0:h0 + sh * (Ho - 1) + 1:sh,
                             w0:w0 + sw * (Wo - 1) + 1:sw, :])
    patches = jnp.stack(slices, axis=-1).reshape(N * Ho * Wo, C * kh * kw)
    if k_pad > C * kh * kw:
        patches = jnp.pad(patches, ((0, 0), (0, k_pad - C * kh * kw)))
    return patches, Ho, Wo


# ---------------------------------------------------------------------------
# Conv2d module equivalent (forward semantics of the reference torch module).
# ---------------------------------------------------------------------------
class Conv2dPallas:
    def __init__(self, weight, bias, in_channels, out_channels, kernel_size,
                 stride=(1, 1), padding=(0, 0), dilation=(1, 1),
                 compute_dtype=jnp.bfloat16, tm=512):
        # weight: (out_channels, in_channels*kh*kw)   (torch Linear layout)
        # bias  : (out_channels,) or None
        self.in_channels = in_channels
        self.out_channels = out_channels
        self.kernel_size = _pair(kernel_size)
        self.stride = _pair(stride)
        self.padding = _pair(padding)
        self.dilation = _pair(dilation)
        self.compute_dtype = compute_dtype
        self.tm = tm

        kh, kw = self.kernel_size
        K = in_channels * kh * kw
        assert weight.shape == (out_channels, K), (weight.shape,
                                                   (out_channels, K))
        if bias is None:
            bias = jnp.zeros((out_channels,), jnp.float32)

        coutp = _round_up(out_channels, 128)   # lane-dense output / MXU N dim
        kp = _round_up(K, 128)                 # lane-dense reduction (fallback)
        self._coutp = coutp
        self._kp = kp

        # Fallback (im2col) weight: (Kp, Coutp), zero-padded, bf16.
        w_mat = jnp.zeros((kp, coutp), dtype=compute_dtype)
        self._w_mat = w_mat.at[:K, :out_channels].set(
            weight.T.astype(compute_dtype))

        # Fused (direct conv) weight: (kh*kw, C, Coutp), tap-major, matching
        # the torch unfold K-order (c, i, j) -> tap t = i*kw + j.
        w4 = weight.reshape(out_channels, in_channels, kh, kw)
        w_taps = jnp.transpose(w4, (2, 3, 1, 0)).reshape(
            kh * kw, in_channels, out_channels).astype(compute_dtype)
        buf = jnp.zeros((kh * kw, in_channels, coutp), dtype=compute_dtype)
        self._w_taps = buf.at[:, :, :out_channels].set(w_taps)

        b2d = jnp.zeros((1, coutp), dtype=jnp.float32)
        self._bias2d = b2d.at[0, :out_channels].set(bias.astype(jnp.float32))

    def _out_dim(self, dim, idx):
        return (dim + 2 * self.padding[idx]
                - self.dilation[idx] * (self.kernel_size[idx] - 1) - 1) \
            // self.stride[idx] + 1

    def __call__(self, x):
        N, C, H, W = x.shape
        assert C == self.in_channels
        kh, kw = self.kernel_size
        sh, sw = self.stride
        ph, pw = self.padding
        dh, dw = self.dilation
        Ho, Wo = self._out_dim(H, 0), self._out_dim(W, 1)
        coutp = self._coutp
        out_dtype = x.dtype

        use_fused = (sh == 1 and sw == 1)
        if use_fused:
            est = _fused_vmem_bytes(H + 2 * ph, W + 2 * pw, C, Ho * Wo, coutp,
                                    kh * kw)
            use_fused = est <= (40 << 20)   # v7x-safe (64 MiB VMEM per TC)

        if use_fused:
            # One XLA pass: NCHW -> NHWC + cast to bf16 + zero-pad spatial.
            xp = jnp.pad(
                jnp.transpose(x, (0, 2, 3, 1)).astype(self.compute_dtype),
                ((0, 0), (ph, ph), (pw, pw), (0, 0)))
            out = _direct_conv(
                xp, self._w_taps, self._bias2d, kh=kh, kw=kw, dh=dh, dw=dw,
                Ho=Ho, Wo=Wo,
                vmem_limit=int(max(32 << 20, est + (8 << 20))))
            out = out.astype(out_dtype)                   # (N, Ho*Wo, Coutp)
        else:
            patches, Ho, Wo = _im2col(
                x, self.kernel_size, self.stride, self.padding, self.dilation,
                self.compute_dtype, self._kp)
            M, kp = patches.shape

            def fp(t):
                return (2 * t * kp * patches.dtype.itemsize
                        + 2 * kp * coutp * self._w_mat.dtype.itemsize
                        + 2 * t * coutp * jnp.dtype(out_dtype).itemsize
                        + 2 * 8 * coutp * 4)

            tm = self.tm
            while tm > 128 and fp(tm) > (40 << 20):
                tm //= 2
            tm = min(tm, _round_up(M, 8))
            out = _pallas_matmul_bias(
                patches, self._w_mat, self._bias2d, tm=tm,
                out_dtype=out_dtype,
                vmem_limit=int(max(32 << 20, fp(tm) + (8 << 20))))
            out = out.reshape(N, Ho * Wo, coutp)

        # Module contract is NCHW: drop the Cout pad, restore (N,Cout,Ho,Wo).
        out = out[:, :, :self.out_channels].reshape(N, Ho, Wo,
                                                    self.out_channels)
        return jnp.transpose(out, (0, 3, 1, 2))


if __name__ == "__main__":
    key = jax.random.PRNGKey(0)
    k_x, k_w, k_b = jax.random.split(key, 3)

    N, C_in, H, W = 2, 4, 16, 16
    C_out = 8
    kernel_size = (3, 3)

    x = jax.random.normal(k_x, (N, C_in, H, W), dtype=jnp.float32)
    K = C_in * kernel_size[0] * kernel_size[1]
    bound = 1.0 / (K ** 0.5)
    weight = jax.random.uniform(k_w, (C_out, K), jnp.float32, -bound, bound)
    bias = jax.random.uniform(k_b, (C_out,), jnp.float32, -bound, bound)
    w4 = weight.reshape(C_out, C_in, *kernel_size)

    def lax_ref(stride, padding, dilation):
        # Same bf16 operand cast + f32 accumulation as the kernels, so the
        # comparison checks semantics independent of bf16 quantization.
        return jax.lax.conv_general_dilated(
            x.astype(jnp.bfloat16), w4.astype(jnp.bfloat16),
            window_strides=stride,
            padding=[(padding[0], padding[0]), (padding[1], padding[1])],
            rhs_dilation=dilation,
            dimension_numbers=("NCHW", "OIHW", "NCHW"),
            preferred_element_type=jnp.float32,
        ) + bias.reshape(1, C_out, 1, 1)

    # 1) stride 1 -> fused direct-conv kernel (patch gather inside Pallas).
    conv1 = Conv2dPallas(weight, bias, C_in, C_out, kernel_size,
                         stride=(1, 1), padding=(1, 1), dilation=(1, 1))
    out1 = jax.block_until_ready(jax.jit(conv1.__call__)(x))
    ref1 = lax_ref((1, 1), (1, 1), (1, 1))
    assert out1.shape == ref1.shape, (out1.shape, ref1.shape)
    assert jnp.allclose(out1, ref1, atol=2e-2, rtol=2e-2), float(
        jnp.max(jnp.abs(out1 - ref1)))

    # 2) stride 2 -> im2col fallback (resident-weight single-pass matmul).
    conv2 = Conv2dPallas(weight, bias, C_in, C_out, kernel_size,
                         stride=(2, 2), padding=(1, 1), dilation=(1, 1))
    out2 = jax.block_until_ready(jax.jit(conv2.__call__)(x))
    ref2 = lax_ref((2, 2), (1, 1), (1, 1))
    assert out2.shape == ref2.shape, (out2.shape, ref2.shape)
    assert jnp.allclose(out2, ref2, atol=2e-2, rtol=2e-2), float(
        jnp.max(jnp.abs(out2 - ref2)))

    print("KERNEL_OK")
</pallas_src>

<mosaic_0001>
module attributes {stable_mosaic.version = 11 : i64} {
  func.func @_direct_conv_kernel(%arg0: i32, %arg1: memref<1x18x18x4xbf16, #tpu.memory_space<vmem>>, %arg2: memref<9x4x128xbf16, #tpu.memory_space<vmem>>, %arg3: memref<1x128xf32, #tpu.memory_space<vmem>>, %arg4: memref<1x256x128xf32, #tpu.memory_space<vmem>>) attributes {dimension_semantics = [#tpu.dimension_semantics<parallel>], iteration_bounds = array<i64: 2>, scalar_prefetch = 0 : i64, scratch_operands = 0 : i64, tpu.core_type = #tpu.core_type<tc>, window_params = [{transform_indices = @transform_0, window_bounds = array<i64: 1, 18, 18, 4>}, {pipeline_mode = #tpu.pipeline_mode<synchronous>, transform_indices = @transform_1, window_bounds = array<i64: 9, 4, 128>}, {pipeline_mode = #tpu.pipeline_mode<synchronous>, transform_indices = @transform_2, window_bounds = array<i64: 1, 128>}, {transform_indices = @transform_3, window_bounds = array<i64: 1, 256, 128>}]} {
    %c0 = arith.constant 0 : index
    %c0_0 = arith.constant 0 : index
    %0 = vector.load %arg3[%c0, %c0_0] : memref<1x128xf32, #tpu.memory_space<vmem>>, vector<1x128xf32>
    %1 = vector.shape_cast %0 : vector<1x128xf32> to vector<1x128xf32>
    %2 = vector.broadcast %1 : vector<1x128xf32> to vector<256x128xf32>
    %c0_1 = arith.constant 0 : index
    %c0_2 = arith.constant 0 : index
    %c0_3 = arith.constant 0 : index
    %3 = vector.load %arg4[%c0_1, %c0_2, %c0_3] : memref<1x256x128xf32, #tpu.memory_space<vmem>>, vector<1x256x128xf32>
    %4 = vector.shape_cast %3 : vector<1x256x128xf32> to vector<256x128xf32>
    %5 = vector.shape_cast %2 : vector<256x128xf32> to vector<1x256x128xf32>
    tpu.vector_store %arg4[%c0_1, %c0_2, %c0_3], %5 {strides = array<i32>} : memref<1x256x128xf32, #tpu.memory_space<vmem>>, vector<1x256x128xf32>,
    %c0_4 = arith.constant 0 : index
    %c0_5 = arith.constant 0 : index
    %c0_6 = arith.constant 0 : index
    %c0_7 = arith.constant 0 : index
    %6 = vector.load %arg1[%c0_4, %c0_5, %c0_6, %c0_7] : memref<1x18x18x4xbf16, #tpu.memory_space<vmem>>, vector<1x16x16x4xbf16>
    %7 = vector.shape_cast %6 : vector<1x16x16x4xbf16> to vector<16x16x4xbf16>
    %c0_8 = arith.constant 0 : index
    %c0_9 = arith.constant 0 : index
    %c0_10 = arith.constant 0 : index
    %8 = vector.load %arg4[%c0_8, %c0_9, %c0_10] : memref<1x256x128xf32, #tpu.memory_space<vmem>>, vector<1x256x128xf32>
    %9 = vector.shape_cast %8 : vector<1x256x128xf32> to vector<256x128xf32>
    %10 = vector.shape_cast %7 : vector<16x16x4xbf16> to vector<256x4xbf16>
    %c0_11 = arith.constant 0 : index
    %c0_12 = arith.constant 0 : index
    %c0_13 = arith.constant 0 : index
    %11 = vector.load %arg2[%c0_11, %c0_12, %c0_13] : memref<9x4x128xbf16, #tpu.memory_space<vmem>>, vector<1x4x128xbf16>
    %12 = vector.shape_cast %11 : vector<1x4x128xbf16> to vector<4x128xbf16>
    %cst = arith.constant dense<0.000000e+00> : vector<256x128xf32>
    %13 = tpu.matmul %10, %12, %cst {dimension_numbers = #tpu.dot_dimension_numbers<[1], [0], [0], [1], [0, 0, 1, 1], [], []>} : vector<256x4xbf16>, vector<4x128xbf16>, vector<256x128xf32> -> vector<256x128xf32>
    %14 = arith.addf %9, %13 : vector<256x128xf32>
    %c0_14 = arith.constant 0 : index
    %c0_15 = arith.constant 0 : index
    %c0_16 = arith.constant 0 : index
    %15 = vector.load %arg4[%c0_14, %c0_15, %c0_16] : memref<1x256x128xf32, #tpu.memory_space<vmem>>, vector<1x256x128xf32>
    %16 = vector.shape_cast %15 : vector<1x256x128xf32> to vector<256x128xf32>
    %17 = vector.shape_cast %14 : vector<256x128xf32> to vector<1x256x128xf32>
    tpu.vector_store %arg4[%c0_14, %c0_15, %c0_16], %17 {strides = array<i32>} : memref<1x256x128xf32, #tpu.memory_space<vmem>>, vector<1x256x128xf32>,
    %c0_17 = arith.constant 0 : index
    %c0_18 = arith.constant 0 : index
    %c1 = arith.constant 1 : index
    %c0_19 = arith.constant 0 : index
    %18 = vector.load %arg1[%c0_17, %c0_18, %c1, %c0_19] : memref<1x18x18x4xbf16, #tpu.memory_space<vmem>>, vector<1x16x16x4xbf16>
    %19 = vector.shape_cast %18 : vector<1x16x16x4xbf16> to vector<16x16x4xbf16>
    %c0_20 = arith.constant 0 : index
    %c0_21 = arith.constant 0 : index
    %c0_22 = arith.constant 0 : index
    %20 = vector.load %arg4[%c0_20, %c0_21, %c0_22] : memref<1x256x128xf32, #tpu.memory_space<vmem>>, vector<1x256x128xf32>
    %21 = vector.shape_cast %20 : vector<1x256x128xf32> to vector<256x128xf32>
    %22 = vector.shape_cast %19 : vector<16x16x4xbf16> to vector<256x4xbf16>
    %c1_23 = arith.constant 1 : index
    %c0_24 = arith.constant 0 : index
    %c0_25 = arith.constant 0 : index
    %23 = vector.load %arg2[%c1_23, %c0_24, %c0_25] : memref<9x4x128xbf16, #tpu.memory_space<vmem>>, vector<1x4x128xbf16>
    %24 = vector.shape_cast %23 : vector<1x4x128xbf16> to vector<4x128xbf16>
    %cst_26 = arith.constant dense<0.000000e+00> : vector<256x128xf32>
    %25 = tpu.matmul %22, %24, %cst_26 {dimension_numbers = #tpu.dot_dimension_numbers<[1], [0], [0], [1], [0, 0, 1, 1], [], []>} : vector<256x4xbf16>, vector<4x128xbf16>, vector<256x128xf32> -> vector<256x128xf32>
    %26 = arith.addf %21, %25 : vector<256x128xf32>
    %c0_27 = arith.constant 0 : index
    %c0_28 = arith.constant 0 : index
    %c0_29 = arith.constant 0 : index
    %27 = vector.load %arg4[%c0_27, %c0_28, %c0_29] : memref<1x256x128xf32, #tpu.memory_space<vmem>>, vector<1x256x128xf32>
    %28 = vector.shape_cast %27 : vector<1x256x128xf32> to vector<256x128xf32>
    %29 = vector.shape_cast %26 : vector<256x128xf32> to vector<1x256x128xf32>
    tpu.vector_store %arg4[%c0_27, %c0_28, %c0_29], %29 {strides = array<i32>} : memref<1x256x128xf32, #tpu.memory_space<vmem>>, vector<1x256x128xf32>,
    %c0_30 = arith.constant 0 : index
    %c0_31 = arith.constant 0 : index
    %c2 = arith.constant 2 : index
    %c0_32 = arith.constant 0 : index
    %30 = vector.load %arg1[%c0_30, %c0_31, %c2, %c0_32] : memref<1x18x18x4xbf16, #tpu.memory_space<vmem>>, vector<1x16x16x4xbf16>
    %31 = vector.shape_cast %30 : vector<1x16x16x4xbf16> to vector<16x16x4xbf16>
    %c0_33 = arith.constant 0 : index
    %c0_34 = arith.constant 0 : index
    %c0_35 = arith.constant 0 : index
    %32 = vector.load %arg4[%c0_33, %c0_34, %c0_35] : memref<1x256x128xf32, #tpu.memory_space<vmem>>, vector<1x256x128xf32>
    %33 = vector.shape_cast %32 : vector<1x256x128xf32> to vector<256x128xf32>
    %34 = vector.shape_cast %31 : vector<16x16x4xbf16> to vector<256x4xbf16>
    %c2_36 = arith.constant 2 : index
    %c0_37 = arith.constant 0 : index
    %c0_38 = arith.constant 0 : index
    %35 = vector.load %arg2[%c2_36, %c0_37, %c0_38] : memref<9x4x128xbf16, #tpu.memory_space<vmem>>, vector<1x4x128xbf16>
    %36 = vector.shape_cast %35 : vector<1x4x128xbf16> to vector<4x128xbf16>
    %cst_39 = arith.constant dense<0.000000e+00> : vector<256x128xf32>
    %37 = tpu.matmul %34, %36, %cst_39 {dimension_numbers = #tpu.dot_dimension_numbers<[1], [0], [0], [1], [0, 0, 1, 1], [], []>} : vector<256x4xbf16>, vector<4x128xbf16>, vector<256x128xf32> -> vector<256x128xf32>
    %38 = arith.addf %33, %37 : vector<256x128xf32>
    %c0_40 = arith.constant 0 : index
    %c0_41 = arith.constant 0 : index
    %c0_42 = arith.constant 0 : index
    %39 = vector.load %arg4[%c0_40, %c0_41, %c0_42] : memref<1x256x128xf32, #tpu.memory_space<vmem>>, vector<1x256x128xf32>
    %40 = vector.shape_cast %39 : vector<1x256x128xf32> to vector<256x128xf32>
    %41 = vector.shape_cast %38 : vector<256x128xf32> to vector<1x256x128xf32>
    tpu.vector_store %arg4[%c0_40, %c0_41, %c0_42], %41 {strides = array<i32>} : memref<1x256x128xf32, #tpu.memory_space<vmem>>, vector<1x256x128xf32>,
    %c0_43 = arith.constant 0 : index
    %c1_44 = arith.constant 1 : index
    %c0_45 = arith.constant 0 : index
    %c0_46 = arith.constant 0 : index
    %42 = vector.load %arg1[%c0_43, %c1_44, %c0_45, %c0_46] : memref<1x18x18x4xbf16, #tpu.memory_space<vmem>>, vector<1x16x16x4xbf16>
    %43 = vector.shape_cast %42 : vector<1x16x16x4xbf16> to vector<16x16x4xbf16>
    %c0_47 = arith.constant 0 : index
    %c0_48 = arith.constant 0 : index
    %c0_49 = arith.constant 0 : index
    %44 = vector.load %arg4[%c0_47, %c0_48, %c0_49] : memref<1x256x128xf32, #tpu.memory_space<vmem>>, vector<1x256x128xf32>
    %45 = vector.shape_cast %44 : vector<1x256x128xf32> to vector<256x128xf32>
    %46 = vector.shape_cast %43 : vector<16x16x4xbf16> to vector<256x4xbf16>
    %c3 = arith.constant 3 : index
    %c0_50 = arith.constant 0 : index
    %c0_51 = arith.constant 0 : index
    %47 = vector.load %arg2[%c3, %c0_50, %c0_51] : memref<9x4x128xbf16, #tpu.memory_space<vmem>>, vector<1x4x128xbf16>
    %48 = vector.shape_cast %47 : vector<1x4x128xbf16> to vector<4x128xbf16>
    %cst_52 = arith.constant dense<0.000000e+00> : vector<256x128xf32>
    %49 = tpu.matmul %46, %48, %cst_52 {dimension_numbers = #tpu.dot_dimension_numbers<[1], [0], [0], [1], [0, 0, 1, 1], [], []>} : vector<256x4xbf16>, vector<4x128xbf16>, vector<256x128xf32> -> vector<256x128xf32>
    %50 = arith.addf %45, %49 : vector<256x128xf32>
    %c0_53 = arith.constant 0 : index
    %c0_54 = arith.constant 0 : index
    %c0_55 = arith.constant 0 : index
    %51 = vector.load %arg4[%c0_53, %c0_54, %c0_55] : memref<1x256x128xf32, #tpu.memory_space<vmem>>, vector<1x256x128xf32>
    %52 = vector.shape_cast %51 : vector<1x256x128xf32> to vector<256x128xf32>
    %53 = vector.shape_cast %50 : vector<256x128xf32> to vector<1x256x128xf32>
    tpu.vector_store %arg4[%c0_53, %c0_54, %c0_55], %53 {strides = array<i32>} : memref<1x256x128xf32, #tpu.memory_space<vmem>>, vector<1x256x128xf32>,
    %c0_56 = arith.constant 0 : index
    %c1_57 = arith.constant 1 : index
    %c1_58 = arith.constant 1 : index
    %c0_59 = arith.constant 0 : index
    %54 = vector.load %arg1[%c0_56, %c1_57, %c1_58, %c0_59] : memref<1x18x18x4xbf16, #tpu.memory_space<vmem>>, vector<1x16x16x4xbf16>
    %55 = vector.shape_cast %54 : vector<1x16x16x4xbf16> to vector<16x16x4xbf16>
    %c0_60 = arith.constant 0 : index
    %c0_61 = arith.constant 0 : index
    %c0_62 = arith.constant 0 : index
    %56 = vector.load %arg4[%c0_60, %c0_61, %c0_62] : memref<1x256x128xf32, #tpu.memory_space<vmem>>, vector<1x256x128xf32>
    %57 = vector.shape_cast %56 : vector<1x256x128xf32> to vector<256x128xf32>
    %58 = vector.shape_cast %55 : vector<16x16x4xbf16> to vector<256x4xbf16>
    %c4 = arith.constant 4 : index
    %c0_63 = arith.constant 0 : index
    %c0_64 = arith.constant 0 : index
    %59 = vector.load %arg2[%c4, %c0_63, %c0_64] : memref<9x4x128xbf16, #tpu.memory_space<vmem>>, vector<1x4x128xbf16>
    %60 = vector.shape_cast %59 : vector<1x4x128xbf16> to vector<4x128xbf16>
    %cst_65 = arith.constant dense<0.000000e+00> : vector<256x128xf32>
    %61 = tpu.matmul %58, %60, %cst_65 {dimension_numbers = #tpu.dot_dimension_numbers<[1], [0], [0], [1], [0, 0, 1, 1], [], []>} : vector<256x4xbf16>, vector<4x128xbf16>, vector<256x128xf32> -> vector<256x128xf32>
    %62 = arith.addf %57, %61 : vector<256x128xf32>
    %c0_66 = arith.constant 0 : index
    %c0_67 = arith.constant 0 : index
    %c0_68 = arith.constant 0 : index
    %63 = vector.load %arg4[%c0_66, %c0_67, %c0_68] : memref<1x256x128xf32, #tpu.memory_space<vmem>>, vector<1x256x128xf32>
    %64 = vector.shape_cast %63 : vector<1x256x128xf32> to vector<256x128xf32>
    %65 = vector.shape_cast %62 : vector<256x128xf32> to vector<1x256x128xf32>
    tpu.vector_store %arg4[%c0_66, %c0_67, %c0_68], %65 {strides = array<i32>} : memref<1x256x128xf32, #tpu.memory_space<vmem>>, vector<1x256x128xf32>,
    %c0_69 = arith.constant 0 : index
    %c1_70 = arith.constant 1 : index
    %c2_71 = arith.constant 2 : index
    %c0_72 = arith.constant 0 : index
    %66 = vector.load %arg1[%c0_69, %c1_70, %c2_71, %c0_72] : memref<1x18x18x4xbf16, #tpu.memory_space<vmem>>, vector<1x16x16x4xbf16>
    %67 = vector.shape_cast %66 : vector<1x16x16x4xbf16> to vector<16x16x4xbf16>
    %c0_73 = arith.constant 0 : index
    %c0_74 = arith.constant 0 : index
    %c0_75 = arith.constant 0 : index
    %68 = vector.load %arg4[%c0_73, %c0_74, %c0_75] : memref<1x256x128xf32, #tpu.memory_space<vmem>>, vector<1x256x128xf32>
    %69 = vector.shape_cast %68 : vector<1x256x128xf32> to vector<256x128xf32>
    %70 = vector.shape_cast %67 : vector<16x16x4xbf16> to vector<256x4xbf16>
    %c5 = arith.constant 5 : index
    %c0_76 = arith.constant 0 : index
    %c0_77 = arith.constant 0 : index
    %71 = vector.load %arg2[%c5, %c0_76, %c0_77] : memref<9x4x128xbf16, #tpu.memory_space<vmem>>, vector<1x4x128xbf16>
    %72 = vector.shape_cast %71 : vector<1x4x128xbf16> to vector<4x128xbf16>
    %cst_78 = arith.constant dense<0.000000e+00> : vector<256x128xf32>
    %73 = tpu.matmul %70, %72, %cst_78 {dimension_numbers = #tpu.dot_dimension_numbers<[1], [0], [0], [1], [0, 0, 1, 1], [], []>} : vector<256x4xbf16>, vector<4x128xbf16>, vector<256x128xf32> -> vector<256x128xf32>
    %74 = arith.addf %69, %73 : vector<256x128xf32>
    %c0_79 = arith.constant 0 : index
    %c0_80 = arith.constant 0 : index
    %c0_81 = arith.constant 0 : index
    %75 = vector.load %arg4[%c0_79, %c0_80, %c0_81] : memref<1x256x128xf32, #tpu.memory_space<vmem>>, vector<1x256x128xf32>
    %76 = vector.shape_cast %75 : vector<1x256x128xf32> to vector<256x128xf32>
    %77 = vector.shape_cast %74 : vector<256x128xf32> to vector<1x256x128xf32>
    tpu.vector_store %arg4[%c0_79, %c0_80, %c0_81], %77 {strides = array<i32>} : memref<1x256x128xf32, #tpu.memory_space<vmem>>, vector<1x256x128xf32>,
    %c0_82 = arith.constant 0 : index
    %c2_83 = arith.constant 2 : index
    %c0_84 = arith.constant 0 : index
    %c0_85 = arith.constant 0 : index
    %78 = vector.load %arg1[%c0_82, %c2_83, %c0_84, %c0_85] : memref<1x18x18x4xbf16, #tpu.memory_space<vmem>>, vector<1x16x16x4xbf16>
    %79 = vector.shape_cast %78 : vector<1x16x16x4xbf16> to vector<16x16x4xbf16>
    %c0_86 = arith.constant 0 : index
    %c0_87 = arith.constant 0 : index
    %c0_88 = arith.constant 0 : index
    %80 = vector.load %arg4[%c0_86, %c0_87, %c0_88] : memref<1x256x128xf32, #tpu.memory_space<vmem>>, vector<1x256x128xf32>
    %81 = vector.shape_cast %80 : vector<1x256x128xf32> to vector<256x128xf32>
    %82 = vector.shape_cast %79 : vector<16x16x4xbf16> to vector<256x4xbf16>
    %c6 = arith.constant 6 : index
    %c0_89 = arith.constant 0 : index
    %c0_90 = arith.constant 0 : index
    %83 = vector.load %arg2[%c6, %c0_89, %c0_90] : memref<9x4x128xbf16, #tpu.memory_space<vmem>>, vector<1x4x128xbf16>
    %84 = vector.shape_cast %83 : vector<1x4x128xbf16> to vector<4x128xbf16>
    %cst_91 = arith.constant dense<0.000000e+00> : vector<256x128xf32>
    %85 = tpu.matmul %82, %84, %cst_91 {dimension_numbers = #tpu.dot_dimension_numbers<[1], [0], [0], [1], [0, 0, 1, 1], [], []>} : vector<256x4xbf16>, vector<4x128xbf16>, vector<256x128xf32> -> vector<256x128xf32>
    %86 = arith.addf %81, %85 : vector<256x128xf32>
    %c0_92 = arith.constant 0 : index
    %c0_93 = arith.constant 0 : index
    %c0_94 = arith.constant 0 : index
    %87 = vector.load %arg4[%c0_92, %c0_93, %c0_94] : memref<1x256x128xf32, #tpu.memory_space<vmem>>, vector<1x256x128xf32>
    %88 = vector.shape_cast %87 : vector<1x256x128xf32> to vector<256x128xf32>
    %89 = vector.shape_cast %86 : vector<256x128xf32> to vector<1x256x128xf32>
    tpu.vector_store %arg4[%c0_92, %c0_93, %c0_94], %89 {strides = array<i32>} : memref<1x256x128xf32, #tpu.memory_space<vmem>>, vector<1x256x128xf32>,
    %c0_95 = arith.constant 0 : index
    %c2_96 = arith.constant 2 : index
    %c1_97 = arith.constant 1 : index
    %c0_98 = arith.constant 0 : index
    %90 = vector.load %arg1[%c0_95, %c2_96, %c1_97, %c0_98] : memref<1x18x18x4xbf16, #tpu.memory_space<vmem>>, vector<1x16x16x4xbf16>
    %91 = vector.shape_cast %90 : vector<1x16x16x4xbf16> to vector<16x16x4xbf16>
    %c0_99 = arith.constant 0 : index
    %c0_100 = arith.constant 0 : index
    %c0_101 = arith.constant 0 : index
    %92 = vector.load %arg4[%c0_99, %c0_100, %c0_101] : memref<1x256x128xf32, #tpu.memory_space<vmem>>, vector<1x256x128xf32>
    %93 = vector.shape_cast %92 : vector<1x256x128xf32> to vector<256x128xf32>
    %94 = vector.shape_cast %91 : vector<16x16x4xbf16> to vector<256x4xbf16>
    %c7 = arith.constant 7 : index
    %c0_102 = arith.constant 0 : index
    %c0_103 = arith.constant 0 : index
    %95 = vector.load %arg2[%c7, %c0_102, %c0_103] : memref<9x4x128xbf16, #tpu.memory_space<vmem>>, vector<1x4x128xbf16>
    %96 = vector.shape_cast %95 : vector<1x4x128xbf16> to vector<4x128xbf16>
    %cst_104 = arith.constant dense<0.000000e+00> : vector<256x128xf32>
    %97 = tpu.matmul %94, %96, %cst_104 {dimension_numbers = #tpu.dot_dimension_numbers<[1], [0], [0], [1], [0, 0, 1, 1], [], []>} : vector<256x4xbf16>, vector<4x128xbf16>, vector<256x128xf32> -> vector<256x128xf32>
    %98 = arith.addf %93, %97 : vector<256x128xf32>
    %c0_105 = arith.constant 0 : index
    %c0_106 = arith.constant 0 : index
    %c0_107 = arith.constant 0 : index
    %99 = vector.load %arg4[%c0_105, %c0_106, %c0_107] : memref<1x256x128xf32, #tpu.memory_space<vmem>>, vector<1x256x128xf32>
    %100 = vector.shape_cast %99 : vector<1x256x128xf32> to vector<256x128xf32>
    %101 = vector.shape_cast %98 : vector<256x128xf32> to vector<1x256x128xf32>
    tpu.vector_store %arg4[%c0_105, %c0_106, %c0_107], %101 {strides = array<i32>} : memref<1x256x128xf32, #tpu.memory_space<vmem>>, vector<1x256x128xf32>,
    %c0_108 = arith.constant 0 : index
    %c2_109 = arith.constant 2 : index
    %c2_110 = arith.constant 2 : index
    %c0_111 = arith.constant 0 : index
    %102 = vector.load %arg1[%c0_108, %c2_109, %c2_110, %c0_111] : memref<1x18x18x4xbf16, #tpu.memory_space<vmem>>, vector<1x16x16x4xbf16>
    %103 = vector.shape_cast %102 : vector<1x16x16x4xbf16> to vector<16x16x4xbf16>
    %c0_112 = arith.constant 0 : index
    %c0_113 = arith.constant 0 : index
    %c0_114 = arith.constant 0 : index
    %104 = vector.load %arg4[%c0_112, %c0_113, %c0_114] : memref<1x256x128xf32, #tpu.memory_space<vmem>>, vector<1x256x128xf32>
    %105 = vector.shape_cast %104 : vector<1x256x128xf32> to vector<256x128xf32>
    %106 = vector.shape_cast %103 : vector<16x16x4xbf16> to vector<256x4xbf16>
    %c8 = arith.constant 8 : index
    %c0_115 = arith.constant 0 : index
    %c0_116 = arith.constant 0 : index
    %107 = vector.load %arg2[%c8, %c0_115, %c0_116] : memref<9x4x128xbf16, #tpu.memory_space<vmem>>, vector<1x4x128xbf16>
    %108 = vector.shape_cast %107 : vector<1x4x128xbf16> to vector<4x128xbf16>
    %cst_117 = arith.constant dense<0.000000e+00> : vector<256x128xf32>
    %109 = tpu.matmul %106, %108, %cst_117 {dimension_numbers = #tpu.dot_dimension_numbers<[1], [0], [0], [1], [0, 0, 1, 1], [], []>} : vector<256x4xbf16>, vector<4x128xbf16>, vector<256x128xf32> -> vector<256x128xf32>
    %110 = arith.addf %105, %109 : vector<256x128xf32>
    %c0_118 = arith.constant 0 : index
    %c0_119 = arith.constant 0 : index
    %c0_120 = arith.constant 0 : index
    %111 = vector.load %arg4[%c0_118, %c0_119, %c0_120] : memref<1x256x128xf32, #tpu.memory_space<vmem>>, vector<1x256x128xf32>
    %112 = vector.shape_cast %111 : vector<1x256x128xf32> to vector<256x128xf32>
    %113 = vector.shape_cast %110 : vector<256x128xf32> to vector<1x256x128xf32>
    tpu.vector_store %arg4[%c0_118, %c0_119, %c0_120], %113 {strides = array<i32>} : memref<1x256x128xf32, #tpu.memory_space<vmem>>, vector<1x256x128xf32>,
    return
  }
  func.func @transform_0(%arg0: i32) -> (i32, i32, i32, i32) {
    %c0_i32 = arith.constant 0 : i32
    %c0_i32_0 = arith.constant 0 : i32
    %c0_i32_1 = arith.constant 0 : i32
    %c0_i32_2 = arith.constant 0 : i32
    return %arg0, %c0_i32, %c0_i32_0, %c0_i32_1 : i32, i32, i32, i32
  }
  func.func @transform_1(%arg0: i32) -> (i32, i32, i32) {
    %c0_i32 = arith.constant 0 : i32
    %c0_i32_0 = arith.constant 0 : i32
    %c0_i32_1 = arith.constant 0 : i32
    %c0_i32_2 = arith.constant 0 : i32
    return %c0_i32, %c0_i32_0, %c0_i32_1 : i32, i32, i32
  }
  func.func @transform_2(%arg0: i32) -> (i32, i32) {
    %c0_i32 = arith.constant 0 : i32
    %c0_i32_0 = arith.constant 0 : i32
    %c0_i32_1 = arith.constant 0 : i32
    return %c0_i32, %c0_i32_0 : i32, i32
  }
  func.func @transform_3(%arg0: i32) -> (i32, i32, i32) {
    %c0_i32 = arith.constant 0 : i32
    %c0_i32_0 = arith.constant 0 : i32
    %c0_i32_1 = arith.constant 0 : i32
    return %arg0, %c0_i32, %c0_i32_0 : i32, i32, i32
  }
}

</mosaic_0001>

<llo_original>
// kernel: a_call__.1
$region0: #{a_call__.1}
  #allocation0 [shape = 'u32[]', space=smem, size = 0x4, offset = 0x4, fixed_abs, tag = 'smem constant byte address 0x4 - core index']
  #allocation1 [shape = 'u32[144,128]{1,0:T(1,128)}', space=vmem, size = 0x12000, scoped, tag = 'internal scratch']
  %s0 = inlined_call_operand.vmem [shape: bf16[2,18,18,4], index: 0, kind: input, shape index: {}]
  %s1 = inlined_call_operand.vmem [shape: bf16[9,4,128], index: 1, kind: input, shape index: {}]
  %s2 = inlined_call_operand.vmem [shape: f32[1,128], index: 2, kind: input, shape index: {}]
  %s3 = inlined_call_operand.vmem [shape: f32[2,256,128], index: 3, kind: output, shape index: {}]
  %s4 = sld [smem:[#allocation0]]
  $region45: #{a_call__.1} parent=0
    _
  %s6 = ssub.s32 1, %s4
  %s7 = scalar_select 0, %s6, %s4
  loop: start=0, step=1, limit=4
  $region2: #{a_call__.1} parent=0 // loop_pre_header
    _
  $region3: #{a_call__.1} parent=0 // loop_header
    %s9 = sphi 0, %s13
    %p10 = scmp.ge.s32.totalorder %s9, 4
    %s19 = sphi 0, %s21
    %s22 = sphi 0, %s19
    %s23 = sphi 0, %s22
    %s39 = sphi 0, %s23
    %s43 = sphi 0, %s43
    %s45 = sphi 0, %s43
    %s46 = sphi 0, %s45
    %s60 = sphi 0, %s46
    %s64 = sphi 0, %s64
    %s66 = sphi 0, %s64
    %s67 = sphi 0, %s66
    %s81 = sphi 0, %s67
    %s87 = sphi 0, %s89
    %s90 = sphi 0, %s87
    %s91 = sphi 0, %s90
    %s107 = sphi 0, %s91
  $region4: #{a_call__.1} parent=0 // loop_header_branch
    %12 = sbr.rel (%p10) target = $region8
  $region5: #{a_call__.1} parent=0 // loop_body
    %s14 = ssub.s32 %s9, 1
    %s15 = ssub.s32 %s9, 2
    %s16 = sadd.s32 %s9, 1
    %s17 = ssub.s32 %s9, %s16
    %p18 = scmp.eq.s32.totalorder %s17, 0
    %s20 = sadd.s32 %s19, 1
    %s21 = scalar_select %p18, %s19, %s20
    %p24 = pneg %p18
    %p25 = scmp.eq.s32.totalorder %s9, 1
    %p26 = por %p24, %p25
    %p27 = scmp.ne.s32.totalorder %s19, %s22
    %p28 = scmp.eq.s32.totalorder %s9, 0
    %p29 = por %p27, %p28
    %p30 = scmp.ne.s32.totalorder %s19, %s22
    %p31 = scmp.eq.s32.totalorder %s14, 1
    %p32 = por %p30, %p31
    %p33 = scmp.ne.s32.totalorder %s22, %s23
    %p34 = scmp.eq.s32.totalorder %s14, 0
    %p35 = por %p33, %p34
    %p36 = scmp.ne.s32.totalorder %s22, %s23
    %p37 = scmp.eq.s32.totalorder %s15, 1
    %p38 = por %p36, %p37
    %p40 = scmp.ne.s32.totalorder %s23, %s39
    %p41 = scmp.eq.s32.totalorder %s15, 0
    %p42 = por %p40, %p41
    %s44 = sadd.s32 %s43, 1
    %p47 = scmp.eq.s32.totalorder %s9, 1
    %p48 = scmp.ne.s32.totalorder %s43, %s45
    %p49 = scmp.eq.s32.totalorder %s9, 0
    %p50 = por %p48, %p49
    %p51 = scmp.ne.s32.totalorder %s43, %s45
    %p52 = scmp.eq.s32.totalorder %s14, 1
    %p53 = por %p51, %p52
    %p54 = scmp.ne.s32.totalorder %s45, %s46
    %p55 = scmp.eq.s32.totalorder %s14, 0
    %p56 = por %p54, %p55
    %p57 = scmp.ne.s32.totalorder %s45, %s46
    %p58 = scmp.eq.s32.totalorder %s15, 1
    %p59 = por %p57, %p58
    %p61 = scmp.ne.s32.totalorder %s46, %s60
    %p62 = scmp.eq.s32.totalorder %s15, 0
    %p63 = por %p61, %p62
    %s65 = sadd.s32 %s64, 1
    %p68 = scmp.eq.s32.totalorder %s9, 1
    %p69 = scmp.ne.s32.totalorder %s64, %s66
    %p70 = scmp.eq.s32.totalorder %s9, 0
    %p71 = por %p69, %p70
    %p72 = scmp.ne.s32.totalorder %s64, %s66
    %p73 = scmp.eq.s32.totalorder %s14, 1
    %p74 = por %p72, %p73
    %p75 = scmp.ne.s32.totalorder %s66, %s67
    %p76 = scmp.eq.s32.totalorder %s14, 0
    %p77 = por %p75, %p76
    %p78 = scmp.ne.s32.totalorder %s66, %s67
    %p79 = scmp.eq.s32.totalorder %s15, 1
    %p80 = por %p78, %p79
    %p82 = scmp.ne.s32.totalorder %s67, %s81
    %p83 = scmp.eq.s32.totalorder %s15, 0
    %p84 = por %p82, %p83
    %s85 = ssub.s32 %s9, %s16
    %p86 = scmp.eq.s32.totalorder %s85, 0
    %s88 = sadd.s32 %s87, 1
    %s89 = scalar_select %p86, %s87, %s88
    %p92 = pneg %p86
    %p93 = scmp.eq.s32.totalorder %s9, 1
    %p94 = por %p92, %p93
    %p95 = scmp.ne.s32.totalorder %s87, %s90
    %p96 = scmp.eq.s32.totalorder %s9, 0
    %p97 = por %p95, %p96
    %p98 = scmp.ne.s32.totalorder %s87, %s90
    %p99 = scmp.eq.s32.totalorder %s14, 1
    %p100 = por %p98, %p99
    %p101 = scmp.ne.s32.totalorder %s90, %s91
    %p102 = scmp.eq.s32.totalorder %s14, 0
    %p103 = por %p101, %p102
    %p104 = scmp.ne.s32.totalorder %s90, %s91
    %p105 = scmp.eq.s32.totalorder %s15, 1
    %p106 = por %p104, %p105
    %p108 = scmp.ne.s32.totalorder %s91, %s107
    %p109 = scmp.eq.s32.totalorder %s15, 0
    %p110 = por %p108, %p109
    %p111 = scmp.le.s32.totalorder 1, %s9
    %p112 = scmp.lt.s32.totalorder %s9, 3
    %p113 = pnand %p111, %p112
    %p114 = pneg %p113
    // Predicated region
    $region9: #{a_call__.1} parent=5 // pred_check
      _
    $region10: #{a_call__.1} parent=5 // pred_check_branch
      %116 = sbr.rel (%p113) target = $region12
    $region11: #{a_call__.1} parent=5 // pred_region
      %s117 = ssub.s32 %s9, 1
      // Predicated region
      $region13: #{a_call__.1} parent=11 // pred_check
        %p118 = pneg %p56
      $region14: #{a_call__.1} parent=11 // pred_check_branch
        %120 = sbr.rel (%p118) target = $region16
      $region15: #{a_call__.1} parent=11 // pred_region
        _
      $region16: #{a_call__.1} parent=11 // pred_fallthru
        _
      // Predicated region
      $region17: #{a_call__.1} parent=11 // pred_check
        %p121 = pneg %p77
      $region18: #{a_call__.1} parent=11 // pred_check_branch
        %123 = sbr.rel (%p121) target = $region20
      $region19: #{a_call__.1} parent=11 // pred_region
        _
      $region20: #{a_call__.1} parent=11 // pred_fallthru
        _
    $region12: #{a_call__.1} parent=5 // pred_fallthru
      _
    %p124 = scmp.lt.s32.totalorder %s9, 2
    // Predicated region
    $region21: #{a_call__.1} parent=5 // pred_check
      %p125 = pneg %p124
    $region22: #{a_call__.1} parent=5 // pred_check_branch
      %127 = sbr.rel (%p125) target = $region24
    $region23: #{a_call__.1} parent=5 // pred_region
      // Predicated region
      $region25: #{a_call__.1} parent=23 // pred_check
        %p128 = pneg %p29
      $region26: #{a_call__.1} parent=23 // pred_check_branch
        %130 = sbr.rel (%p128) target = $region28
      $region27: #{a_call__.1} parent=23 // pred_region
        %p131 = scmp.lt.s32.totalorder %s9, 1
        %s132 = scalar_select %p131, %s9, 1
        %s133 = smul.addr %s132, 54
        %s134 = smul.addr %s133, 4
        %s135 = scalar_lea.vmem %s0, %s134
      $region28: #{a_call__.1} parent=23 // pred_fallthru
        _
    $region24: #{a_call__.1} parent=5 // pred_fallthru
      _
    %p136 = scmp.le.s32.totalorder 1, %s9
    %p137 = scmp.lt.s32.totalorder %s9, 3
    %p138 = pnand %p136, %p137
    %p139 = pneg %p138
    // Predicated region
    $region29: #{a_call__.1} parent=5 // pred_check
      _
    $region30: #{a_call__.1} parent=5 // pred_check_branch
      %141 = sbr.rel (%p138) target = $region32
    $region31: #{a_call__.1} parent=5 // pred_region
      %s142 = ssub.s32 %s9, 1
      %p143 = scmp.lt.s32.totalorder %s14, 1
      %s144 = scalar_select %p143, %s14, 1
      %s145 = smul.addr %s144, 54
      %s146 = smul.addr %s145, 4
      %s147 = scalar_lea.vmem %s0, %s146
      %p148 = pneg %p35
      %p149 = pneg %p32
      %p150 = pneg %p56
      %p151 = pneg %p53
      %p152 = pneg %p77
      %p153 = pneg %p74
      %p154 = pneg %p103
      %p155 = pneg %p100
      %p156 = scmp.lt.s32.totalorder %s14, 1
      %s157 = scalar_select %p156, %s14, 1
      %s158 = smul.addr %s157, 32
      %s159 = smul.addr %s158, 8
      %s160 = scalar_lea.vmem %s3, %s159
      %p161 = scmp.lt.s32.totalorder %s14, 1
      %s162 = scalar_select %p161, %s14, 1
      %s163 = smul.addr %s162, 54
      %s164 = smul.addr %s163, 4
      %s165 = scalar_lea.vmem %s0, %s164
      %p166 = scmp.lt.s32.totalorder %s14, 1
      %s167 = scalar_select %p166, %s14, 1
      %s168 = smul.addr %s167, 32
      %s169 = smul.addr %s168, 8
      %s170 = scalar_lea.vmem %s3, %s169
      %v172 = vld [vmem:[%s2] sm:$0x1]
      %v174 = vlaneseq
      %v175 = vshrl.u32 %v174, 7
      %v176 = vsub.s32 0, %v175
      %v177 = vrot.slane %v172, %v176
      %179 = vst [vmem:[%s170] sm:$0xff] %v177
      %180 = vst [vmem:[%s170 + $0x8] sm:$0xff] %v177
      %181 = vst [vmem:[%s170 + $0x10] sm:$0xff] %v177
      %182 = vst [vmem:[%s170 + $0x18] sm:$0xff] %v177
      %183 = vst [vmem:[%s170 + $0x20] sm:$0xff] %v177
      %184 = vst [vmem:[%s170 + $0x28] sm:$0xff] %v177
      %185 = vst [vmem:[%s170 + $0x30] sm:$0xff] %v177
      %186 = vst [vmem:[%s170 + $0x38] sm:$0xff] %v177
      %187 = vst [vmem:[%s170 + $0x40] sm:$0xff] %v177
      %188 = vst [vmem:[%s170 + $0x48] sm:$0xff] %v177
      %189 = vst [vmem:[%s170 + $0x50] sm:$0xff] %v177
      %190 = vst [vmem:[%s170 + $0x58] sm:$0xff] %v177
      %191 = vst [vmem:[%s170 + $0x60] sm:$0xff] %v177
      %192 = vst [vmem:[%s170 + $0x68] sm:$0xff] %v177
      %193 = vst [vmem:[%s170 + $0x70] sm:$0xff] %v177
      %194 = vst [vmem:[%s170 + $0x78] sm:$0xff] %v177
      %195 = vst [vmem:[%s170 + $0x80] sm:$0xff] %v177
      %196 = vst [vmem:[%s170 + $0x88] sm:$0xff] %v177
      %197 = vst [vmem:[%s170 + $0x90] sm:$0xff] %v177
      %198 = vst [vmem:[%s170 + $0x98] sm:$0xff] %v177
      %199 = vst [vmem:[%s170 + $0xa0] sm:$0xff] %v177
      %200 = vst [vmem:[%s170 + $0xa8] sm:$0xff] %v177
      %201 = vst [vmem:[%s170 + $0xb0] sm:$0xff] %v177
      %202 = vst [vmem:[%s170 + $0xb8] sm:$0xff] %v177
      %203 = vst [vmem:[%s170 + $0xc0] sm:$0xff] %v177
      %204 = vst [vmem:[%s170 + $0xc8] sm:$0xff] %v177
      %205 = vst [vmem:[%s170 + $0xd0] sm:$0xff] %v177
      %206 = vst [vmem:[%s170 + $0xd8] sm:$0xff] %v177
      %207 = vst [vmem:[%s170 + $0xe0] sm:$0xff] %v177
      %208 = vst [vmem:[%s170 + $0xe8] sm:$0xff] %v177
      %209 = vst [vmem:[%s170 + $0xf0] sm:$0xff] %v177
      %210 = vst [vmem:[%s170 + $0xf8] sm:$0xff] %v177
      %v211 = vld [vmem:[%s165] sm:$0xf]
      %v212 = vld [vmem:[%s165 + $0x4] sm:$0xf]
      %v213 = vld [vmem:[%s165 + $0xc] sm:$0xf]
      %v214 = vld [vmem:[%s165 + $0x10] sm:$0xf]
      %v215 = vld [vmem:[%s165 + $0x18] sm:$0xf]
      %v216 = vld [vmem:[%s165 + $0x1c] sm:$0xf]
      %v217 = vld [vmem:[%s165 + $0x24] sm:$0xf]
      %v218 = vld [vmem:[%s165 + $0x28] sm:$0xf]
      %v219 = vld [vmem:[%s165 + $0x30] sm:$0xf]
      %v220 = vld [vmem:[%s165 + $0x34] sm:$0xf]
      %v221 = vld [vmem:[%s165 + $0x3c] sm:$0xf]
      %v222 = vld [vmem:[%s165 + $0x40] sm:$0xf]
      %v223 = vld [vmem:[%s165 + $0x48] sm:$0xf]
      %v224 = vld [vmem:[%s165 + $0x4c] sm:$0xf]
      %v225 = vld [vmem:[%s165 + $0x54] sm:$0xf]
      %v226 = vld [vmem:[%s165 + $0x58] sm:$0xf]
      %v227 = vld [vmem:[%s165 + $0x60] sm:$0xf]
      %v228 = vld [vmem:[%s165 + $0x64] sm:$0xf]
      %v229 = vld [vmem:[%s165 + $0x6c] sm:$0xf]
      %v230 = vld [vmem:[%s165 + $0x70] sm:$0xf]
      %v231 = vld [vmem:[%s165 + $0x78] sm:$0xf]
      %v232 = vld [vmem:[%s165 + $0x7c] sm:$0xf]
      %v233 = vld [vmem:[%s165 + $0x84] sm:$0xf]
      %v234 = vld [vmem:[%s165 + $0x88] sm:$0xf]
      %v235 = vld [vmem:[%s165 + $0x90] sm:$0xf]
      %v236 = vld [vmem:[%s165 + $0x94] sm:$0xf]
      %v237 = vld [vmem:[%s165 + $0x9c] sm:$0xf]
      %v238 = vld [vmem:[%s165 + $0xa0] sm:$0xf]
      %v239 = vld [vmem:[%s165 + $0xa8] sm:$0xf]
      %v240 = vld [vmem:[%s165 + $0xac] sm:$0xf]
      %v241 = vld [vmem:[%s165 + $0xb4] sm:$0xf]
      %v242 = vld [vmem:[%s165 + $0xb8] sm:$0xf]
      %v243 = vld [vmem:[%s170] sm:$0xff]
      %v244 = vld [vmem:[%s170 + $0x8] sm:$0xff]
      %v245 = vld [vmem:[%s170 + $0x10] sm:$0xff]
      %v246 = vld [vmem:[%s170 + $0x18] sm:$0xff]
      %v247 = vld [vmem:[%s170 + $0x20] sm:$0xff]
      %v248 = vld [vmem:[%s170 + $0x28] sm:$0xff]
      %v249 = vld [vmem:[%s170 + $0x30] sm:$0xff]
      %v250 = vld [vmem:[%s170 + $0x38] sm:$0xff]
      %v251 = vld [vmem:[%s170 + $0x40] sm:$0xff]
      %v252 = vld [vmem:[%s170 + $0x48] sm:$0xff]
      %v253 = vld [vmem:[%s170 + $0x50] sm:$0xff]
      %v254 = vld [vmem:[%s170 + $0x58] sm:$0xff]
      %v255 = vld [vmem:[%s170 + $0x60] sm:$0xff]
      %v256 = vld [vmem:[%s170 + $0x68] sm:$0xff]
      %v257 = vld [vmem:[%s170 + $0x70] sm:$0xff]
      %v258 = vld [vmem:[%s170 + $0x78] sm:$0xff]
      %v259 = vld [vmem:[%s170 + $0x80] sm:$0xff]
      %v260 = vld [vmem:[%s170 + $0x88] sm:$0xff]
      %v261 = vld [vmem:[%s170 + $0x90] sm:$0xff]
      %v262 = vld [vmem:[%s170 + $0x98] sm:$0xff]
      %v263 = vld [vmem:[%s170 + $0xa0] sm:$0xff]
      %v264 = vld [vmem:[%s170 + $0xa8] sm:$0xff]
      %v265 = vld [vmem:[%s170 + $0xb0] sm:$0xff]
      %v266 = vld [vmem:[%s170 + $0xb8] sm:$0xff]
      %v267 = vld [vmem:[%s170 + $0xc0] sm:$0xff]
      %v268 = vld [vmem:[%s170 + $0xc8] sm:$0xff]
      %v269 = vld [vmem:[%s170 + $0xd0] sm:$0xff]
      %v270 = vld [vmem:[%s170 + $0xd8] sm:$0xff]
      %v271 = vld [vmem:[%s170 + $0xe0] sm:$0xff]
      %v272 = vld [vmem:[%s170 + $0xe8] sm:$0xff]
      %v273 = vld [vmem:[%s170 + $0xf0] sm:$0xff]
      %v274 = vld [vmem:[%s170 + $0xf8] sm:$0xff]
      %v275 = vld [vmem:[%s1] sm:$0x3]
      %v308 = vunpack.c.l.b16 %v211
      %v309 = vunpack.c.l.b16 %v212
      %v310 = vunpack.c.l.b16 %v213
      %v311 = vunpack.c.l.b16 %v214
      %v312 = vunpack.c.l.b16 %v215
      %v313 = vunpack.c.l.b16 %v216
      %v314 = vunpack.c.l.b16 %v217
      %v315 = vunpack.c.l.b16 %v218
      %v316 = vunpack.c.l.b16 %v219
      %v317 = vunpack.c.l.b16 %v220
      %v318 = vunpack.c.l.b16 %v221
      %v319 = vunpack.c.l.b16 %v222
      %v320 = vunpack.c.l.b16 %v223
      %v321 = vunpack.c.l.b16 %v224
      %v322 = vunpack.c.l.b16 %v225
      %v323 = vunpack.c.l.b16 %v226
      %v324 = vunpack.c.l.b16 %v227
      %v325 = vunpack.c.l.b16 %v228
      %v326 = vunpack.c.l.b16 %v229
      %v327 = vunpack.c.l.b16 %v230
      %v328 = vunpack.c.l.b16 %v231
      %v329 = vunpack.c.l.b16 %v232
      %v330 = vunpack.c.l.b16 %v233
      %v331 = vunpack.c.l.b16 %v234
      %v332 = vunpack.c.l.b16 %v235
      %v333 = vunpack.c.l.b16 %v236
      %v334 = vunpack.c.l.b16 %v237
      %v335 = vunpack.c.l.b16 %v238
      %v336 = vunpack.c.l.b16 %v239
      %v337 = vunpack.c.l.b16 %v240
      %v338 = vunpack.c.l.b16 %v241
      %v339 = vunpack.c.l.b16 %v242
      %v340 = vpack.c.b16 %v309, %v308
      %v341 = vpack.c.b16 %v311, %v310
      %v342 = vpack.c.b16 %v313, %v312
      %v343 = vpack.c.b16 %v315, %v314
      %v344 = vpack.c.b16 %v317, %v316
      %v345 = vpack.c.b16 %v319, %v318
      %v346 = vpack.c.b16 %v321, %v320
      %v347 = vpack.c.b16 %v323, %v322
      %v348 = vpack.c.b16 %v325, %v324
      %v349 = vpack.c.b16 %v327, %v326
      %v350 = vpack.c.b16 %v329, %v328
      %v351 = vpack.c.b16 %v331, %v330
      %v352 = vpack.c.b16 %v333, %v332
      %v353 = vpack.c.b16 %v335, %v334
      %v354 = vpack.c.b16 %v337, %v336
      %v355 = vpack.c.b16 %v339, %v338
      %vm356 = vcmask 31744
      %v358 = vsel %vm356, %v340, 0
      %v361 = vsel %vm356, %v341, 0
      %v364 = vsel %vm356, %v342, 0
      %v367 = vsel %vm356, %v343, 0
      %v370 = vsel %vm356, %v344, 0
      %v373 = vsel %vm356, %v345, 0
      %v376 = vsel %vm356, %v346, 0
      %v379 = vsel %vm356, %v347, 0
      %v382 = vsel %vm356, %v348, 0
      %v385 = vsel %vm356, %v349, 0
      %v388 = vsel %vm356, %v350, 0
      %v391 = vsel %vm356, %v351, 0
      %v394 = vsel %vm356, %v352, 0
      %v397 = vsel %vm356, %v353, 0
      %v400 = vsel %vm356, %v354, 0
      %v403 = vsel %vm356, %v355, 0
      %vm405 = vcmask 1041408
      %v407 = vsel %vm405, %v275, 0
      %409 = vmatprep.subr.bf16.mxu0 0
      %410 = vmatpush1.bf16.msra.mxu0 %v407
      %411 = vmatprep.subr.bf16.mxu0 0
      %412 = vmatpush1.bf16.msra.mxu0 0
      %413 = vmatprep.subr.bf16.mxu0 0
      %414 = vmatpush1.bf16.msra.mxu0 0
      %415 = vmatprep.subr.bf16.mxu0 0
      %416 = vmatpush1.bf16.msra.mxu0 0
      %417 = vmatprep.subr.bf16.mxu0 0
      %418 = vmatpush1.bf16.msra.mxu0 0
      %419 = vmatprep.subr.bf16.mxu0 0
      %420 = vmatpush1.bf16.msra.mxu0 0
      %421 = vmatprep.subr.bf16.mxu0 0
      %422 = vmatpush1.bf16.msra.mxu0 0
      %423 = vmatprep.subr.bf16.mxu0 0
      %424 = vmatpush1.bf16.msra.mxu0 0
      %425 = vmatprep.subr.bf16.mxu0 0
      %426 = vmatpush1.bf16.msra.mxu0 0
      %427 = vmatprep.subr.bf16.mxu0 0
      %428 = vmatpush1.bf16.msra.mxu0 0
      %429 = vmatprep.subr.bf16.mxu0 0
      %430 = vmatpush1.bf16.msra.mxu0 0
      %431 = vmatprep.subr.bf16.mxu0 0
      %432 = vmatpush1.bf16.msra.mxu0 0
      %433 = vmatprep.subr.bf16.mxu0 0
      %434 = vmatpush1.bf16.msra.mxu0 0
      %435 = vmatprep.subr.bf16.mxu0 0
      %436 = vmatpush1.bf16.msra.mxu0 0
      %437 = vmatprep.subr.bf16.mxu0 0
      %438 = vmatpush1.bf16.msra.mxu0 0
      %439 = vmatprep.subr.bf16.mxu0 0
      %440 = vmatpush1.bf16.msra.mxu0 0
      %441 = vmatprep.mubr.bf16.mxu0 0
      %442 = vmatmul.mubr.bf16.gmra.mrb[0].mxu0 %v358
      %v443 = vpop.f32.mrb[0].mxu0
      %v444 = vadd.f32 0.0, %v443
      %v445 = vpop.f32.mrb[0].mxu0
      %v446 = vpop.f32.mrb[0].mxu0
      %v447 = vadd.f32 0.0, %v446
      %v448 = vpop.f32.mrb[0].mxu0
      %449 = vmatprep.mubr.bf16.mxu0 0
      %450 = vmatmul.mubr.bf16.gmra.mrb[0].mxu0 %v361
      %v451 = vpop.f32.mrb[0].mxu0
      %v452 = vadd.f32 0.0, %v451
      %v453 = vpop.f32.mrb[0].mxu0
      %v454 = vpop.f32.mrb[0].mxu0
      %v455 = vadd.f32 0.0, %v454
      %v456 = vpop.f32.mrb[0].mxu0
      %457 = vmatprep.mubr.bf16.mxu0 0
      %458 = vmatmul.mubr.bf16.gmra.mrb[0].mxu0 %v364
      %v459 = vpop.f32.mrb[0].mxu0
      %v460 = vadd.f32 0.0, %v459
      %v461 = vpop.f32.mrb[0].mxu0
      %v462 = vpop.f32.mrb[0].mxu0
      %v463 = vadd.f32 0.0, %v462
      %v464 = vpop.f32.mrb[0].mxu0
      %465 = vmatprep.mubr.bf16.mxu0 0
      %466 = vmatmul.mubr.bf16.gmra.mrb[0].mxu0 %v367
      %v467 = vpop.f32.mrb[0].mxu0
      %v468 = vadd.f32 0.0, %v467
      %v469 = vpop.f32.mrb[0].mxu0
      %v470 = vpop.f32.mrb[0].mxu0
      %v471 = vadd.f32 0.0, %v470
      %v472 = vpop.f32.mrb[0].mxu0
      %473 = vmatprep.mubr.bf16.mxu0 0
      %474 = vmatmul.mubr.bf16.gmra.mrb[0].mxu0 %v370
      %v475 = vpop.f32.mrb[0].mxu0
      %v476 = vadd.f32 0.0, %v475
      %v477 = vpop.f32.mrb[0].mxu0
      %v478 = vpop.f32.mrb[0].mxu0
      %v479 = vadd.f32 0.0, %v478
      %v480 = vpop.f32.mrb[0].mxu0
      %481 = vmatprep.mubr.bf16.mxu0 0
      %482 = vmatmul.mubr.bf16.gmra.mrb[0].mxu0 %v373
      %v483 = vpop.f32.mrb[0].mxu0
      %v484 = vadd.f32 0.0, %v483
      %v485 = vpop.f32.mrb[0].mxu0
      %v486 = vpop.f32.mrb[0].mxu0
      %v487 = vadd.f32 0.0, %v486
      %v488 = vpop.f32.mrb[0].mxu0
      %489 = vmatprep.mubr.bf16.mxu0 0
      %490 = vmatmul.mubr.bf16.gmra.mrb[0].mxu0 %v376
      %v491 = vpop.f32.mrb[0].mxu0
      %v492 = vadd.f32 0.0, %v491
      %v493 = vpop.f32.mrb[0].mxu0
      %v494 = vpop.f32.mrb[0].mxu0
      %v495 = vadd.f32 0.0, %v494
      %v496 = vpop.f32.mrb[0].mxu0
      %497 = vmatprep.mubr.bf16.mxu0 0
      %498 = vmatmul.mubr.bf16.gmra.mrb[0].mxu0 %v379
      %v499 = vpop.f32.mrb[0].mxu0
      %v500 = vadd.f32 0.0, %v499
      %v501 = vpop.f32.mrb[0].mxu0
      %v502 = vpop.f32.mrb[0].mxu0
      %v503 = vadd.f32 0.0, %v502
      %v504 = vpop.f32.mrb[0].mxu0
      %505 = vmatprep.mubr.bf16.mxu0 0
      %506 = vmatmul.mubr.bf16.gmra.mrb[0].mxu0 %v382
      %v507 = vpop.f32.mrb[0].mxu0
      %v508 = vadd.f32 0.0, %v507
      %v509 = vpop.f32.mrb[0].mxu0
      %v510 = vpop.f32.mrb[0].mxu0
      %v511 = vadd.f32 0.0, %v510
      %v512 = vpop.f32.mrb[0].mxu0
      %513 = vmatprep.mubr.bf16.mxu0 0
      %514 = vmatmul.mubr.bf16.gmra.mrb[0].mxu0 %v385
      %v515 = vpop.f32.mrb[0].mxu0
      %v516 = vadd.f32 0.0, %v515
      %v517 = vpop.f32.mrb[0].mxu0
      %v518 = vpop.f32.mrb[0].mxu0
      %v519 = vadd.f32 0.0, %v518
      %v520 = vpop.f32.mrb[0].mxu0
      %521 = vmatprep.mubr.bf16.mxu0 0
      %522 = vmatmul.mubr.bf16.gmra.mrb[0].mxu0 %v388
      %v523 = vpop.f32.mrb[0].mxu0
      %v524 = vadd.f32 0.0, %v523
      %v525 = vpop.f32.mrb[0].mxu0
      %v526 = vpop.f32.mrb[0].mxu0
      %v527 = vadd.f32 0.0, %v526
      %v528 = vpop.f32.mrb[0].mxu0
      %529 = vmatprep.mubr.bf16.mxu0 0
      %530 = vmatmul.mubr.bf16.gmra.mrb[0].mxu0 %v391
      %v531 = vpop.f32.mrb[0].mxu0
      %v532 = vadd.f32 0.0, %v531
      %v533 = vpop.f32.mrb[0].mxu0
      %v534 = vpop.f32.mrb[0].mxu0
      %v535 = vadd.f32 0.0, %v534
      %v536 = vpop.f32.mrb[0].mxu0
      %537 = vmatprep.mubr.bf16.mxu0 0
      %538 = vmatmul.mubr.bf16.gmra.mrb[0].mxu0 %v394
      %v539 = vpop.f32.mrb[0].mxu0
      %v540 = vadd.f32 0.0, %v539
      %v541 = vpop.f32.mrb[0].mxu0
      %v542 = vpop.f32.mrb[0].mxu0
      %v543 = vadd.f32 0.0, %v542
      %v544 = vpop.f32.mrb[0].mxu0
      %545 = vmatprep.mubr.bf16.mxu0 0
      %546 = vmatmul.mubr.bf16.gmra.mrb[0].mxu0 %v397
      %v547 = vpop.f32.mrb[0].mxu0
      %v548 = vadd.f32 0.0, %v547
      %v549 = vpop.f32.mrb[0].mxu0
      %v550 = vpop.f32.mrb[0].mxu0
      %v551 = vadd.f32 0.0, %v550
      %v552 = vpop.f32.mrb[0].mxu0
      %553 = vmatprep.mubr.bf16.mxu0 0
      %554 = vmatmul.mubr.bf16.gmra.mrb[0].mxu0 %v400
      %v555 = vpop.f32.mrb[0].mxu0
      %v556 = vadd.f32 0.0, %v555
      %v557 = vpop.f32.mrb[0].mxu0
      %v558 = vpop.f32.mrb[0].mxu0
      %v559 = vadd.f32 0.0, %v558
      %v560 = vpop.f32.mrb[0].mxu0
      %561 = vmatprep.mubr.bf16.mxu0 0
      %562 = vmatmul.mubr.bf16.gmra.mrb[0].mxu0 %v403
      %v563 = vpop.f32.mrb[0].mxu0
      %v564 = vadd.f32 0.0, %v563
      %v565 = vpop.f32.mrb[0].mxu0
      %v566 = vpop.f32.mrb[0].mxu0
      %v567 = vadd.f32 0.0, %v566
      %v568 = vpop.f32.mrb[0].mxu0
      %569 = vdwg.mxu0
      %v570 = vadd.f32 %v243, %v444
      %v571 = vadd.f32 %v244, %v447
      %v572 = vadd.f32 %v245, %v452
      %v573 = vadd.f32 %v246, %v455
      %v574 = vadd.f32 %v247, %v460
      %v575 = vadd.f32 %v248, %v463
      %v576 = vadd.f32 %v249, %v468
      %v577 = vadd.f32 %v250, %v471
      %v578 = vadd.f32 %v251, %v476
      %v579 = vadd.f32 %v252, %v479
      %v580 = vadd.f32 %v253, %v484
      %v581 = vadd.f32 %v254, %v487
      %v582 = vadd.f32 %v255, %v492
      %v583 = vadd.f32 %v256, %v495
      %v584 = vadd.f32 %v257, %v500
      %v585 = vadd.f32 %v258, %v503
      %v586 = vadd.f32 %v259, %v508
      %v587 = vadd.f32 %v260, %v511
      %v588 = vadd.f32 %v261, %v516
      %v589 = vadd.f32 %v262, %v519
      %v590 = vadd.f32 %v263, %v524
      %v591 = vadd.f32 %v264, %v527
      %v592 = vadd.f32 %v265, %v532
      %v593 = vadd.f32 %v266, %v535
      %v594 = vadd.f32 %v267, %v540
      %v595 = vadd.f32 %v268, %v543
      %v596 = vadd.f32 %v269, %v548
      %v597 = vadd.f32 %v270, %v551
      %v598 = vadd.f32 %v271, %v556
      %v599 = vadd.f32 %v272, %v559
      %v600 = vadd.f32 %v273, %v564
      %v601 = vadd.f32 %v274, %v567
      %602 = vst [vmem:[%s170] sm:$0xff] %v570
      %603 = vst [vmem:[%s170 + $0x8] sm:$0xff] %v571
      %604 = vst [vmem:[%s170 + $0x10] sm:$0xff] %v572
      %605 = vst [vmem:[%s170 + $0x18] sm:$0xff] %v573
      %606 = vst [vmem:[%s170 + $0x20] sm:$0xff] %v574
      %607 = vst [vmem:[%s170 + $0x28] sm:$0xff] %v575
      %608 = vst [vmem:[%s170 + $0x30] sm:$0xff] %v576
      %609 = vst [vmem:[%s170 + $0x38] sm:$0xff] %v577
      %610 = vst [vmem:[%s170 + $0x40] sm:$0xff] %v578
      %611 = vst [vmem:[%s170 + $0x48] sm:$0xff] %v579
      %612 = vst [vmem:[%s170 + $0x50] sm:$0xff] %v580
      %613 = vst [vmem:[%s170 + $0x58] sm:$0xff] %v581
      %614 = vst [vmem:[%s170 + $0x60] sm:$0xff] %v582
      %615 = vst [vmem:[%s170 + $0x68] sm:$0xff] %v583
      %616 = vst [vmem:[%s170 + $0x70] sm:$0xff] %v584
      %617 = vst [vmem:[%s170 + $0x78] sm:$0xff] %v585
      %618 = vst [vmem:[%s170 + $0x80] sm:$0xff] %v586
      %619 = vst [vmem:[%s170 + $0x88] sm:$0xff] %v587
      %620 = vst [vmem:[%s170 + $0x90] sm:$0xff] %v588
      %621 = vst [vmem:[%s170 + $0x98] sm:$0xff] %v589
      %622 = vst [vmem:[%s170 + $0xa0] sm:$0xff] %v590
      %623 = vst [vmem:[%s170 + $0xa8] sm:$0xff] %v591
      %624 = vst [vmem:[%s170 + $0xb0] sm:$0xff] %v592
      %625 = vst [vmem:[%s170 + $0xb8] sm:$0xff] %v593
      %626 = vst [vmem:[%s170 + $0xc0] sm:$0xff] %v594
      %627 = vst [vmem:[%s170 + $0xc8] sm:$0xff] %v595
      %628 = vst [vmem:[%s170 + $0xd0] sm:$0xff] %v596
      %629 = vst [vmem:[%s170 + $0xd8] sm:$0xff] %v597
      %630 = vst [vmem:[%s170 + $0xe0] sm:$0xff] %v598
      %631 = vst [vmem:[%s170 + $0xe8] sm:$0xff] %v599
      %632 = vst [vmem:[%s170 + $0xf0] sm:$0xff] %v600
      %633 = vst [vmem:[%s170 + $0xf8] sm:$0xff] %v601
      %v634 = vld [vmem:[%s165] sm:$0xf]
      %v635 = vld [vmem:[%s165 + $0x4] sm:$0xf]
      %v636 = vld [vmem:[%s165 + $0x8] sm:$0x1]
      %v637 = vld [vmem:[%s165 + $0xc] sm:$0xf]
      %v638 = vld [vmem:[%s165 + $0x10] sm:$0xf]
      %v639 = vld [vmem:[%s165 + $0x14] sm:$0x1]
      %v640 = vld [vmem:[%s165 + $0x18] sm:$0xf]
      %v641 = vld [vmem:[%s165 + $0x1c] sm:$0xf]
      %v642 = vld [vmem:[%s165 + $0x20] sm:$0x1]
      %v643 = vld [vmem:[%s165 + $0x24] sm:$0xf]
      %v644 = vld [vmem:[%s165 + $0x28] sm:$0xf]
      %v645 = vld [vmem:[%s165 + $0x2c] sm:$0x1]
      %v646 = vld [vmem:[%s165 + $0x30] sm:$0xf]
      %v647 = vld [vmem:[%s165 + $0x34] sm:$0xf]
      %v648 = vld [vmem:[%s165 + $0x38] sm:$0x1]
      %v649 = vld [vmem:[%s165 + $0x3c] sm:$0xf]
      %v650 = vld [vmem:[%s165 + $0x40] sm:$0xf]
      %v651 = vld [vmem:[%s165 + $0x44] sm:$0x1]
      %v652 = vld [vmem:[%s165 + $0x48] sm:$0xf]
      %v653 = vld [vmem:[%s165 + $0x4c] sm:$0xf]
      %v654 = vld [vmem:[%s165 + $0x50] sm:$0x1]
      %v655 = vld [vmem:[%s165 + $0x54] sm:$0xf]
      %v656 = vld [vmem:[%s165 + $0x58] sm:$0xf]
      %v657 = vld [vmem:[%s165 + $0x5c] sm:$0x1]
      %v658 = vld [vmem:[%s165 + $0x60] sm:$0xf]
      %v659 = vld [vmem:[%s165 + $0x64] sm:$0xf]
      %v660 = vld [vmem:[%s165 + $0x68] sm:$0x1]
      %v661 = vld [vmem:[%s165 + $0x6c] sm:$0xf]
      %v662 = vld [vmem:[%s165 + $0x70] sm:$0xf]
      %v663 = vld [vmem:[%s165 + $0x74] sm:$0x1]
      %v664 = vld [vmem:[%s165 + $0x78] sm:$0xf]
      %v665 = vld [vmem:[%s165 + $0x7c] sm:$0xf]
      %v666 = vld [vmem:[%s165 + $0x80] sm:$0x1]
      %v667 = vld [vmem:[%s165 + $0x84] sm:$0xf]
      %v668 = vld [vmem:[%s165 + $0x88] sm:$0xf]
      %v669 = vld [vmem:[%s165 + $0x8c] sm:$0x1]
      %v670 = vld [vmem:[%s165 + $0x90] sm:$0xf]
      %v671 = vld [vmem:[%s165 + $0x94] sm:$0xf]
      %v672 = vld [vmem:[%s165 + $0x98] sm:$0x1]
      %v673 = vld [vmem:[%s165 + $0x9c] sm:$0xf]
      %v674 = vld [vmem:[%s165 + $0xa0] sm:$0xf]
      %v675 = vld [vmem:[%s165 + $0xa4] sm:$0x1]
      %v676 = vld [vmem:[%s165 + $0xa8] sm:$0xf]
      %v677 = vld [vmem:[%s165 + $0xac] sm:$0xf]
      %v678 = vld [vmem:[%s165 + $0xb0] sm:$0x1]
      %v679 = vld [vmem:[%s165 + $0xb4] sm:$0xf]
      %v680 = vld [vmem:[%s165 + $0xb8] sm:$0xf]
      %v681 = vld [vmem:[%s165 + $0xbc] sm:$0x1]
      %v682 = vld [vmem:[%s170] sm:$0xff]
      %v683 = vld [vmem:[%s170 + $0x8] sm:$0xff]
      %v684 = vld [vmem:[%s170 + $0x10] sm:$0xff]
      %v685 = vld [vmem:[%s170 + $0x18] sm:$0xff]
      %v686 = vld [vmem:[%s170 + $0x20] sm:$0xff]
      %v687 = vld [vmem:[%s170 + $0x28] sm:$0xff]
      %v688 = vld [vmem:[%s170 + $0x30] sm:$0xff]
      %v689 = vld [vmem:[%s170 + $0x38] sm:$0xff]
      %v690 = vld [vmem:[%s170 + $0x40] sm:$0xff]
      %v691 = vld [vmem:[%s170 + $0x48] sm:$0xff]
      %v692 = vld [vmem:[%s170 + $0x50] sm:$0xff]
      %v693 = vld [vmem:[%s170 + $0x58] sm:$0xff]
      %v694 = vld [vmem:[%s170 + $0x60] sm:$0xff]
      %v695 = vld [vmem:[%s170 + $0x68] sm:$0xff]
      %v696 = vld [vmem:[%s170 + $0x70] sm:$0xff]
      %v697 = vld [vmem:[%s170 + $0x78] sm:$0xff]
      %v698 = vld [vmem:[%s170 + $0x80] sm:$0xff]
      %v699 = vld [vmem:[%s170 + $0x88] sm:$0xff]
      %v700 = vld [vmem:[%s170 + $0x90] sm:$0xff]
      %v701 = vld [vmem:[%s170 + $0x98] sm:$0xff]
      %v702 = vld [vmem:[%s170 + $0xa0] sm:$0xff]
      %v703 = vld [vmem:[%s170 + $0xa8] sm:$0xff]
      %v704 = vld [vmem:[%s170 + $0xb0] sm:$0xff]
      %v705 = vld [vmem:[%s170 + $0xb8] sm:$0xff]
      %v706 = vld [vmem:[%s170 + $0xc0] sm:$0xff]
      %v707 = vld [vmem:[%s170 + $0xc8] sm:$0xff]
      %v708 = vld [vmem:[%s170 + $0xd0] sm:$0xff]
      %v709 = vld [vmem:[%s170 + $0xd8] sm:$0xff]
      %v710 = vld [vmem:[%s170 + $0xe0] sm:$0xff]
      %v711 = vld [vmem:[%s170 + $0xe8] sm:$0xff]
      %v712 = vld [vmem:[%s170 + $0xf0] sm:$0xff]
      %v713 = vld [vmem:[%s170 + $0xf8] sm:$0xff]
      %vm714 = vsmask.f32 3328
      %vm715 = vsmask.f32 7440
      %vm716 = vmor %vm714, %vm715
      %v718 = vshrl.u32 %v634, 16
      %v720 = vrot.slane %v718, 4
      %v721 = vshll.u32 %v634, 16
      %v723 = vrot.slane %v721, 5
      %v724 = vor.u32 %v720, %v723
      %v725 = vrot.slane %v724, 4
      %v727 = vshll.u32 %v635, 16
      %v729 = vrot.slane %v727, 5
      %v730 = vsel %vm716, %v725, %v729
      %v731 = vshrl.u32 %v635, 16
      %v733 = vrot.slane %v731, 4
      %v734 = vor.u32 %v733, %v729
      %v735 = vrot.slane %v734, 4
      %v737 = vshll.u32 %v636, 16
      %v739 = vrot.slane %v737, 5
      %v740 = vsel %vm716, %v735, %v739
      %v742 = vshrl.u32 %v637, 16
      %v744 = vrot.slane %v742, 4
      %v745 = vshll.u32 %v637, 16
      %v747 = vrot.slane %v745, 5
      %v748 = vor.u32 %v744, %v747
      %v749 = vrot.slane %v748, 4
      %v751 = vshll.u32 %v638, 16
      %v753 = vrot.slane %v751, 5
      %v754 = vsel %vm716, %v749, %v753
      %v755 = vshrl.u32 %v638, 16
      %v757 = vrot.slane %v755, 4
      %v758 = vor.u32 %v757, %v753
      %v759 = vrot.slane %v758, 4
      %v761 = vshll.u32 %v639, 16
      %v763 = vrot.slane %v761, 5
      %v764 = vsel %vm716, %v759, %v763
      %v766 = vshrl.u32 %v640, 16
      %v768 = vrot.slane %v766, 4
      %v769 = vshll.u32 %v640, 16
      %v771 = vrot.slane %v769, 5
      %v772 = vor.u32 %v768, %v771
      %v773 = vrot.slane %v772, 4
      %v775 = vshll.u32 %v641, 16
      %v777 = vrot.slane %v775, 5
      %v778 = vsel %vm716, %v773, %v777
      %v779 = vshrl.u32 %v641, 16
      %v781 = vrot.slane %v779, 4
      %v782 = vor.u32 %v781, %v777
      %v783 = vrot.slane %v782, 4
      %v785 = vshll.u32 %v642, 16
      %v787 = vrot.slane %v785, 5
      %v788 = vsel %vm716, %v783, %v787
      %v790 = vshrl.u32 %v643, 16
      %v792 = vrot.slane %v790, 4
      %v793 = vshll.u32 %v643, 16
      %v795 = vrot.slane %v793, 5
      %v796 = vor.u32 %v792, %v795
      %v797 = vrot.slane %v796, 4
      %v799 = vshll.u32 %v644, 16
      %v801 = vrot.slane %v799, 5
      %v802 = vsel %vm716, %v797, %v801
      %v803 = vshrl.u32 %v644, 16
      %v805 = vrot.slane %v803, 4
      %v806 = vor.u32 %v805, %v801
      %v807 = vrot.slane %v806, 4
      %v809 = vshll.u32 %v645, 16
      %v811 = vrot.slane %v809, 5
      %v812 = vsel %vm716, %v807, %v811
      %v814 = vshrl.u32 %v646, 16
      %v816 = vrot.slane %v814, 4
      %v817 = vshll.u32 %v646, 16
      %v819 = vrot.slane %v817, 5
      %v820 = vor.u32 %v816, %v819
      %v821 = vrot.slane %v820, 4
      %v823 = vshll.u32 %v647, 16
      %v825 = vrot.slane %v823, 5
      %v826 = vsel %vm716, %v821, %v825
      %v827 = vshrl.u32 %v647, 16
      %v829 = vrot.slane %v827, 4
      %v830 = vor.u32 %v829, %v825
      %v831 = vrot.slane %v830, 4
      %v833 = vshll.u32 %v648, 16
      %v835 = vrot.slane %v833, 5
      %v836 = vsel %vm716, %v831, %v835
      %v838 = vshrl.u32 %v649, 16
      %v840 = vrot.slane %v838, 4
      %v841 = vshll.u32 %v649, 16
      %v843 = vrot.slane %v841, 5
      %v844 = vor.u32 %v840, %v843
      %v845 = vrot.slane %v844, 4
      %v847 = vshll.u32 %v650, 16
      %v849 = vrot.slane %v847, 5
      %v850 = vsel %vm716, %v845, %v849
      %v851 = vshrl.u32 %v650, 16
      %v853 = vrot.slane %v851, 4
      %v854 = vor.u32 %v853, %v849
      %v855 = vrot.slane %v854, 4
      %v857 = vshll.u32 %v651, 16
      %v859 = vrot.slane %v857, 5
      %v860 = vsel %vm716, %v855, %v859
      %v862 = vshrl.u32 %v652, 16
      %v864 = vrot.slane %v862, 4
      %v865 = vshll.u32 %v652, 16
      %v867 = vrot.slane %v865, 5
      %v868 = vor.u32 %v864, %v867
      %v869 = vrot.slane %v868, 4
      %v871 = vshll.u32 %v653, 16
      %v873 = vrot.slane %v871, 5
      %v874 = vsel %vm716, %v869, %v873
      %v875 = vshrl.u32 %v653, 16
      %v877 = vrot.slane %v875, 4
      %v878 = vor.u32 %v877, %v873
      %v879 = vrot.slane %v878, 4
      %v881 = vshll.u32 %v654, 16
      %v883 = vrot.slane %v881, 5
      %v884 = vsel %vm716, %v879, %v883
      %v886 = vshrl.u32 %v655, 16
      %v888 = vrot.slane %v886, 4
      %v889 = vshll.u32 %v655, 16
      %v891 = vrot.slane %v889, 5
      %v892 = vor.u32 %v888, %v891
      %v893 = vrot.slane %v892, 4
      %v895 = vshll.u32 %v656, 16
      %v897 = vrot.slane %v895, 5
      %v898 = vsel %vm716, %v893, %v897
      %v899 = vshrl.u32 %v656, 16
      %v901 = vrot.slane %v899, 4
      %v902 = vor.u32 %v901, %v897
      %v903 = vrot.slane %v902, 4
      %v905 = vshll.u32 %v657, 16
      %v907 = vrot.slane %v905, 5
      %v908 = vsel %vm716, %v903, %v907
      %v910 = vshrl.u32 %v658, 16
      %v912 = vrot.slane %v910, 4
      %v913 = vshll.u32 %v658, 16
      %v915 = vrot.slane %v913, 5
      %v916 = vor.u32 %v912, %v915
      %v917 = vrot.slane %v916, 4
      %v919 = vshll.u32 %v659, 16
      %v921 = vrot.slane %v919, 5
      %v922 = vsel %vm716, %v917, %v921
      %v923 = vshrl.u32 %v659, 16
      %v925 = vrot.slane %v923, 4
      %v926 = vor.u32 %v925, %v921
      %v927 = vrot.slane %v926, 4
      %v929 = vshll.u32 %v660, 16
      %v931 = vrot.slane %v929, 5
      %v932 = vsel %vm716, %v927, %v931
      %v934 = vshrl.u32 %v661, 16
      %v936 = vrot.slane %v934, 4
      %v937 = vshll.u32 %v661, 16
      %v939 = vrot.slane %v937, 5
      %v940 = vor.u32 %v936, %v939
      %v941 = vrot.slane %v940, 4
      %v943 = vshll.u32 %v662, 16
      %v945 = vrot.slane %v943, 5
      %v946 = vsel %vm716, %v941, %v945
      %v947 = vshrl.u32 %v662, 16
      %v949 = vrot.slane %v947, 4
      %v950 = vor.u32 %v949, %v945
      %v951 = vrot.slane %v950, 4
      %v953 = vshll.u32 %v663, 16
      %v955 = vrot.slane %v953, 5
      %v956 = vsel %vm716, %v951, %v955
      %v958 = vshrl.u32 %v664, 16
      %v960 = vrot.slane %v958, 4
      %v961 = vshll.u32 %v664, 16
      %v963 = vrot.slane %v961, 5
      %v964 = vor.u32 %v960, %v963
      %v965 = vrot.slane %v964, 4
      %v967 = vshll.u32 %v665, 16
      %v969 = vrot.slane %v967, 5
      %v970 = vsel %vm716, %v965, %v969
      %v971 = vshrl.u32 %v665, 16
      %v973 = vrot.slane %v971, 4
      %v974 = vor.u32 %v973, %v969
      %v975 = vrot.slane %v974, 4
      %v977 = vshll.u32 %v666, 16
      %v979 = vrot.slane %v977, 5
      %v980 = vsel %vm716, %v975, %v979
      %v982 = vshrl.u32 %v667, 16
      %v984 = vrot.slane %v982, 4
      %v985 = vshll.u32 %v667, 16
      %v987 = vrot.slane %v985, 5
      %v988 = vor.u32 %v984, %v987
      %v989 = vrot.slane %v988, 4
      %v991 = vshll.u32 %v668, 16
      %v993 = vrot.slane %v991, 5
      %v994 = vsel %vm716, %v989, %v993
      %v995 = vshrl.u32 %v668, 16
      %v997 = vrot.slane %v995, 4
      %v998 = vor.u32 %v997, %v993
      %v999 = vrot.slane %v998, 4
      %v1001 = vshll.u32 %v669, 16
      %v1003 = vrot.slane %v1001, 5
      %v1004 = vsel %vm716, %v999, %v1003
      %v1006 = vshrl.u32 %v670, 16
      %v1008 = vrot.slane %v1006, 4
      %v1009 = vshll.u32 %v670, 16
      %v1011 = vrot.slane %v1009, 5
      %v1012 = vor.u32 %v1008, %v1011
      %v1013 = vrot.slane %v1012, 4
      %v1015 = vshll.u32 %v671, 16
      %v1017 = vrot.slane %v1015, 5
      %v1018 = vsel %vm716, %v1013, %v1017
      %v1019 = vshrl.u32 %v671, 16
      %v1021 = vrot.slane %v1019, 4
      %v1022 = vor.u32 %v1021, %v1017
      %v1023 = vrot.slane %v1022, 4
      %v1025 = vshll.u32 %v672, 16
      %v1027 = vrot.slane %v1025, 5
      %v1028 = vsel %vm716, %v1023, %v1027
      %v1030 = vshrl.u32 %v673, 16
      %v1032 = vrot.slane %v1030, 4
      %v1033 = vshll.u32 %v673, 16
      %v1035 = vrot.slane %v1033, 5
      %v1036 = vor.u32 %v1032, %v1035
      %v1037 = vrot.slane %v1036, 4
      %v1039 = vshll.u32 %v674, 16
      %v1041 = vrot.slane %v1039, 5
      %v1042 = vsel %vm716, %v1037, %v1041
      %v1043 = vshrl.u32 %v674, 16
      %v1045 = vrot.slane %v1043, 4
      %v1046 = vor.u32 %v1045, %v1041
      %v1047 = vrot.slane %v1046, 4
      %v1049 = vshll.u32 %v675, 16
      %v1051 = vrot.slane %v1049, 5
      %v1052 = vsel %vm716, %v1047, %v1051
      %v1054 = vshrl.u32 %v676, 16
      %v1056 = vrot.slane %v1054, 4
      %v1057 = vshll.u32 %v676, 16
      %v1059 = vrot.slane %v1057, 5
      %v1060 = vor.u32 %v1056, %v1059
      %v1061 = vrot.slane %v1060, 4
      %v1063 = vshll.u32 %v677, 16
      %v1065 = vrot.slane %v1063, 5
      %v1066 = vsel %vm716, %v1061, %v1065
      %v1067 = vshrl.u32 %v677, 16
      %v1069 = vrot.slane %v1067, 4
      %v1070 = vor.u32 %v1069, %v1065
      %v1071 = vrot.slane %v1070, 4
      %v1073 = vshll.u32 %v678, 16
      %v1075 = vrot.slane %v1073, 5
      %v1076 = vsel %vm716, %v1071, %v1075
      %v1078 = vshrl.u32 %v679, 16
      %v1080 = vrot.slane %v1078, 4
      %v1081 = vshll.u32 %v679, 16
      %v1083 = vrot.slane %v1081, 5
      %v1084 = vor.u32 %v1080, %v1083
      %v1085 = vrot.slane %v1084, 4
      %v1087 = vshll.u32 %v680, 16
      %v1089 = vrot.slane %v1087, 5
      %v1090 = vsel %vm716, %v1085, %v1089
      %v1091 = vshrl.u32 %v680, 16
      %v1093 = vrot.slane %v1091, 4
      %v1094 = vor.u32 %v1093, %v1089
      %v1095 = vrot.slane %v1094, 4
      %v1097 = vshll.u32 %v681, 16
      %v1099 = vrot.slane %v1097, 5
      %v1100 = vsel %vm716, %v1095, %v1099
      %s1101 = scalar_lea.vmem %s1, 2
      %v1102 = vld [vmem:[%s1101] sm:$0x3]
      %v1103 = vunpack.c.l.b16 %v730
      %v1104 = vunpack.c.l.b16 %v740
      %v1105 = vunpack.c.l.b16 %v754
      %v1106 = vunpack.c.l.b16 %v764
      %v1107 = vunpack.c.l.b16 %v778
      %v1108 = vunpack.c.l.b16 %v788
      %v1109 = vunpack.c.l.b16 %v802
      %v1110 = vunpack.c.l.b16 %v812
      %v1111 = vunpack.c.l.b16 %v826
      %v1112 = vunpack.c.l.b16 %v836
      %v1113 = vunpack.c.l.b16 %v850
      %v1114 = vunpack.c.l.b16 %v860
      %v1115 = vunpack.c.l.b16 %v874
      %v1116 = vunpack.c.l.b16 %v884
      %v1117 = vunpack.c.l.b16 %v898
      %v1118 = vunpack.c.l.b16 %v908
      %v1119 = vunpack.c.l.b16 %v922
      %v1120 = vunpack.c.l.b16 %v932
      %v1121 = vunpack.c.l.b16 %v946
      %v1122 = vunpack.c.l.b16 %v956
      %v1123 = vunpack.c.l.b16 %v970
      %v1124 = vunpack.c.l.b16 %v980
      %v1125 = vunpack.c.l.b16 %v994
      %v1126 = vunpack.c.l.b16 %v1004
      %v1127 = vunpack.c.l.b16 %v1018
      %v1128 = vunpack.c.l.b16 %v1028
      %v1129 = vunpack.c.l.b16 %v1042
      %v1130 = vunpack.c.l.b16 %v1052
      %v1131 = vunpack.c.l.b16 %v1066
      %v1132 = vunpack.c.l.b16 %v1076
      %v1133 = vunpack.c.l.b16 %v1090
      %v1134 = vunpack.c.l.b16 %v1100
      %v1135 = vpack.c.b16 %v1104, %v1103
      %v1136 = vpack.c.b16 %v1106, %v1105
      %v1137 = vpack.c.b16 %v1108, %v1107
      %v1138 = vpack.c.b16 %v1110, %v1109
      %v1139 = vpack.c.b16 %v1112, %v1111
      %v1140 = vpack.c.b16 %v1114, %v1113
      %v1141 = vpack.c.b16 %v1116, %v1115
      %v1142 = vpack.c.b16 %v1118, %v1117
      %v1143 = vpack.c.b16 %v1120, %v1119
      %v1144 = vpack.c.b16 %v1122, %v1121
      %v1145 = vpack.c.b16 %v1124, %v1123
      %v1146 = vpack.c.b16 %v1126, %v1125
      %v1147 = vpack.c.b16 %v1128, %v1127
      %v1148 = vpack.c.b16 %v1130, %v1129
      %v1149 = vpack.c.b16 %v1132, %v1131
      %v1150 = vpack.c.b16 %v1134, %v1133
      %v1152 = vsel %vm356, %v1135, 0
      %v1155 = vsel %vm356, %v1136, 0
      %v1158 = vsel %vm356, %v1137, 0
      %v1161 = vsel %vm356, %v1138, 0
      %v1164 = vsel %vm356, %v1139, 0
      %v1167 = vsel %vm356, %v1140, 0
      %v1170 = vsel %vm356, %v1141, 0
      %v1173 = vsel %vm356, %v1142, 0
      %v1176 = vsel %vm356, %v1143, 0
      %v1179 = vsel %vm356, %v1144, 0
      %v1182 = vsel %vm356, %v1145, 0
      %v1185 = vsel %vm356, %v1146, 0
      %v1188 = vsel %vm356, %v1147, 0
      %v1191 = vsel %vm356, %v1148, 0
      %v1194 = vsel %vm356, %v1149, 0
      %v1197 = vsel %vm356, %v1150, 0
      %v1200 = vsel %vm405, %v1102, 0
      %1202 = vmatprep.subr.bf16.mxu0 0
      %1203 = vmatpush1.bf16.msra.mxu0 %v1200
      %1204 = vmatprep.subr.bf16.mxu0 0
      %1205 = vmatpush1.bf16.msra.mxu0 0
      %1206 = vmatprep.subr.bf16.mxu0 0
      %1207 = vmatpush1.bf16.msra.mxu0 0
      %1208 = vmatprep.subr.bf16.mxu0 0
      %1209 = vmatpush1.bf16.msra.mxu0 0
      %1210 = vmatprep.subr.bf16.mxu0 0
      %1211 = vmatpush1.bf16.msra.mxu0 0
      %1212 = vmatprep.subr.bf16.mxu0 0
      %1213 = vmatpush1.bf16.msra.mxu0 0
      %1214 = vmatprep.subr.bf16.mxu0 0
      %1215 = vmatpush1.bf16.msra.mxu0 0
      %1216 = vmatprep.subr.bf16.mxu0 0
      %1217 = vmatpush1.bf16.msra.mxu0 0
      %1218 = vmatprep.subr.bf16.mxu0 0
      %1219 = vmatpush1.bf16.msra.mxu0 0
      %1220 = vmatprep.subr.bf16.mxu0 0
      %1221 = vmatpush1.bf16.msra.mxu0 0
      %1222 = vmatprep.subr.bf16.mxu0 0
      %1223 = vmatpush1.bf16.msra.mxu0 0
      %1224 = vmatprep.subr.bf16.mxu0 0
      %1225 = vmatpush1.bf16.msra.mxu0 0
      %1226 = vmatprep.subr.bf16.mxu0 0
      %1227 = vmatpush1.bf16.msra.mxu0 0
      %1228 = vmatprep.subr.bf16.mxu0 0
      %1229 = vmatpush1.bf16.msra.mxu0 0
      %1230 = vmatprep.subr.bf16.mxu0 0
      %1231 = vmatpush1.bf16.msra.mxu0 0
      %1232 = vmatprep.subr.bf16.mxu0 0
      %1233 = vmatpush1.bf16.msra.mxu0 0
      %1234 = vmatprep.mubr.bf16.mxu0 0
      %1235 = vmatmul.mubr.bf16.gmra.mrb[0].mxu0 %v1152
      %v1236 = vpop.f32.mrb[0].mxu0
      %v1237 = vadd.f32 0.0, %v1236
      %v1238 = vpop.f32.mrb[0].mxu0
      %v1239 = vpop.f32.mrb[0].mxu0
      %v1240 = vadd.f32 0.0, %v1239
      %v1241 = vpop.f32.mrb[0].mxu0
      %1242 = vmatprep.mubr.bf16.mxu0 0
      %1243 = vmatmul.mubr.bf16.gmra.mrb[0].mxu0 %v1155
      %v1244 = vpop.f32.mrb[0].mxu0
      %v1245 = vadd.f32 0.0, %v1244
      %v1246 = vpop.f32.mrb[0].mxu0
      %v1247 = vpop.f32.mrb[0].mxu0
      %v1248 = vadd.f32 0.0, %v1247
      %v1249 = vpop.f32.mrb[0].mxu0
      %1250 = vmatprep.mubr.bf16.mxu0 0
      %1251 = vmatmul.mubr.bf16.gmra.mrb[0].mxu0 %v1158
      %v1252 = vpop.f32.mrb[0].mxu0
      %v1253 = vadd.f32 0.0, %v1252
      %v1254 = vpop.f32.mrb[0].mxu0
      %v1255 = vpop.f32.mrb[0].mxu0
      %v1256 = vadd.f32 0.0, %v1255
      %v1257 = vpop.f32.mrb[0].mxu0
      %1258 = vmatprep.mubr.bf16.mxu0 0
      %1259 = vmatmul.mubr.bf16.gmra.mrb[0].mxu0 %v1161
      %v1260 = vpop.f32.mrb[0].mxu0
      %v1261 = vadd.f32 0.0, %v1260
      %v1262 = vpop.f32.mrb[0].mxu0
      %v1263 = vpop.f32.mrb[0].mxu0
      %v1264 = vadd.f32 0.0, %v1263
      %v1265 = vpop.f32.mrb[0].mxu0
      %1266 = vmatprep.mubr.bf16.mxu0 0
      %1267 = vmatmul.mubr.bf16.gmra.mrb[0].mxu0 %v1164
      %v1268 = vpop.f32.mrb[0].mxu0
      %v1269 = vadd.f32 0.0, %v1268
      %v1270 = vpop.f32.mrb[0].mxu0
      %v1271 = vpop.f32.mrb[0].mxu0
      %v1272 = vadd.f32 0.0, %v1271
      %v1273 = vpop.f32.mrb[0].mxu0
      %1274 = vmatprep.mubr.bf16.mxu0 0
      %1275 = vmatmul.mubr.bf16.gmra.mrb[0].mxu0 %v1167
      %v1276 = vpop.f32.mrb[0].mxu0
      %v1277 = vadd.f32 0.0, %v1276
      %v1278 = vpop.f32.mrb[0].mxu0
      %v1279 = vpop.f32.mrb[0].mxu0
      %v1280 = vadd.f32 0.0, %v1279
      %v1281 = vpop.f32.mrb[0].mxu0
      %1282 = vmatprep.mubr.bf16.mxu0 0
      %1283 = vmatmul.mubr.bf16.gmra.mrb[0].mxu0 %v1170
      %v1284 = vpop.f32.mrb[0].mxu0
      %v1285 = vadd.f32 0.0, %v1284
      %v1286 = vpop.f32.mrb[0].mxu0
      %v1287 = vpop.f32.mrb[0].mxu0
      %v1288 = vadd.f32 0.0, %v1287
      %v1289 = vpop.f32.mrb[0].mxu0
      %1290 = vmatprep.mubr.bf16.mxu0 0
      %1291 = vmatmul.mubr.bf16.gmra.mrb[0].mxu0 %v1173
      %v1292 = vpop.f32.mrb[0].mxu0
      %v1293 = vadd.f32 0.0, %v1292
      %v1294 = vpop.f32.mrb[0].mxu0
      %v1295 = vpop.f32.mrb[0].mxu0
      %v1296 = vadd.f32 0.0, %v1295
      %v1297 = vpop.f32.mrb[0].mxu0
      %1298 = vmatprep.mubr.bf16.mxu0 0
      %1299 = vmatmul.mubr.bf16.gmra.mrb[0].mxu0 %v1176
      %v1300 = vpop.f32.mrb[0].mxu0
      %v1301 = vadd.f32 0.0, %v1300
      %v1302 = vpop.f32.mrb[0].mxu0
      %v1303 = vpop.f32.mrb[0].mxu0
      %v1304 = vadd.f32 0.0, %v1303
      %v1305 = vpop.f32.mrb[0].mxu0
      %1306 = vmatprep.mubr.bf16.mxu0 0
      %1307 = vmatmul.mubr.bf16.gmra.mrb[0].mxu0 %v1179
      %v1308 = vpop.f32.mrb[0].mxu0
      %v1309 = vadd.f32 0.0, %v1308
      %v1310 = vpop.f32.mrb[0].mxu0
      %v1311 = vpop.f32.mrb[0].mxu0
      %v1312 = vadd.f32 0.0, %v1311
      %v1313 = vpop.f32.mrb[0].mxu0
      %1314 = vmatprep.mubr.bf16.mxu0 0
      %1315 = vmatmul.mubr.bf16.gmra.mrb[0].mxu0 %v1182
      %v1316 = vpop.f32.mrb[0].mxu0
      %v1317 = vadd.f32 0.0, %v1316
      %v1318 = vpop.f32.mrb[0].mxu0
      %v1319 = vpop.f32.mrb[0].mxu0
      %v1320 = vadd.f32 0.0, %v1319
      %v1321 = vpop.f32.mrb[0].mxu0
      %1322 = vmatprep.mubr.bf16.mxu0 0
      %1323 = vmatmul.mubr.bf16.gmra.mrb[0].mxu0 %v1185
      %v1324 = vpop.f32.mrb[0].mxu0
      %v1325 = vadd.f32 0.0, %v1324
      %v1326 = vpop.f32.mrb[0].mxu0
      %v1327 = vpop.f32.mrb[0].mxu0
      %v1328 = vadd.f32 0.0, %v1327
      %v1329 = vpop.f32.mrb[0].mxu0
      %1330 = vmatprep.mubr.bf16.mxu0 0
      %1331 = vmatmul.mubr.bf16.gmra.mrb[0].mxu0 %v1188
      %v1332 = vpop.f32.mrb[0].mxu0
      %v1333 = vadd.f32 0.0, %v1332
      %v1334 = vpop.f32.mrb[0].mxu0
      %v1335 = vpop.f32.mrb[0].mxu0
      %v1336 = vadd.f32 0.0, %v1335
      %v1337 = vpop.f32.mrb[0].mxu0
      %1338 = vmatprep.mubr.bf16.mxu0 0
      %1339 = vmatmul.mubr.bf16.gmra.mrb[0].mxu0 %v1191
      %v1340 = vpop.f32.mrb[0].mxu0
      %v1341 = vadd.f32 0.0, %v1340
      %v1342 = vpop.f32.mrb[0].mxu0
      %v1343 = vpop.f32.mrb[0].mxu0
      %v1344 = vadd.f32 0.0, %v1343
      %v1345 = vpop.f32.mrb[0].mxu0
      %1346 = vmatprep.mubr.bf16.mxu0 0
      %1347 = vmatmul.mubr.bf16.gmra.mrb[0].mxu0 %v1194
      %v1348 = vpop.f32.mrb[0].mxu0
      %v1349 = vadd.f32 0.0, %v1348
      %v1350 = vpop.f32.mrb[0].mxu0
      %v1351 = vpop.f32.mrb[0].mxu0
      %v1352 = vadd.f32 0.0, %v1351
      %v1353 = vpop.f32.mrb[0].mxu0
      %1354 = vmatprep.mubr.bf16.mxu0 0
      %1355 = vmatmul.mubr.bf16.gmra.mrb[0].mxu0 %v1197
      %v1356 = vpop.f32.mrb[0].mxu0
      %v1357 = vadd.f32 0.0, %v1356
      %v1358 = vpop.f32.mrb[0].mxu0
      %v1359 = vpop.f32.mrb[0].mxu0
      %v1360 = vadd.f32 0.0, %v1359
      %v1361 = vpop.f32.mrb[0].mxu0
      %1362 = vdwg.mxu0
      %v1363 = vadd.f32 %v682, %v1237
      %v1364 = vadd.f32 %v683, %v1240
      %v1365 = vadd.f32 %v684, %v1245
      %v1366 = vadd.f32 %v685, %v1248
      %v1367 = vadd.f32 %v686, %v1253
      %v1368 = vadd.f32 %v687, %v1256
      %v1369 = vadd.f32 %v688, %v1261
      %v1370 = vadd.f32 %v689, %v1264
      %v1371 = vadd.f32 %v690, %v1269
      %v1372 = vadd.f32 %v691, %v1272
      %v1373 = vadd.f32 %v692, %v1277
      %v1374 = vadd.f32 %v693, %v1280
      %v1375 = vadd.f32 %v694, %v1285
      %v1376 = vadd.f32 %v695, %v1288
      %v1377 = vadd.f32 %v696, %v1293
      %v1378 = vadd.f32 %v697, %v1296
      %v1379 = vadd.f32 %v698, %v1301
      %v1380 = vadd.f32 %v699, %v1304
      %v1381 = vadd.f32 %v700, %v1309
      %v1382 = vadd.f32 %v701, %v1312
      %v1383 = vadd.f32 %v702, %v1317
      %v1384 = vadd.f32 %v703, %v1320
      %v1385 = vadd.f32 %v704, %v1325
      %v1386 = vadd.f32 %v705, %v1328
      %v1387 = vadd.f32 %v706, %v1333
      %v1388 = vadd.f32 %v707, %v1336
      %v1389 = vadd.f32 %v708, %v1341
      %v1390 = vadd.f32 %v709, %v1344
      %v1391 = vadd.f32 %v710, %v1349
      %v1392 = vadd.f32 %v711, %v1352
      %v1393 = vadd.f32 %v712, %v1357
      %v1394 = vadd.f32 %v713, %v1360
      %1395 = vst [vmem:[%s170] sm:$0xff] %v1363
      %1396 = vst [vmem:[%s170 + $0x8] sm:$0xff] %v1364
      %1397 = vst [vmem:[%s170 + $0x10] sm:$0xff] %v1365
      %1398 = vst [vmem:[%s170 + $0x18] sm:$0xff] %v1366
      %1399 = vst [vmem:[%s170 + $0x20] sm:$0xff] %v1367
      %1400 = vst [vmem:[%s170 + $0x28] sm:$0xff] %v1368
      %1401 = vst [vmem:[%s170 + $0x30] sm:$0xff] %v1369
      %1402 = vst [vmem:[%s170 + $0x38] sm:$0xff] %v1370
      %1403 = vst [vmem:[%s170 + $0x40] sm:$0xff] %v1371
      %1404 = vst [vmem:[%s170 + $0x48] sm:$0xff] %v1372
      %1405 = vst [vmem:[%s170 + $0x50] sm:$0xff] %v1373
      %1406 = vst [vmem:[%s170 + $0x58] sm:$0xff] %v1374
      %1407 = vst [vmem:[%s170 + $0x60] sm:$0xff] %v1375
      %1408 = vst [vmem:[%s170 + $0x68] sm:$0xff] %v1376
      %1409 = vst [vmem:[%s170 + $0x70] sm:$0xff] %v1377
      %1410 = vst [vmem:[%s170 + $0x78] sm:$0xff] %v1378
      %1411 = vst [vmem:[%s170 + $0x80] sm:$0xff] %v1379
      %1412 = vst [vmem:[%s170 + $0x88] sm:$0xff] %v1380
      %1413 = vst [vmem:[%s170 + $0x90] sm:$0xff] %v1381
      %1414 = vst [vmem:[%s170 + $0x98] sm:$0xff] %v1382
      %1415 = vst [vmem:[%s170 + $0xa0] sm:$0xff] %v1383
      %1416 = vst [vmem:[%s170 + $0xa8] sm:$0xff] %v1384
      %1417 = vst [vmem:[%s170 + $0xb0] sm:$0xff] %v1385
      %1418 = vst [vmem:[%s170 + $0xb8] sm:$0xff] %v1386
      %1419 = vst [vmem:[%s170 + $0xc0] sm:$0xff] %v1387
      %1420 = vst [vmem:[%s170 + $0xc8] sm:$0xff] %v1388
      %1421 = vst [vmem:[%s170 + $0xd0] sm:$0xff] %v1389
      %1422 = vst [vmem:[%s170 + $0xd8] sm:$0xff] %v1390
      %1423 = vst [vmem:[%s170 + $0xe0] sm:$0xff] %v1391
      %1424 = vst [vmem:[%s170 + $0xe8] sm:$0xff] %v1392
      %1425 = vst [vmem:[%s170 + $0xf0] sm:$0xff] %v1393
      %1426 = vst [vmem:[%s170 + $0xf8] sm:$0xff] %v1394
      %v1427 = vld [vmem:[%s165] sm:$0xe]
      %v1428 = vld [vmem:[%s165 + $0x4] sm:$0xf]
      %v1429 = vld [vmem:[%s165 + $0x8] sm:$0x1]
      %v1430 = vld [vmem:[%s165 + $0xc] sm:$0xe]
      %v1431 = vld [vmem:[%s165 + $0x10] sm:$0xf]
      %v1432 = vld [vmem:[%s165 + $0x14] sm:$0x1]
      %v1433 = vld [vmem:[%s165 + $0x18] sm:$0xe]
      %v1434 = vld [vmem:[%s165 + $0x1c] sm:$0xf]
      %v1435 = vld [vmem:[%s165 + $0x20] sm:$0x1]
      %v1436 = vld [vmem:[%s165 + $0x24] sm:$0xe]
      %v1437 = vld [vmem:[%s165 + $0x28] sm:$0xf]
      %v1438 = vld [vmem:[%s165 + $0x2c] sm:$0x1]
      %v1439 = vld [vmem:[%s165 + $0x30] sm:$0xe]
      %v1440 = vld [vmem:[%s165 + $0x34] sm:$0xf]
      %v1441 = vld [vmem:[%s165 + $0x38] sm:$0x1]
      %v1442 = vld [vmem:[%s165 + $0x3c] sm:$0xe]
      %v1443 = vld [vmem:[%s165 + $0x40] sm:$0xf]
      %v1444 = vld [vmem:[%s165 + $0x44] sm:$0x1]
      %v1445 = vld [vmem:[%s165 + $0x48] sm:$0xe]
      %v1446 = vld [vmem:[%s165 + $0x4c] sm:$0xf]
      %v1447 = vld [vmem:[%s165 + $0x50] sm:$0x1]
      %v1448 = vld [vmem:[%s165 + $0x54] sm:$0xe]
      %v1449 = vld [vmem:[%s165 + $0x58] sm:$0xf]
      %v1450 = vld [vmem:[%s165 + $0x5c] sm:$0x1]
      %v1451 = vld [vmem:[%s165 + $0x60] sm:$0xe]
      %v1452 = vld [vmem:[%s165 + $0x64] sm:$0xf]
      %v1453 = vld [vmem:[%s165 + $0x68] sm:$0x1]
      %v1454 = vld [vmem:[%s165 + $0x6c] sm:$0xe]
      %v1455 = vld [vmem:[%s165 + $0x70] sm:$0xf]
      %v1456 = vld [vmem:[%s165 + $0x74] sm:$0x1]
      %v1457 = vld [vmem:[%s165 + $0x78] sm:$0xe]
      %v1458 = vld [vmem:[%s165 + $0x7c] sm:$0xf]
      %v1459 = vld [vmem:[%s165 + $0x80] sm:$0x1]
      %v1460 = vld [vmem:[%s165 + $0x84] sm:$0xe]
      %v1461 = vld [vmem:[%s165 + $0x88] sm:$0xf]
      %v1462 = vld [vmem:[%s165 + $0x8c] sm:$0x1]
      %v1463 = vld [vmem:[%s165 + $0x90] sm:$0xe]
      %v1464 = vld [vmem:[%s165 + $0x94] sm:$0xf]
      %v1465 = vld [vmem:[%s165 + $0x98] sm:$0x1]
      %v1466 = vld [vmem:[%s165 + $0x9c] sm:$0xe]
      %v1467 = vld [vmem:[%s165 + $0xa0] sm:$0xf]
      %v1468 = vld [vmem:[%s165 + $0xa4] sm:$0x1]
      %v1469 = vld [vmem:[%s165 + $0xa8] sm:$0xe]
      %v1470 = vld [vmem:[%s165 + $0xac] sm:$0xf]
      %v1471 = vld [vmem:[%s165 + $0xb0] sm:$0x1]
      %v1472 = vld [vmem:[%s165 + $0xb4] sm:$0xe]
      %v1473 = vld [vmem:[%s165 + $0xb8] sm:$0xf]
      %v1474 = vld [vmem:[%s165 + $0xbc] sm:$0x1]
      %v1475 = vld [vmem:[%s170] sm:$0xff]
      %v1476 = vld [vmem:[%s170 + $0x8] sm:$0xff]
      %v1477 = vld [vmem:[%s170 + $0x10] sm:$0xff]
      %v1478 = vld [vmem:[%s170 + $0x18] sm:$0xff]
      %v1479 = vld [vmem:[%s170 + $0x20] sm:$0xff]
      %v1480 = vld [vmem:[%s170 + $0x28] sm:$0xff]
      %v1481 = vld [vmem:[%s170 + $0x30] sm:$0xff]
      %v1482 = vld [vmem:[%s170 + $0x38] sm:$0xff]
      %v1483 = vld [vmem:[%s170 + $0x40] sm:$0xff]
      %v1484 = vld [vmem:[%s170 + $0x48] sm:$0xff]
      %v1485 = vld [vmem:[%s170 + $0x50] sm:$0xff]
      %v1486 = vld [vmem:[%s170 + $0x58] sm:$0xff]
      %v1487 = vld [vmem:[%s170 + $0x60] sm:$0xff]
      %v1488 = vld [vmem:[%s170 + $0x68] sm:$0xff]
      %v1489 = vld [vmem:[%s170 + $0x70] sm:$0xff]
      %v1490 = vld [vmem:[%s170 + $0x78] sm:$0xff]
      %v1491 = vld [vmem:[%s170 + $0x80] sm:$0xff]
      %v1492 = vld [vmem:[%s170 + $0x88] sm:$0xff]
      %v1493 = vld [vmem:[%s170 + $0x90] sm:$0xff]
      %v1494 = vld [vmem:[%s170 + $0x98] sm:$0xff]
      %v1495 = vld [vmem:[%s170 + $0xa0] sm:$0xff]
      %v1496 = vld [vmem:[%s170 + $0xa8] sm:$0xff]
      %v1497 = vld [vmem:[%s170 + $0xb0] sm:$0xff]
      %v1498 = vld [vmem:[%s170 + $0xb8] sm:$0xff]
      %v1499 = vld [vmem:[%s170 + $0xc0] sm:$0xff]
      %v1500 = vld [vmem:[%s170 + $0xc8] sm:$0xff]
      %v1501 = vld [vmem:[%s170 + $0xd0] sm:$0xff]
      %v1502 = vld [vmem:[%s170 + $0xd8] sm:$0xff]
      %v1503 = vld [vmem:[%s170 + $0xe0] sm:$0xff]
      %v1504 = vld [vmem:[%s170 + $0xe8] sm:$0xff]
      %v1505 = vld [vmem:[%s170 + $0xf0] sm:$0xff]
      %v1506 = vld [vmem:[%s170 + $0xf8] sm:$0xff]
      %vm1555 = vcmask 1042432
      %vm1556 = vcmask 1046532
      %vm1557 = vmor %vm1555, %vm1556
      %v1558 = vrot.slane %v1427, 5
      %v1559 = vrot.slane %v1558, 4
      %v1560 = vrot.slane %v1428, 5
      %v1561 = vsel %vm1557, %v1559, %v1560
      %v1562 = vrot.slane %v1560, 4
      %v1563 = vrot.slane %v1429, 5
      %v1564 = vsel %vm1557, %v1562, %v1563
      %v1565 = vrot.slane %v1430, 5
      %v1566 = vrot.slane %v1565, 4
      %v1567 = vrot.slane %v1431, 5
      %v1568 = vsel %vm1557, %v1566, %v1567
      %v1569 = vrot.slane %v1567, 4
      %v1570 = vrot.slane %v1432, 5
      %v1571 = vsel %vm1557, %v1569, %v1570
      %v1572 = vrot.slane %v1433, 5
      %v1573 = vrot.slane %v1572, 4
      %v1574 = vrot.slane %v1434, 5
      %v1575 = vsel %vm1557, %v1573, %v1574
      %v1576 = vrot.slane %v1574, 4
      %v1577 = vrot.slane %v1435, 5
      %v1578 = vsel %vm1557, %v1576, %v1577
      %v1579 = vrot.slane %v1436, 5
      %v1580 = vrot.slane %v1579, 4
      %v1581 = vrot.slane %v1437, 5
      %v1582 = vsel %vm1557, %v1580, %v1581
      %v1583 = vrot.slane %v1581, 4
      %v1584 = vrot.slane %v1438, 5
      %v1585 = vsel %vm1557, %v1583, %v1584
      %v1586 = vrot.slane %v1439, 5
      %v1587 = vrot.slane %v1586, 4
      %v1588 = vrot.slane %v1440, 5
      %v1589 = vsel %vm1557, %v1587, %v1588
      %v1590 = vrot.slane %v1588, 4
      %v1591 = vrot.slane %v1441, 5
      %v1592 = vsel %vm1557, %v1590, %v1591
      %v1593 = vrot.slane %v1442, 5
      %v1594 = vrot.slane %v1593, 4
      %v1595 = vrot.slane %v1443, 5
      %v1596 = vsel %vm1557, %v1594, %v1595
      %v1597 = vrot.slane %v1595, 4
      %v1598 = vrot.slane %v1444, 5
      %v1599 = vsel %vm1557, %v1597, %v1598
      %v1600 = vrot.slane %v1445, 5
      %v1601 = vrot.slane %v1600, 4
      %v1602 = vrot.slane %v1446, 5
      %v1603 = vsel %vm1557, %v1601, %v1602
      %v1604 = vrot.slane %v1602, 4
      %v1605 = vrot.slane %v1447, 5
      %v1606 = vsel %vm1557, %v1604, %v1605
      %v1607 = vrot.slane %v1448, 5
      %v1608 = vrot.slane %v1607, 4
      %v1609 = vrot.slane %v1449, 5
      %v1610 = vsel %vm1557, %v1608, %v1609
      %v1611 = vrot.slane %v1609, 4
      %v1612 = vrot.slane %v1450, 5
      %v1613 = vsel %vm1557, %v1611, %v1612
      %v1614 = vrot.slane %v1451, 5
      %v1615 = vrot.slane %v1614, 4
      %v1616 = vrot.slane %v1452, 5
      %v1617 = vsel %vm1557, %v1615, %v1616
      %v1618 = vrot.slane %v1616, 4
      %v1619 = vrot.slane %v1453, 5
      %v1620 = vsel %vm1557, %v1618, %v1619
      %v1621 = vrot.slane %v1454, 5
      %v1622 = vrot.slane %v1621, 4
      %v1623 = vrot.slane %v1455, 5
      %v1624 = vsel %vm1557, %v1622, %v1623
      %v1625 = vrot.slane %v1623, 4
      %v1626 = vrot.slane %v1456, 5
      %v1627 = vsel %vm1557, %v1625, %v1626
      %v1628 = vrot.slane %v1457, 5
      %v1629 = vrot.slane %v1628, 4
      %v1630 = vrot.slane %v1458, 5
      %v1631 = vsel %vm1557, %v1629, %v1630
      %v1632 = vrot.slane %v1630, 4
      %v1633 = vrot.slane %v1459, 5
      %v1634 = vsel %vm1557, %v1632, %v1633
      %v1635 = vrot.slane %v1460, 5
      %v1636 = vrot.slane %v1635, 4
      %v1637 = vrot.slane %v1461, 5
      %v1638 = vsel %vm1557, %v1636, %v1637
      %v1639 = vrot.slane %v1637, 4
      %v1640 = vrot.slane %v1462, 5
      %v1641 = vsel %vm1557, %v1639, %v1640
      %v1642 = vrot.slane %v1463, 5
      %v1643 = vrot.slane %v1642, 4
      %v1644 = vrot.slane %v1464, 5
      %v1645 = vsel %vm1557, %v1643, %v1644
      %v1646 = vrot.slane %v1644, 4
      %v1647 = vrot.slane %v1465, 5
      %v1648 = vsel %vm1557, %v1646, %v1647
      %v1649 = vrot.slane %v1466, 5
      %v1650 = vrot.slane %v1649, 4
      %v1651 = vrot.slane %v1467, 5
      %v1652 = vsel %vm1557, %v1650, %v1651
      %v1653 = vrot.slane %v1651, 4
      %v1654 = vrot.slane %v1468, 5
      %v1655 = vsel %vm1557, %v1653, %v1654
      %v1656 = vrot.slane %v1469, 5
      %v1657 = vrot.slane %v1656, 4
      %v1658 = vrot.slane %v1470, 5
      %v1659 = vsel %vm1557, %v1657, %v1658
      %v1660 = vrot.slane %v1658, 4
      %v1661 = vrot.slane %v1471, 5
      %v1662 = vsel %vm1557, %v1660, %v1661
      %v1663 = vrot.slane %v1472, 5
      %v1664 = vrot.slane %v1663, 4
      %v1665 = vrot.slane %v1473, 5
      %v1666 = vsel %vm1557, %v1664, %v1665
      %v1667 = vrot.slane %v1665, 4
      %v1668 = vrot.slane %v1474, 5
      %v1669 = vsel %vm1557, %v1667, %v1668
      %s1670 = scalar_lea.vmem %s1, 4
      %v1671 = vld [vmem:[%s1670] sm:$0x3]
      %v1672 = vunpack.c.l.b16 %v1561
      %v1673 = vunpack.c.l.b16 %v1564
      %v1674 = vunpack.c.l.b16 %v1568
      %v1675 = vunpack.c.l.b16 %v1571
      %v1676 = vunpack.c.l.b16 %v1575
      %v1677 = vunpack.c.l.b16 %v1578
      %v1678 = vunpack.c.l.b16 %v1582
      %v1679 = vunpack.c.l.b16 %v1585
      %v1680 = vunpack.c.l.b16 %v1589
      %v1681 = vunpack.c.l.b16 %v1592
      %v1682 = vunpack.c.l.b16 %v1596
      %v1683 = vunpack.c.l.b16 %v1599
      %v1684 = vunpack.c.l.b16 %v1603
      %v1685 = vunpack.c.l.b16 %v1606
      %v1686 = vunpack.c.l.b16 %v1610
      %v1687 = vunpack.c.l.b16 %v1613
      %v1688 = vunpack.c.l.b16 %v1617
      %v1689 = vunpack.c.l.b16 %v1620
      %v1690 = vunpack.c.l.b16 %v1624
      %v1691 = vunpack.c.l.b16 %v1627
      %v1692 = vunpack.c.l.b16 %v1631
      %v1693 = vunpack.c.l.b16 %v1634
      %v1694 = vunpack.c.l.b16 %v1638
      %v1695 = vunpack.c.l.b16 %v1641
      %v1696 = vunpack.c.l.b16 %v1645
      %v1697 = vunpack.c.l.b16 %v1648
      %v1698 = vunpack.c.l.b16 %v1652
      %v1699 = vunpack.c.l.b16 %v1655
      %v1700 = vunpack.c.l.b16 %v1659
      %v1701 = vunpack.c.l.b16 %v1662
      %v1702 = vunpack.c.l.b16 %v1666
      %v1703 = vunpack.c.l.b16 %v1669
      %v1704 = vpack.c.b16 %v1673, %v1672
      %v1705 = vpack.c.b16 %v1675, %v1674
      %v1706 = vpack.c.b16 %v1677, %v1676
      %v1707 = vpack.c.b16 %v1679, %v1678
      %v1708 = vpack.c.b16 %v1681, %v1680
      %v1709 = vpack.c.b16 %v1683, %v1682
      %v1710 = vpack.c.b16 %v1685, %v1684
      %v1711 = vpack.c.b16 %v1687, %v1686
      %v1712 = vpack.c.b16 %v1689, %v1688
      %v1713 = vpack.c.b16 %v1691, %v1690
      %v1714 = vpack.c.b16 %v1693, %v1692
      %v1715 = vpack.c.b16 %v1695, %v1694
      %v1716 = vpack.c.b16 %v1697, %v1696
      %v1717 = vpack.c.b16 %v1699, %v1698
      %v1718 = vpack.c.b16 %v1701, %v1700
      %v1719 = vpack.c.b16 %v1703, %v1702
      %v1721 = vsel %vm356, %v1704, 0
      %v1724 = vsel %vm356, %v1705, 0
      %v1727 = vsel %vm356, %v1706, 0
      %v1730 = vsel %vm356, %v1707, 0
      %v1733 = vsel %vm356, %v1708, 0
      %v1736 = vsel %vm356, %v1709, 0
      %v1739 = vsel %vm356, %v1710, 0
      %v1742 = vsel %vm356, %v1711, 0
      %v1745 = vsel %vm356, %v1712, 0
      %v1748 = vsel %vm356, %v1713, 0
      %v1751 = vsel %vm356, %v1714, 0
      %v1754 = vsel %vm356, %v1715, 0
      %v1757 = vsel %vm356, %v1716, 0
      %v1760 = vsel %vm356, %v1717, 0
      %v1763 = vsel %vm356, %v1718, 0
      %v1766 = vsel %vm356, %v1719, 0
      %v1769 = vsel %vm405, %v1671, 0
      %1771 = vmatprep.subr.bf16.mxu0 0
      %1772 = vmatpush1.bf16.msra.mxu0 %v1769
      %1773 = vmatprep.subr.bf16.mxu0 0
      %1774 = vmatpush1.bf16.msra.mxu0 0
      %1775 = vmatprep.subr.bf16.mxu0 0
      %1776 = vmatpush1.bf16.msra.mxu0 0
      %1777 = vmatprep.subr.bf16.mxu0 0
      %1778 = vmatpush1.bf16.msra.mxu0 0
      %1779 = vmatprep.subr.bf16.mxu0 0
      %1780 = vmatpush1.bf16.msra.mxu0 0
      %1781 = vmatprep.subr.bf16.mxu0 0
      %1782 = vmatpush1.bf16.msra.mxu0 0
      %1783 = vmatprep.subr.bf16.mxu0 0
      %1784 = vmatpush1.bf16.msra.mxu0 0
      %1785 = vmatprep.subr.bf16.mxu0 0
      %1786 = vmatpush1.bf16.msra.mxu0 0
      %1787 = vmatprep.subr.bf16.mxu0 0
      %1788 = vmatpush1.bf16.msra.mxu0 0
      %1789 = vmatprep.subr.bf16.mxu0 0
      %1790 = vmatpush1.bf16.msra.mxu0 0
      %1791 = vmatprep.subr.bf16.mxu0 0
      %1792 = vmatpush1.bf16.msra.mxu0 0
      %1793 = vmatprep.subr.bf16.mxu0 0
      %1794 = vmatpush1.bf16.msra.mxu0 0
      %1795 = vmatprep.subr.bf16.mxu0 0
      %1796 = vmatpush1.bf16.msra.mxu0 0
      %1797 = vmatprep.subr.bf16.mxu0 0
      %1798 = vmatpush1.bf16.msra.mxu0 0
      %1799 = vmatprep.subr.bf16.mxu0 0
      %1800 = vmatpush1.bf16.msra.mxu0 0
      %1801 = vmatprep.subr.bf16.mxu0 0
      %1802 = vmatpush1.bf16.msra.mxu0 0
      %1803 = vmatprep.mubr.bf16.mxu0 0
      %1804 = vmatmul.mubr.bf16.gmra.mrb[0].mxu0 %v1721
      %v1805 = vpop.f32.mrb[0].mxu0
      %v1806 = vadd.f32 0.0, %v1805
      %v1807 = vpop.f32.mrb[0].mxu0
      %v1808 = vpop.f32.mrb[0].mxu0
      %v1809 = vadd.f32 0.0, %v1808
      %v1810 = vpop.f32.mrb[0].mxu0
      %1811 = vmatprep.mubr.bf16.mxu0 0
      %1812 = vmatmul.mubr.bf16.gmra.mrb[0].mxu0 %v1724
      %v1813 = vpop.f32.mrb[0].mxu0
      %v1814 = vadd.f32 0.0, %v1813
      %v1815 = vpop.f32.mrb[0].mxu0
      %v1816 = vpop.f32.mrb[0].mxu0
      %v1817 = vadd.f32 0.0, %v1816
      %v1818 = vpop.f32.mrb[0].mxu0
      %1819 = vmatprep.mubr.bf16.mxu0 0
      %1820 = vmatmul.mubr.bf16.gmra.mrb[0].mxu0 %v1727
      %v1821 = vpop.f32.mrb[0].mxu0
      %v1822 = vadd.f32 0.0, %v1821
      %v1823 = vpop.f32.mrb[0].mxu0
      %v1824 = vpop.f32.mrb[0].mxu0
      %v1825 = vadd.f32 0.0, %v1824
      %v1826 = vpop.f32.mrb[0].mxu0
      %1827 = vmatprep.mubr.bf16.mxu0 0
      %1828 = vmatmul.mubr.bf16.gmra.mrb[0].mxu0 %v1730
      %v1829 = vpop.f32.mrb[0].mxu0
      %v1830 = vadd.f32 0.0, %v1829
      %v1831 = vpop.f32.mrb[0].mxu0
      %v1832 = vpop.f32.mrb[0].mxu0
      %v1833 = vadd.f32 0.0, %v1832
      %v1834 = vpop.f32.mrb[0].mxu0
      %1835 = vmatprep.mubr.bf16.mxu0 0
      %1836 = vmatmul.mubr.bf16.gmra.mrb[0].mxu0 %v1733
      %v1837 = vpop.f32.mrb[0].mxu0
      %v1838 = vadd.f32 0.0, %v1837
      %v1839 = vpop.f32.mrb[0].mxu0
      %v1840 = vpop.f32.mrb[0].mxu0
      %v1841 = vadd.f32 0.0, %v1840
      %v1842 = vpop.f32.mrb[0].mxu0
      %1843 = vmatprep.mubr.bf16.mxu0 0
      %1844 = vmatmul.mubr.bf16.gmra.mrb[0].mxu0 %v1736
      %v1845 = vpop.f32.mrb[0].mxu0
      %v1846 = vadd.f32 0.0, %v1845
      %v1847 = vpop.f32.mrb[0].mxu0
      %v1848 = vpop.f32.mrb[0].mxu0
      %v1849 = vadd.f32 0.0, %v1848
      %v1850 = vpop.f32.mrb[0].mxu0
      %1851 = vmatprep.mubr.bf16.mxu0 0
      %1852 = vmatmul.mubr.bf16.gmra.mrb[0].mxu0 %v1739
      %v1853 = vpop.f32.mrb[0].mxu0
      %v1854 = vadd.f32 0.0, %v1853
      %v1855 = vpop.f32.mrb[0].mxu0
      %v1856 = vpop.f32.mrb[0].mxu0
      %v1857 = vadd.f32 0.0, %v1856
      %v1858 = vpop.f32.mrb[0].mxu0
      %1859 = vmatprep.mubr.bf16.mxu0 0
      %1860 = vmatmul.mubr.bf16.gmra.mrb[0].mxu0 %v1742
      %v1861 = vpop.f32.mrb[0].mxu0
      %v1862 = vadd.f32 0.0, %v1861
      %v1863 = vpop.f32.mrb[0].mxu0
      %v1864 = vpop.f32.mrb[0].mxu0
      %v1865 = vadd.f32 0.0, %v1864
      %v1866 = vpop.f32.mrb[0].mxu0
      %1867 = vmatprep.mubr.bf16.mxu0 0
      %1868 = vmatmul.mubr.bf16.gmra.mrb[0].mxu0 %v1745
      %v1869 = vpop.f32.mrb[0].mxu0
      %v1870 = vadd.f32 0.0, %v1869
      %v1871 = vpop.f32.mrb[0].mxu0
      %v1872 = vpop.f32.mrb[0].mxu0
      %v1873 = vadd.f32 0.0, %v1872
      %v1874 = vpop.f32.mrb[0].mxu0
      %1875 = vmatprep.mubr.bf16.mxu0 0
      %1876 = vmatmul.mubr.bf16.gmra.mrb[0].mxu0 %v1748
      %v1877 = vpop.f32.mrb[0].mxu0
      %v1878 = vadd.f32 0.0, %v1877
      %v1879 = vpop.f32.mrb[0].mxu0
      %v1880 = vpop.f32.mrb[0].mxu0
      %v1881 = vadd.f32 0.0, %v1880
      %v1882 = vpop.f32.mrb[0].mxu0
      %1883 = vmatprep.mubr.bf16.mxu0 0
      %1884 = vmatmul.mubr.bf16.gmra.mrb[0].mxu0 %v1751
      %v1885 = vpop.f32.mrb[0].mxu0
      %v1886 = vadd.f32 0.0, %v1885
      %v1887 = vpop.f32.mrb[0].mxu0
      %v1888 = vpop.f32.mrb[0].mxu0
      %v1889 = vadd.f32 0.0, %v1888
      %v1890 = vpop.f32.mrb[0].mxu0
      %1891 = vmatprep.mubr.bf16.mxu0 0
      %1892 = vmatmul.mubr.bf16.gmra.mrb[0].mxu0 %v1754
      %v1893 = vpop.f32.mrb[0].mxu0
      %v1894 = vadd.f32 0.0, %v1893
      %v1895 = vpop.f32.mrb[0].mxu0
      %v1896 = vpop.f32.mrb[0].mxu0
      %v1897 = vadd.f32 0.0, %v1896
      %v1898 = vpop.f32.mrb[0].mxu0
      %1899 = vmatprep.mubr.bf16.mxu0 0
      %1900 = vmatmul.mubr.bf16.gmra.mrb[0].mxu0 %v1757
      %v1901 = vpop.f32.mrb[0].mxu0
      %v1902 = vadd.f32 0.0, %v1901
      %v1903 = vpop.f32.mrb[0].mxu0
      %v1904 = vpop.f32.mrb[0].mxu0
      %v1905 = vadd.f32 0.0, %v1904
      %v1906 = vpop.f32.mrb[0].mxu0
      %1907 = vmatprep.mubr.bf16.mxu0 0
      %1908 = vmatmul.mubr.bf16.gmra.mrb[0].mxu0 %v1760
      %v1909 = vpop.f32.mrb[0].mxu0
      %v1910 = vadd.f32 0.0, %v1909
      %v1911 = vpop.f32.mrb[0].mxu0
      %v1912 = vpop.f32.mrb[0].mxu0
      %v1913 = vadd.f32 0.0, %v1912
      %v1914 = vpop.f32.mrb[0].mxu0
      %1915 = vmatprep.mubr.bf16.mxu0 0
      %1916 = vmatmul.mubr.bf16.gmra.mrb[0].mxu0 %v1763
      %v1917 = vpop.f32.mrb[0].mxu0
      %v1918 = vadd.f32 0.0, %v1917
      %v1919 = vpop.f32.mrb[0].mxu0
      %v1920 = vpop.f32.mrb[0].mxu0
      %v1921 = vadd.f32 0.0, %v1920
      %v1922 = vpop.f32.mrb[0].mxu0
      %1923 = vmatprep.mubr.bf16.mxu0 0
      %1924 = vmatmul.mubr.bf16.gmra.mrb[0].mxu0 %v1766
      %v1925 = vpop.f32.mrb[0].mxu0
      %v1926 = vadd.f32 0.0, %v1925
      %v1927 = vpop.f32.mrb[0].mxu0
      %v1928 = vpop.f32.mrb[0].mxu0
      %v1929 = vadd.f32 0.0, %v1928
      %v1930 = vpop.f32.mrb[0].mxu0
      %1931 = vdwg.mxu0
      %v1932 = vadd.f32 %v1475, %v1806
      %v1933 = vadd.f32 %v1476, %v1809
      %v1934 = vadd.f32 %v1477, %v1814
      %v1935 = vadd.f32 %v1478, %v1817
      %v1936 = vadd.f32 %v1479, %v1822
      %v1937 = vadd.f32 %v1480, %v1825
      %v1938 = vadd.f32 %v1481, %v1830
      %v1939 = vadd.f32 %v1482, %v1833
      %v1940 = vadd.f32 %v1483, %v1838
      %v1941 = vadd.f32 %v1484, %v1841
      %v1942 = vadd.f32 %v1485, %v1846
      %v1943 = vadd.f32 %v1486, %v1849
      %v1944 = vadd.f32 %v1487, %v1854
      %v1945 = vadd.f32 %v1488, %v1857
      %v1946 = vadd.f32 %v1489, %v1862
      %v1947 = vadd.f32 %v1490, %v1865
      %v1948 = vadd.f32 %v1491, %v1870
      %v1949 = vadd.f32 %v1492, %v1873
      %v1950 = vadd.f32 %v1493, %v1878
      %v1951 = vadd.f32 %v1494, %v1881
      %v1952 = vadd.f32 %v1495, %v1886
      %v1953 = vadd.f32 %v1496, %v1889
      %v1954 = vadd.f32 %v1497, %v1894
      %v1955 = vadd.f32 %v1498, %v1897
      %v1956 = vadd.f32 %v1499, %v1902
      %v1957 = vadd.f32 %v1500, %v1905
      %v1958 = vadd.f32 %v1501, %v1910
      %v1959 = vadd.f32 %v1502, %v1913
      %v1960 = vadd.f32 %v1503, %v1918
      %v1961 = vadd.f32 %v1504, %v1921
      %v1962 = vadd.f32 %v1505, %v1926
      %v1963 = vadd.f32 %v1506, %v1929
      %1964 = vst [vmem:[%s170] sm:$0xff] %v1932
      %1965 = vst [vmem:[%s170 + $0x8] sm:$0xff] %v1933
      %1966 = vst [vmem:[%s170 + $0x10] sm:$0xff] %v1934
      %1967 = vst [vmem:[%s170 + $0x18] sm:$0xff] %v1935
      %1968 = vst [vmem:[%s170 + $0x20] sm:$0xff] %v1936
      %1969 = vst [vmem:[%s170 + $0x28] sm:$0xff] %v1937
      %1970 = vst [vmem:[%s170 + $0x30] sm:$0xff] %v1938
      %1971 = vst [vmem:[%s170 + $0x38] sm:$0xff] %v1939
      %1972 = vst [vmem:[%s170 + $0x40] sm:$0xff] %v1940
      %1973 = vst [vmem:[%s170 + $0x48] sm:$0xff] %v1941
      %1974 = vst [vmem:[%s170 + $0x50] sm:$0xff] %v1942
      %1975 = vst [vmem:[%s170 + $0x58] sm:$0xff] %v1943
      %1976 = vst [vmem:[%s170 + $0x60] sm:$0xff] %v1944
      %1977 = vst [vmem:[%s170 + $0x68] sm:$0xff] %v1945
      %1978 = vst [vmem:[%s170 + $0x70] sm:$0xff] %v1946
      %1979 = vst [vmem:[%s170 + $0x78] sm:$0xff] %v1947
      %1980 = vst [vmem:[%s170 + $0x80] sm:$0xff] %v1948
      %1981 = vst [vmem:[%s170 + $0x88] sm:$0xff] %v1949
      %1982 = vst [vmem:[%s170 + $0x90] sm:$0xff] %v1950
      %1983 = vst [vmem:[%s170 + $0x98] sm:$0xff] %v1951
      %1984 = vst [vmem:[%s170 + $0xa0] sm:$0xff] %v1952
      %1985 = vst [vmem:[%s170 + $0xa8] sm:$0xff] %v1953
      %1986 = vst [vmem:[%s170 + $0xb0] sm:$0xff] %v1954
      %1987 = vst [vmem:[%s170 + $0xb8] sm:$0xff] %v1955
      %1988 = vst [vmem:[%s170 + $0xc0] sm:$0xff] %v1956
      %1989 = vst [vmem:[%s170 + $0xc8] sm:$0xff] %v1957
      %1990 = vst [vmem:[%s170 + $0xd0] sm:$0xff] %v1958
      %1991 = vst [vmem:[%s170 + $0xd8] sm:$0xff] %v1959
      %1992 = vst [vmem:[%s170 + $0xe0] sm:$0xff] %v1960
      %1993 = vst [vmem:[%s170 + $0xe8] sm:$0xff] %v1961
      %1994 = vst [vmem:[%s170 + $0xf0] sm:$0xff] %v1962
      %1995 = vst [vmem:[%s170 + $0xf8] sm:$0xff] %v1963
      %s1996 = scalar_lea.vmem %s165, 12
      %v1997 = vld [vmem:[%s1996] sm:$0xf]
      %v1998 = vld [vmem:[%s1996 + $0x4] sm:$0xf]
      %v1999 = vld [vmem:[%s1996 + $0xc] sm:$0xf]
      %v2000 = vld [vmem:[%s1996 + $0x10] sm:$0xf]
      %v2001 = vld [vmem:[%s1996 + $0x18] sm:$0xf]
      %v2002 = vld [vmem:[%s1996 + $0x1c] sm:$0xf]
      %v2003 = vld [vmem:[%s1996 + $0x24] sm:$0xf]
      %v2004 = vld [vmem:[%s1996 + $0x28] sm:$0xf]
      %v2005 = vld [vmem:[%s1996 + $0x30] sm:$0xf]
      %v2006 = vld [vmem:[%s1996 + $0x34] sm:$0xf]
      %v2007 = vld [vmem:[%s1996 + $0x3c] sm:$0xf]
      %v2008 = vld [vmem:[%s1996 + $0x40] sm:$0xf]
      %v2009 = vld [vmem:[%s1996 + $0x48] sm:$0xf]
      %v2010 = vld [vmem:[%s1996 + $0x4c] sm:$0xf]
      %v2011 = vld [vmem:[%s1996 + $0x54] sm:$0xf]
      %v2012 = vld [vmem:[%s1996 + $0x58] sm:$0xf]
      %v2013 = vld [vmem:[%s1996 + $0x60] sm:$0xf]
      %v2014 = vld [vmem:[%s1996 + $0x64] sm:$0xf]
      %v2015 = vld [vmem:[%s1996 + $0x6c] sm:$0xf]
      %v2016 = vld [vmem:[%s1996 + $0x70] sm:$0xf]
      %v2017 = vld [vmem:[%s1996 + $0x78] sm:$0xf]
      %v2018 = vld [vmem:[%s1996 + $0x7c] sm:$0xf]
      %v2019 = vld [vmem:[%s1996 + $0x84] sm:$0xf]
      %v2020 = vld [vmem:[%s1996 + $0x88] sm:$0xf]
      %v2021 = vld [vmem:[%s1996 + $0x90] sm:$0xf]
      %v2022 = vld [vmem:[%s1996 + $0x94] sm:$0xf]
      %v2023 = vld [vmem:[%s1996 + $0x9c] sm:$0xf]
      %v2024 = vld [vmem:[%s1996 + $0xa0] sm:$0xf]
      %v2025 = vld [vmem:[%s1996 + $0xa8] sm:$0xf]
      %v2026 = vld [vmem:[%s1996 + $0xac] sm:$0xf]
      %v2027 = vld [vmem:[%s1996 + $0xb4] sm:$0xf]
      %v2028 = vld [vmem:[%s1996 + $0xb8] sm:$0xf]
      %v2029 = vld [vmem:[%s170] sm:$0xff]
      %v2030 = vld [vmem:[%s170 + $0x8] sm:$0xff]
      %v2031 = vld [vmem:[%s170 + $0x10] sm:$0xff]
      %v2032 = vld [vmem:[%s170 + $0x18] sm:$0xff]
      %v2033 = vld [vmem:[%s170 + $0x20] sm:$0xff]
      %v2034 = vld [vmem:[%s170 + $0x28] sm:$0xff]
      %v2035 = vld [vmem:[%s170 + $0x30] sm:$0xff]
      %v2036 = vld [vmem:[%s170 + $0x38] sm:$0xff]
      %v2037 = vld [vmem:[%s170 + $0x40] sm:$0xff]
      %v2038 = vld [vmem:[%s170 + $0x48] sm:$0xff]
      %v2039 = vld [vmem:[%s170 + $0x50] sm:$0xff]
      %v2040 = vld [vmem:[%s170 + $0x58] sm:$0xff]
      %v2041 = vld [vmem:[%s170 + $0x60] sm:$0xff]
      %v2042 = vld [vmem:[%s170 + $0x68] sm:$0xff]
      %v2043 = vld [vmem:[%s170 + $0x70] sm:$0xff]
      %v2044 = vld [vmem:[%s170 + $0x78] sm:$0xff]
      %v2045 = vld [vmem:[%s170 + $0x80] sm:$0xff]
      %v2046 = vld [vmem:[%s170 + $0x88] sm:$0xff]
      %v2047 = vld [vmem:[%s170 + $0x90] sm:$0xff]
      %v2048 = vld [vmem:[%s170 + $0x98] sm:$0xff]
      %v2049 = vld [vmem:[%s170 + $0xa0] sm:$0xff]
      %v2050 = vld [vmem:[%s170 + $0xa8] sm:$0xff]
      %v2051 = vld [vmem:[%s170 + $0xb0] sm:$0xff]
      %v2052 = vld [vmem:[%s170 + $0xb8] sm:$0xff]
      %v2053 = vld [vmem:[%s170 + $0xc0] sm:$0xff]
      %v2054 = vld [vmem:[%s170 + $0xc8] sm:$0xff]
      %v2055 = vld [vmem:[%s170 + $0xd0] sm:$0xff]
      %v2056 = vld [vmem:[%s170 + $0xd8] sm:$0xff]
      %v2057 = vld [vmem:[%s170 + $0xe0] sm:$0xff]
      %v2058 = vld [vmem:[%s170 + $0xe8] sm:$0xff]
      %v2059 = vld [vmem:[%s170 + $0xf0] sm:$0xff]
      %v2060 = vld [vmem:[%s170 + $0xf8] sm:$0xff]
      %s2061 = scalar_lea.vmem %s1, 6
      %v2062 = vld [vmem:[%s2061] sm:$0x3]
      %v2095 = vunpack.c.l.b16 %v1997
      %v2096 = vunpack.c.l.b16 %v1998
      %v2097 = vunpack.c.l.b16 %v1999
      %v2098 = vunpack.c.l.b16 %v2000
      %v2099 = vunpack.c.l.b16 %v2001
      %v2100 = vunpack.c.l.b16 %v2002
      %v2101 = vunpack.c.l.b16 %v2003
      %v2102 = vunpack.c.l.b16 %v2004
      %v2103 = vunpack.c.l.b16 %v2005
      %v2104 = vunpack.c.l.b16 %v2006
      %v2105 = vunpack.c.l.b16 %v2007
      %v2106 = vunpack.c.l.b16 %v2008
      %v2107 = vunpack.c.l.b16 %v2009
      %v2108 = vunpack.c.l.b16 %v2010
      %v2109 = vunpack.c.l.b16 %v2011
      %v2110 = vunpack.c.l.b16 %v2012
      %v2111 = vunpack.c.l.b16 %v2013
      %v2112 = vunpack.c.l.b16 %v2014
      %v2113 = vunpack.c.l.b16 %v2015
      %v2114 = vunpack.c.l.b16 %v2016
      %v2115 = vunpack.c.l.b16 %v2017
      %v2116 = vunpack.c.l.b16 %v2018
      %v2117 = vunpack.c.l.b16 %v2019
      %v2118 = vunpack.c.l.b16 %v2020
      %v2119 = vunpack.c.l.b16 %v2021
      %v2120 = vunpack.c.l.b16 %v2022
      %v2121 = vunpack.c.l.b16 %v2023
      %v2122 = vunpack.c.l.b16 %v2024
      %v2123 = vunpack.c.l.b16 %v2025
      %v2124 = vunpack.c.l.b16 %v2026
      %v2125 = vunpack.c.l.b16 %v2027
      %v2126 = vunpack.c.l.b16 %v2028
      %v2127 = vpack.c.b16 %v2096, %v2095
      %v2128 = vpack.c.b16 %v2098, %v2097
      %v2129 = vpack.c.b16 %v2100, %v2099
      %v2130 = vpack.c.b16 %v2102, %v2101
      %v2131 = vpack.c.b16 %v2104, %v2103
      %v2132 = vpack.c.b16 %v2106, %v2105
      %v2133 = vpack.c.b16 %v2108, %v2107
      %v2134 = vpack.c.b16 %v2110, %v2109
      %v2135 = vpack.c.b16 %v2112, %v2111
      %v2136 = vpack.c.b16 %v2114, %v2113
      %v2137 = vpack.c.b16 %v2116, %v2115
      %v2138 = vpack.c.b16 %v2118, %v2117
      %v2139 = vpack.c.b16 %v2120, %v2119
      %v2140 = vpack.c.b16 %v2122, %v2121
      %v2141 = vpack.c.b16 %v2124, %v2123
      %v2142 = vpack.c.b16 %v2126, %v2125
      %v2144 = vsel %vm356, %v2127, 0
      %v2147 = vsel %vm356, %v2128, 0
      %v2150 = vsel %vm356, %v2129, 0
      %v2153 = vsel %vm356, %v2130, 0
      %v2156 = vsel %vm356, %v2131, 0
      %v2159 = vsel %vm356, %v2132, 0
      %v2162 = vsel %vm356, %v2133, 0
      %v2165 = vsel %vm356, %v2134, 0
      %v2168 = vsel %vm356, %v2135, 0
      %v2171 = vsel %vm356, %v2136, 0
      %v2174 = vsel %vm356, %v2137, 0
      %v2177 = vsel %vm356, %v2138, 0
      %v2180 = vsel %vm356, %v2139, 0
      %v2183 = vsel %vm356, %v2140, 0
      %v2186 = vsel %vm356, %v2141, 0
      %v2189 = vsel %vm356, %v2142, 0
      %v2192 = vsel %vm405, %v2062, 0
      %2194 = vmatprep.subr.bf16.mxu0 0
      %2195 = vmatpush1.bf16.msra.mxu0 %v2192
      %2196 = vmatprep.subr.bf16.mxu0 0
      %2197 = vmatpush1.bf16.msra.mxu0 0
      %2198 = vmatprep.subr.bf16.mxu0 0
      %2199 = vmatpush1.bf16.msra.mxu0 0
      %2200 = vmatprep.subr.bf16.mxu0 0
      %2201 = vmatpush1.bf16.msra.mxu0 0
      %2202 = vmatprep.subr.bf16.mxu0 0
      %2203 = vmatpush1.bf16.msra.mxu0 0
      %2204 = vmatprep.subr.bf16.mxu0 0
      %2205 = vmatpush1.bf16.msra.mxu0 0
      %2206 = vmatprep.subr.bf16.mxu0 0
      %2207 = vmatpush1.bf16.msra.mxu0 0
      %2208 = vmatprep.subr.bf16.mxu0 0
      %2209 = vmatpush1.bf16.msra.mxu0 0
      %2210 = vmatprep.subr.bf16.mxu0 0
      %2211 = vmatpush1.bf16.msra.mxu0 0
      %2212 = vmatprep.subr.bf16.mxu0 0
      %2213 = vmatpush1.bf16.msra.mxu0 0
      %2214 = vmatprep.subr.bf16.mxu0 0
      %2215 = vmatpush1.bf16.msra.mxu0 0
      %2216 = vmatprep.subr.bf16.mxu0 0
      %2217 = vmatpush1.bf16.msra.mxu0 0
      %2218 = vmatprep.subr.bf16.mxu0 0
      %2219 = vmatpush1.bf16.msra.mxu0 0
      %2220 = vmatprep.subr.bf16.mxu0 0
      %2221 = vmatpush1.bf16.msra.mxu0 0
      %2222 = vmatprep.subr.bf16.mxu0 0
      %2223 = vmatpush1.bf16.msra.mxu0 0
      %2224 = vmatprep.subr.bf16.mxu0 0
      %2225 = vmatpush1.bf16.msra.mxu0 0
      %2226 = vmatprep.mubr.bf16.mxu0 0
      %2227 = vmatmul.mubr.bf16.gmra.mrb[0].mxu0 %v2144
      %v2228 = vpop.f32.mrb[0].mxu0
      %v2229 = vadd.f32 0.0, %v2228
      %v2230 = vpop.f32.mrb[0].mxu0
      %v2231 = vpop.f32.mrb[0].mxu0
      %v2232 = vadd.f32 0.0, %v2231
      %v2233 = vpop.f32.mrb[0].mxu0
      %2234 = vmatprep.mubr.bf16.mxu0 0
      %2235 = vmatmul.mubr.bf16.gmra.mrb[0].mxu0 %v2147
      %v2236 = vpop.f32.mrb[0].mxu0
      %v2237 = vadd.f32 0.0, %v2236
      %v2238 = vpop.f32.mrb[0].mxu0
      %v2239 = vpop.f32.mrb[0].mxu0
      %v2240 = vadd.f32 0.0, %v2239
      %v2241 = vpop.f32.mrb[0].mxu0
      %2242 = vmatprep.mubr.bf16.mxu0 0
      %2243 = vmatmul.mubr.bf16.gmra.mrb[0].mxu0 %v2150
      %v2244 = vpop.f32.mrb[0].mxu0
      %v2245 = vadd.f32 0.0, %v2244
      %v2246 = vpop.f32.mrb[0].mxu0
      %v2247 = vpop.f32.mrb[0].mxu0
      %v2248 = vadd.f32 0.0, %v2247
      %v2249 = vpop.f32.mrb[0].mxu0
      %2250 = vmatprep.mubr.bf16.mxu0 0
      %2251 = vmatmul.mubr.bf16.gmra.mrb[0].mxu0 %v2153
      %v2252 = vpop.f32.mrb[0].mxu0
      %v2253 = vadd.f32 0.0, %v2252
      %v2254 = vpop.f32.mrb[0].mxu0
      %v2255 = vpop.f32.mrb[0].mxu0
      %v2256 = vadd.f32 0.0, %v2255
      %v2257 = vpop.f32.mrb[0].mxu0
      %2258 = vmatprep.mubr.bf16.mxu0 0
      %2259 = vmatmul.mubr.bf16.gmra.mrb[0].mxu0 %v2156
      %v2260 = vpop.f32.mrb[0].mxu0
      %v2261 = vadd.f32 0.0, %v2260
      %v2262 = vpop.f32.mrb[0].mxu0
      %v2263 = vpop.f32.mrb[0].mxu0
      %v2264 = vadd.f32 0.0, %v2263
      %v2265 = vpop.f32.mrb[0].mxu0
      %2266 = vmatprep.mubr.bf16.mxu0 0
      %2267 = vmatmul.mubr.bf16.gmra.mrb[0].mxu0 %v2159
      %v2268 = vpop.f32.mrb[0].mxu0
      %v2269 = vadd.f32 0.0, %v2268
      %v2270 = vpop.f32.mrb[0].mxu0
      %v2271 = vpop.f32.mrb[0].mxu0
      %v2272 = vadd.f32 0.0, %v2271
      %v2273 = vpop.f32.mrb[0].mxu0
      %2274 = vmatprep.mubr.bf16.mxu0 0
      %2275 = vmatmul.mubr.bf16.gmra.mrb[0].mxu0 %v2162
      %v2276 = vpop.f32.mrb[0].mxu0
      %v2277 = vadd.f32 0.0, %v2276
      %v2278 = vpop.f32.mrb[0].mxu0
      %v2279 = vpop.f32.mrb[0].mxu0
      %v2280 = vadd.f32 0.0, %v2279
      %v2281 = vpop.f32.mrb[0].mxu0
      %2282 = vmatprep.mubr.bf16.mxu0 0
      %2283 = vmatmul.mubr.bf16.gmra.mrb[0].mxu0 %v2165
      %v2284 = vpop.f32.mrb[0].mxu0
      %v2285 = vadd.f32 0.0, %v2284
      %v2286 = vpop.f32.mrb[0].mxu0
      %v2287 = vpop.f32.mrb[0].mxu0
      %v2288 = vadd.f32 0.0, %v2287
      %v2289 = vpop.f32.mrb[0].mxu0
      %2290 = vmatprep.mubr.bf16.mxu0 0
      %2291 = vmatmul.mubr.bf16.gmra.mrb[0].mxu0 %v2168
      %v2292 = vpop.f32.mrb[0].mxu0
      %v2293 = vadd.f32 0.0, %v2292
      %v2294 = vpop.f32.mrb[0].mxu0
      %v2295 = vpop.f32.mrb[0].mxu0
      %v2296 = vadd.f32 0.0, %v2295
      %v2297 = vpop.f32.mrb[0].mxu0
      %2298 = vmatprep.mubr.bf16.mxu0 0
      %2299 = vmatmul.mubr.bf16.gmra.mrb[0].mxu0 %v2171
      %v2300 = vpop.f32.mrb[0].mxu0
      %v2301 = vadd.f32 0.0, %v2300
      %v2302 = vpop.f32.mrb[0].mxu0
      %v2303 = vpop.f32.mrb[0].mxu0
      %v2304 = vadd.f32 0.0, %v2303
      %v2305 = vpop.f32.mrb[0].mxu0
      %2306 = vmatprep.mubr.bf16.mxu0 0
      %2307 = vmatmul.mubr.bf16.gmra.mrb[0].mxu0 %v2174
      %v2308 = vpop.f32.mrb[0].mxu0
      %v2309 = vadd.f32 0.0, %v2308
      %v2310 = vpop.f32.mrb[0].mxu0
      %v2311 = vpop.f32.mrb[0].mxu0
      %v2312 = vadd.f32 0.0, %v2311
      %v2313 = vpop.f32.mrb[0].mxu0
      %2314 = vmatprep.mubr.bf16.mxu0 0
      %2315 = vmatmul.mubr.bf16.gmra.mrb[0].mxu0 %v2177
      %v2316 = vpop.f32.mrb[0].mxu0
      %v2317 = vadd.f32 0.0, %v2316
      %v2318 = vpop.f32.mrb[0].mxu0
      %v2319 = vpop.f32.mrb[0].mxu0
      %v2320 = vadd.f32 0.0, %v2319
      %v2321 = vpop.f32.mrb[0].mxu0
      %2322 = vmatprep.mubr.bf16.mxu0 0
      %2323 = vmatmul.mubr.bf16.gmra.mrb[0].mxu0 %v2180
      %v2324 = vpop.f32.mrb[0].mxu0
      %v2325 = vadd.f32 0.0, %v2324
      %v2326 = vpop.f32.mrb[0].mxu0
      %v2327 = vpop.f32.mrb[0].mxu0
      %v2328 = vadd.f32 0.0, %v2327
      %v2329 = vpop.f32.mrb[0].mxu0
      %2330 = vmatprep.mubr.bf16.mxu0 0
      %2331 = vmatmul.mubr.bf16.gmra.mrb[0].mxu0 %v2183
      %v2332 = vpop.f32.mrb[0].mxu0
      %v2333 = vadd.f32 0.0, %v2332
      %v2334 = vpop.f32.mrb[0].mxu0
      %v2335 = vpop.f32.mrb[0].mxu0
      %v2336 = vadd.f32 0.0, %v2335
      %v2337 = vpop.f32.mrb[0].mxu0
      %2338 = vmatprep.mubr.bf16.mxu0 0
      %2339 = vmatmul.mubr.bf16.gmra.mrb[0].mxu0 %v2186
      %v2340 = vpop.f32.mrb[0].mxu0
      %v2341 = vadd.f32 0.0, %v2340
      %v2342 = vpop.f32.mrb[0].mxu0
      %v2343 = vpop.f32.mrb[0].mxu0
      %v2344 = vadd.f32 0.0, %v2343
      %v2345 = vpop.f32.mrb[0].mxu0
      %2346 = vmatprep.mubr.bf16.mxu0 0
      %2347 = vmatmul.mubr.bf16.gmra.mrb[0].mxu0 %v2189
      %v2348 = vpop.f32.mrb[0].mxu0
      %v2349 = vadd.f32 0.0, %v2348
      %v2350 = vpop.f32.mrb[0].mxu0
      %v2351 = vpop.f32.mrb[0].mxu0
      %v2352 = vadd.f32 0.0, %v2351
      %v2353 = vpop.f32.mrb[0].mxu0
      %2354 = vdwg.mxu0
      %v2355 = vadd.f32 %v2029, %v2229
      %v2356 = vadd.f32 %v2030, %v2232
      %v2357 = vadd.f32 %v2031, %v2237
      %v2358 = vadd.f32 %v2032, %v2240
      %v2359 = vadd.f32 %v2033, %v2245
      %v2360 = vadd.f32 %v2034, %v2248
      %v2361 = vadd.f32 %v2035, %v2253
      %v2362 = vadd.f32 %v2036, %v2256
      %v2363 = vadd.f32 %v2037, %v2261
      %v2364 = vadd.f32 %v2038, %v2264
      %v2365 = vadd.f32 %v2039, %v2269
      %v2366 = vadd.f32 %v2040, %v2272
      %v2367 = vadd.f32 %v2041, %v2277
      %v2368 = vadd.f32 %v2042, %v2280
      %v2369 = vadd.f32 %v2043, %v2285
      %v2370 = vadd.f32 %v2044, %v2288
      %v2371 = vadd.f32 %v2045, %v2293
      %v2372 = vadd.f32 %v2046, %v2296
      %v2373 = vadd.f32 %v2047, %v2301
      %v2374 = vadd.f32 %v2048, %v2304
      %v2375 = vadd.f32 %v2049, %v2309
      %v2376 = vadd.f32 %v2050, %v2312
      %v2377 = vadd.f32 %v2051, %v2317
      %v2378 = vadd.f32 %v2052, %v2320
      %v2379 = vadd.f32 %v2053, %v2325
      %v2380 = vadd.f32 %v2054, %v2328
      %v2381 = vadd.f32 %v2055, %v2333
      %v2382 = vadd.f32 %v2056, %v2336
      %v2383 = vadd.f32 %v2057, %v2341
      %v2384 = vadd.f32 %v2058, %v2344
      %v2385 = vadd.f32 %v2059, %v2349
      %v2386 = vadd.f32 %v2060, %v2352
      %2387 = vst [vmem:[%s170] sm:$0xff] %v2355
      %2388 = vst [vmem:[%s170 + $0x8] sm:$0xff] %v2356
      %2389 = vst [vmem:[%s170 + $0x10] sm:$0xff] %v2357
      %2390 = vst [vmem:[%s170 + $0x18] sm:$0xff] %v2358
      %2391 = vst [vmem:[%s170 + $0x20] sm:$0xff] %v2359
      %2392 = vst [vmem:[%s170 + $0x28] sm:$0xff] %v2360
      %2393 = vst [vmem:[%s170 + $0x30] sm:$0xff] %v2361
      %2394 = vst [vmem:[%s170 + $0x38] sm:$0xff] %v2362
      %2395 = vst [vmem:[%s170 + $0x40] sm:$0xff] %v2363
      %2396 = vst [vmem:[%s170 + $0x48] sm:$0xff] %v2364
      %2397 = vst [vmem:[%s170 + $0x50] sm:$0xff] %v2365
      %2398 = vst [vmem:[%s170 + $0x58] sm:$0xff] %v2366
      %2399 = vst [vmem:[%s170 + $0x60] sm:$0xff] %v2367
      %2400 = vst [vmem:[%s170 + $0x68] sm:$0xff] %v2368
      %2401 = vst [vmem:[%s170 + $0x70] sm:$0xff] %v2369
      %2402 = vst [vmem:[%s170 + $0x78] sm:$0xff] %v2370
      %2403 = vst [vmem:[%s170 + $0x80] sm:$0xff] %v2371
      %2404 = vst [vmem:[%s170 + $0x88] sm:$0xff] %v2372
      %2405 = vst [vmem:[%s170 + $0x90] sm:$0xff] %v2373
      %2406 = vst [vmem:[%s170 + $0x98] sm:$0xff] %v2374
      %2407 = vst [vmem:[%s170 + $0xa0] sm:$0xff] %v2375
      %2408 = vst [vmem:[%s170 + $0xa8] sm:$0xff] %v2376
      %2409 = vst [vmem:[%s170 + $0xb0] sm:$0xff] %v2377
      %2410 = vst [vmem:[%s170 + $0xb8] sm:$0xff] %v2378
      %2411 = vst [vmem:[%s170 + $0xc0] sm:$0xff] %v2379
      %2412 = vst [vmem:[%s170 + $0xc8] sm:$0xff] %v2380
      %2413 = vst [vmem:[%s170 + $0xd0] sm:$0xff] %v2381
      %2414 = vst [vmem:[%s170 + $0xd8] sm:$0xff] %v2382
      %2415 = vst [vmem:[%s170 + $0xe0] sm:$0xff] %v2383
      %2416 = vst [vmem:[%s170 + $0xe8] sm:$0xff] %v2384
      %2417 = vst [vmem:[%s170 + $0xf0] sm:$0xff] %v2385
      %2418 = vst [vmem:[%s170 + $0xf8] sm:$0xff] %v2386
      %v2419 = vld [vmem:[%s1996] sm:$0xf]
      %v2420 = vld [vmem:[%s1996 + $0x4] sm:$0xf]
      %v2421 = vld [vmem:[%s1996 + $0x8] sm:$0x1]
      %v2422 = vld [vmem:[%s1996 + $0xc] sm:$0xf]
      %v2423 = vld [vmem:[%s1996 + $0x10] sm:$0xf]
      %v2424 = vld [vmem:[%s1996 + $0x14] sm:$0x1]
      %v2425 = vld [vmem:[%s1996 + $0x18] sm:$0xf]
      %v2426 = vld [vmem:[%s1996 + $0x1c] sm:$0xf]
      %v2427 = vld [vmem:[%s1996 + $0x20] sm:$0x1]
      %v2428 = vld [vmem:[%s1996 + $0x24] sm:$0xf]
      %v2429 = vld [vmem:[%s1996 + $0x28] sm:$0xf]
      %v2430 = vld [vmem:[%s1996 + $0x2c] sm:$0x1]
      %v2431 = vld [vmem:[%s1996 + $0x30] sm:$0xf]
      %v2432 = vld [vmem:[%s1996 + $0x34] sm:$0xf]
      %v2433 = vld [vmem:[%s1996 + $0x38] sm:$0x1]
      %v2434 = vld [vmem:[%s1996 + $0x3c] sm:$0xf]
      %v2435 = vld [vmem:[%s1996 + $0x40] sm:$0xf]
      %v2436 = vld [vmem:[%s1996 + $0x44] sm:$0x1]
      %v2437 = vld [vmem:[%s1996 + $0x48] sm:$0xf]
      %v2438 = vld [vmem:[%s1996 + $0x4c] sm:$0xf]
      %v2439 = vld [vmem:[%s1996 + $0x50] sm:$0x1]
      %v2440 = vld [vmem:[%s1996 + $0x54] sm:$0xf]
      %v2441 = vld [vmem:[%s1996 + $0x58] sm:$0xf]
      %v2442 = vld [vmem:[%s1996 + $0x5c] sm:$0x1]
      %v2443 = vld [vmem:[%s1996 + $0x60] sm:$0xf]
      %v2444 = vld [vmem:[%s1996 + $0x64] sm:$0xf]
      %v2445 = vld [vmem:[%s1996 + $0x68] sm:$0x1]
      %v2446 = vld [vmem:[%s1996 + $0x6c] sm:$0xf]
      %v2447 = vld [vmem:[%s1996 + $0x70] sm:$0xf]
      %v2448 = vld [vmem:[%s1996 + $0x74] sm:$0x1]
      %v2449 = vld [vmem:[%s1996 + $0x78] sm:$0xf]
      %v2450 = vld [vmem:[%s1996 + $0x7c] sm:$0xf]
      %v2451 = vld [vmem:[%s1996 + $0x80] sm:$0x1]
      %v2452 = vld [vmem:[%s1996 + $0x84] sm:$0xf]
      %v2453 = vld [vmem:[%s1996 + $0x88] sm:$0xf]
      %v2454 = vld [vmem:[%s1996 + $0x8c] sm:$0x1]
      %v2455 = vld [vmem:[%s1996 + $0x90] sm:$0xf]
      %v2456 = vld [vmem:[%s1996 + $0x94] sm:$0xf]
      %v2457 = vld [vmem:[%s1996 + $0x98] sm:$0x1]
      %v2458 = vld [vmem:[%s1996 + $0x9c] sm:$0xf]
      %v2459 = vld [vmem:[%s1996 + $0xa0] sm:$0xf]
      %v2460 = vld [vmem:[%s1996 + $0xa4] sm:$0x1]
      %v2461 = vld [vmem:[%s1996 + $0xa8] sm:$0xf]
      %v2462 = vld [vmem:[%s1996 + $0xac] sm:$0xf]
      %v2463 = vld [vmem:[%s1996 + $0xb0] sm:$0x1]
      %v2464 = vld [vmem:[%s1996 + $0xb4] sm:$0xf]
      %v2465 = vld [vmem:[%s1996 + $0xb8] sm:$0xf]
      %v2466 = vld [vmem:[%s1996 + $0xbc] sm:$0x1]
      %v2467 = vld [vmem:[%s170] sm:$0xff]
      %v2468 = vld [vmem:[%s170 + $0x8] sm:$0xff]
      %v2469 = vld [vmem:[%s170 + $0x10] sm:$0xff]
      %v2470 = vld [vmem:[%s170 + $0x18] sm:$0xff]
      %v2471 = vld [vmem:[%s170 + $0x20] sm:$0xff]
      %v2472 = vld [vmem:[%s170 + $0x28] sm:$0xff]
      %v2473 = vld [vmem:[%s170 + $0x30] sm:$0xff]
      %v2474 = vld [vmem:[%s170 + $0x38] sm:$0xff]
      %v2475 = vld [vmem:[%s170 + $0x40] sm:$0xff]
      %v2476 = vld [vmem:[%s170 + $0x48] sm:$0xff]
      %v2477 = vld [vmem:[%s170 + $0x50] sm:$0xff]
      %v2478 = vld [vmem:[%s170 + $0x58] sm:$0xff]
      %v2479 = vld [vmem:[%s170 + $0x60] sm:$0xff]
      %v2480 = vld [vmem:[%s170 + $0x68] sm:$0xff]
      %v2481 = vld [vmem:[%s170 + $0x70] sm:$0xff]
      %v2482 = vld [vmem:[%s170 + $0x78] sm:$0xff]
      %v2483 = vld [vmem:[%s170 + $0x80] sm:$0xff]
      %v2484 = vld [vmem:[%s170 + $0x88] sm:$0xff]
      %v2485 = vld [vmem:[%s170 + $0x90] sm:$0xff]
      %v2486 = vld [vmem:[%s170 + $0x98] sm:$0xff]
      %v2487 = vld [vmem:[%s170 + $0xa0] sm:$0xff]
      %v2488 = vld [vmem:[%s170 + $0xa8] sm:$0xff]
      %v2489 = vld [vmem:[%s170 + $0xb0] sm:$0xff]
      %v2490 = vld [vmem:[%s170 + $0xb8] sm:$0xff]
      %v2491 = vld [vmem:[%s170 + $0xc0] sm:$0xff]
      %v2492 = vld [vmem:[%s170 + $0xc8] sm:$0xff]
      %v2493 = vld [vmem:[%s170 + $0xd0] sm:$0xff]
      %v2494 = vld [vmem:[%s170 + $0xd8] sm:$0xff]
      %v2495 = vld [vmem:[%s170 + $0xe0] sm:$0xff]
      %v2496 = vld [vmem:[%s170 + $0xe8] sm:$0xff]
      %v2497 = vld [vmem:[%s170 + $0xf0] sm:$0xff]
      %v2498 = vld [vmem:[%s170 + $0xf8] sm:$0xff]
      %v2500 = vshrl.u32 %v2419, 16
      %v2502 = vrot.slane %v2500, 4
      %v2503 = vshll.u32 %v2419, 16
      %v2505 = vrot.slane %v2503, 5
      %v2506 = vor.u32 %v2502, %v2505
      %v2507 = vrot.slane %v2506, 4
      %v2509 = vshll.u32 %v2420, 16
      %v2511 = vrot.slane %v2509, 5
      %v2512 = vsel %vm716, %v2507, %v2511
      %v2513 = vshrl.u32 %v2420, 16
      %v2515 = vrot.slane %v2513, 4
      %v2516 = vor.u32 %v2515, %v2511
      %v2517 = vrot.slane %v2516, 4
      %v2519 = vshll.u32 %v2421, 16
      %v2521 = vrot.slane %v2519, 5
      %v2522 = vsel %vm716, %v2517, %v2521
      %v2524 = vshrl.u32 %v2422, 16
      %v2526 = vrot.slane %v2524, 4
      %v2527 = vshll.u32 %v2422, 16
      %v2529 = vrot.slane %v2527, 5
      %v2530 = vor.u32 %v2526, %v2529
      %v2531 = vrot.slane %v2530, 4
      %v2533 = vshll.u32 %v2423, 16
      %v2535 = vrot.slane %v2533, 5
      %v2536 = vsel %vm716, %v2531, %v2535
      %v2537 = vshrl.u32 %v2423, 16
      %v2539 = vrot.slane %v2537, 4
      %v2540 = vor.u32 %v2539, %v2535
      %v2541 = vrot.slane %v2540, 4
      %v2543 = vshll.u32 %v2424, 16
      %v2545 = vrot.slane %v2543, 5
      %v2546 = vsel %vm716, %v2541, %v2545
      %v2548 = vshrl.u32 %v2425, 16
      %v2550 = vrot.slane %v2548, 4
      %v2551 = vshll.u32 %v2425, 16
      %v2553 = vrot.slane %v2551, 5
      %v2554 = vor.u32 %v2550, %v2553
      %v2555 = vrot.slane %v2554, 4
      %v2557 = vshll.u32 %v2426, 16
      %v2559 = vrot.slane %v2557, 5
      %v2560 = vsel %vm716, %v2555, %v2559
      %v2561 = vshrl.u32 %v2426, 16
      %v2563 = vrot.slane %v2561, 4
      %v2564 = vor.u32 %v2563, %v2559
      %v2565 = vrot.slane %v2564, 4
      %v2567 = vshll.u32 %v2427, 16
      %v2569 = vrot.slane %v2567, 5
      %v2570 = vsel %vm716, %v2565, %v2569
      %v2572 = vshrl.u32 %v2428, 16
      %v2574 = vrot.slane %v2572, 4
      %v2575 = vshll.u32 %v2428, 16
      %v2577 = vrot.slane %v2575, 5
      %v2578 = vor.u32 %v2574, %v2577
      %v2579 = vrot.slane %v2578, 4
      %v2581 = vshll.u32 %v2429, 16
      %v2583 = vrot.slane %v2581, 5
      %v2584 = vsel %vm716, %v2579, %v2583
      %v2585 = vshrl.u32 %v2429, 16
      %v2587 = vrot.slane %v2585, 4
      %v2588 = vor.u32 %v2587, %v2583
      %v2589 = vrot.slane %v2588, 4
      %v2591 = vshll.u32 %v2430, 16
      %v2593 = vrot.slane %v2591, 5
      %v2594 = vsel %vm716, %v2589, %v2593
      %v2596 = vshrl.u32 %v2431, 16
      %v2598 = vrot.slane %v2596, 4
      %v2599 = vshll.u32 %v2431, 16
      %v2601 = vrot.slane %v2599, 5
      %v2602 = vor.u32 %v2598, %v2601
      %v2603 = vrot.slane %v2602, 4
      %v2605 = vshll.u32 %v2432, 16
      %v2607 = vrot.slane %v2605, 5
      %v2608 = vsel %vm716, %v2603, %v2607
      %v2609 = vshrl.u32 %v2432, 16
      %v2611 = vrot.slane %v2609, 4
      %v2612 = vor.u32 %v2611, %v2607
      %v2613 = vrot.slane %v2612, 4
      %v2615 = vshll.u32 %v2433, 16
      %v2617 = vrot.slane %v2615, 5
      %v2618 = vsel %vm716, %v2613, %v2617
      %v2620 = vshrl.u32 %v2434, 16
      %v2622 = vrot.slane %v2620, 4
      %v2623 = vshll.u32 %v2434, 16
      %v2625 = vrot.slane %v2623, 5
      %v2626 = vor.u32 %v2622, %v2625
      %v2627 = vrot.slane %v2626, 4
      %v2629 = vshll.u32 %v2435, 16
      %v2631 = vrot.slane %v2629, 5
      %v2632 = vsel %vm716, %v2627, %v2631
      %v2633 = vshrl.u32 %v2435, 16
      %v2635 = vrot.slane %v2633, 4
      %v2636 = vor.u32 %v2635, %v2631
      %v2637 = vrot.slane %v2636, 4
      %v2639 = vshll.u32 %v2436, 16
      %v2641 = vrot.slane %v2639, 5
      %v2642 = vsel %vm716, %v2637, %v2641
      %v2644 = vshrl.u32 %v2437, 16
      %v2646 = vrot.slane %v2644, 4
      %v2647 = vshll.u32 %v2437, 16
      %v2649 = vrot.slane %v2647, 5
      %v2650 = vor.u32 %v2646, %v2649
      %v2651 = vrot.slane %v2650, 4
      %v2653 = vshll.u32 %v2438, 16
      %v2655 = vrot.slane %v2653, 5
      %v2656 = vsel %vm716, %v2651, %v2655
      %v2657 = vshrl.u32 %v2438, 16
      %v2659 = vrot.slane %v2657, 4
      %v2660 = vor.u32 %v2659, %v2655
      %v2661 = vrot.slane %v2660, 4
      %v2663 = vshll.u32 %v2439, 16
      %v2665 = vrot.slane %v2663, 5
      %v2666 = vsel %vm716, %v2661, %v2665
      %v2668 = vshrl.u32 %v2440, 16
      %v2670 = vrot.slane %v2668, 4
      %v2671 = vshll.u32 %v2440, 16
      %v2673 = vrot.slane %v2671, 5
      %v2674 = vor.u32 %v2670, %v2673
      %v2675 = vrot.slane %v2674, 4
      %v2677 = vshll.u32 %v2441, 16
      %v2679 = vrot.slane %v2677, 5
      %v2680 = vsel %vm716, %v2675, %v2679
      %v2681 = vshrl.u32 %v2441, 16
      %v2683 = vrot.slane %v2681, 4
      %v2684 = vor.u32 %v2683, %v2679
      %v2685 = vrot.slane %v2684, 4
      %v2687 = vshll.u32 %v2442, 16
      %v2689 = vrot.slane %v2687, 5
      %v2690 = vsel %vm716, %v2685, %v2689
      %v2692 = vshrl.u32 %v2443, 16
      %v2694 = vrot.slane %v2692, 4
      %v2695 = vshll.u32 %v2443, 16
      %v2697 = vrot.slane %v2695, 5
      %v2698 = vor.u32 %v2694, %v2697
      %v2699 = vrot.slane %v2698, 4
      %v2701 = vshll.u32 %v2444, 16
      %v2703 = vrot.slane %v2701, 5
      %v2704 = vsel %vm716, %v2699, %v2703
      %v2705 = vshrl.u32 %v2444, 16
      %v2707 = vrot.slane %v2705, 4
      %v2708 = vor.u32 %v2707, %v2703
      %v2709 = vrot.slane %v2708, 4
      %v2711 = vshll.u32 %v2445, 16
      %v2713 = vrot.slane %v2711, 5
      %v2714 = vsel %vm716, %v2709, %v2713
      %v2716 = vshrl.u32 %v2446, 16
      %v2718 = vrot.slane %v2716, 4
      %v2719 = vshll.u32 %v2446, 16
      %v2721 = vrot.slane %v2719, 5
      %v2722 = vor.u32 %v2718, %v2721
      %v2723 = vrot.slane %v2722, 4
      %v2725 = vshll.u32 %v2447, 16
      %v2727 = vrot.slane %v2725, 5
      %v2728 = vsel %vm716, %v2723, %v2727
      %v2729 = vshrl.u32 %v2447, 16
      %v2731 = vrot.slane %v2729, 4
      %v2732 = vor.u32 %v2731, %v2727
      %v2733 = vrot.slane %v2732, 4
      %v2735 = vshll.u32 %v2448, 16
      %v2737 = vrot.slane %v2735, 5
      %v2738 = vsel %vm716, %v2733, %v2737
      %v2740 = vshrl.u32 %v2449, 16
      %v2742 = vrot.slane %v2740, 4
      %v2743 = vshll.u32 %v2449, 16
      %v2745 = vrot.slane %v2743, 5
      %v2746 = vor.u32 %v2742, %v2745
      %v2747 = vrot.slane %v2746, 4
      %v2749 = vshll.u32 %v2450, 16
      %v2751 = vrot.slane %v2749, 5
      %v2752 = vsel %vm716, %v2747, %v2751
      %v2753 = vshrl.u32 %v2450, 16
      %v2755 = vrot.slane %v2753, 4
      %v2756 = vor.u32 %v2755, %v2751
      %v2757 = vrot.slane %v2756, 4
      %v2759 = vshll.u32 %v2451, 16
      %v2761 = vrot.slane %v2759, 5
      %v2762 = vsel %vm716, %v2757, %v2761
      %v2764 = vshrl.u32 %v2452, 16
      %v2766 = vrot.slane %v2764, 4
      %v2767 = vshll.u32 %v2452, 16
      %v2769 = vrot.slane %v2767, 5
      %v2770 = vor.u32 %v2766, %v2769
      %v2771 = vrot.slane %v2770, 4
      %v2773 = vshll.u32 %v2453, 16
      %v2775 = vrot.slane %v2773, 5
      %v2776 = vsel %vm716, %v2771, %v2775
      %v2777 = vshrl.u32 %v2453, 16
      %v2779 = vrot.slane %v2777, 4
      %v2780 = vor.u32 %v2779, %v2775
      %v2781 = vrot.slane %v2780, 4
      %v2783 = vshll.u32 %v2454, 16
      %v2785 = vrot.slane %v2783, 5
      %v2786 = vsel %vm716, %v2781, %v2785
      %v2788 = vshrl.u32 %v2455, 16
      %v2790 = vrot.slane %v2788, 4
      %v2791 = vshll.u32 %v2455, 16
      %v2793 = vrot.slane %v2791, 5
      %v2794 = vor.u32 %v2790, %v2793
      %v2795 = vrot.slane %v2794, 4
      %v2797 = vshll.u32 %v2456, 16
      %v2799 = vrot.slane %v2797, 5
      %v2800 = vsel %vm716, %v2795, %v2799
      %v2801 = vshrl.u32 %v2456, 16
      %v2803 = vrot.slane %v2801, 4
      %v2804 = vor.u32 %v2803, %v2799
      %v2805 = vrot.slane %v2804, 4
      %v2807 = vshll.u32 %v2457, 16
      %v2809 = vrot.slane %v2807, 5
      %v2810 = vsel %vm716, %v2805, %v2809
      %v2812 = vshrl.u32 %v2458, 16
      %v2814 = vrot.slane %v2812, 4
      %v2815 = vshll.u32 %v2458, 16
      %v2817 = vrot.slane %v2815, 5
      %v2818 = vor.u32 %v2814, %v2817
      %v2819 = vrot.slane %v2818, 4
      %v2821 = vshll.u32 %v2459, 16
      %v2823 = vrot.slane %v2821, 5
      %v2824 = vsel %vm716, %v2819, %v2823
      %v2825 = vshrl.u32 %v2459, 16
      %v2827 = vrot.slane %v2825, 4
      %v2828 = vor.u32 %v2827, %v2823
      %v2829 = vrot.slane %v2828, 4
      %v2831 = vshll.u32 %v2460, 16
      %v2833 = vrot.slane %v2831, 5
      %v2834 = vsel %vm716, %v2829, %v2833
      %v2836 = vshrl.u32 %v2461, 16
      %v2838 = vrot.slane %v2836, 4
      %v2839 = vshll.u32 %v2461, 16
      %v2841 = vrot.slane %v2839, 5
      %v2842 = vor.u32 %v2838, %v2841
      %v2843 = vrot.slane %v2842, 4
      %v2845 = vshll.u32 %v2462, 16
      %v2847 = vrot.slane %v2845, 5
      %v2848 = vsel %vm716, %v2843, %v2847
      %v2849 = vshrl.u32 %v2462, 16
      %v2851 = vrot.slane %v2849, 4
      %v2852 = vor.u32 %v2851, %v2847
      %v2853 = vrot.slane %v2852, 4
      %v2855 = vshll.u32 %v2463, 16
      %v2857 = vrot.slane %v2855, 5
      %v2858 = vsel %vm716, %v2853, %v2857
      %v2860 = vshrl.u32 %v2464, 16
      %v2862 = vrot.slane %v2860, 4
      %v2863 = vshll.u32 %v2464, 16
      %v2865 = vrot.slane %v2863, 5
      %v2866 = vor.u32 %v2862, %v2865
      %v2867 = vrot.slane %v2866, 4
      %v2869 = vshll.u32 %v2465, 16
      %v2871 = vrot.slane %v2869, 5
      %v2872 = vsel %vm716, %v2867, %v2871
      %v2873 = vshrl.u32 %v2465, 16
      %v2875 = vrot.slane %v2873, 4
      %v2876 = vor.u32 %v2875, %v2871
      %v2877 = vrot.slane %v2876, 4
      %v2879 = vshll.u32 %v2466, 16
      %v2881 = vrot.slane %v2879, 5
      %v2882 = vsel %vm716, %v2877, %v2881
      %s2883 = scalar_lea.vmem %s1, 8
      %v2884 = vld [vmem:[%s2883] sm:$0x3]
      %v2885 = vunpack.c.l.b16 %v2512
      %v2886 = vunpack.c.l.b16 %v2522
      %v2887 = vunpack.c.l.b16 %v2536
      %v2888 = vunpack.c.l.b16 %v2546
      %v2889 = vunpack.c.l.b16 %v2560
      %v2890 = vunpack.c.l.b16 %v2570
      %v2891 = vunpack.c.l.b16 %v2584
      %v2892 = vunpack.c.l.b16 %v2594
      %v2893 = vunpack.c.l.b16 %v2608
      %v2894 = vunpack.c.l.b16 %v2618
      %v2895 = vunpack.c.l.b16 %v2632
      %v2896 = vunpack.c.l.b16 %v2642
      %v2897 = vunpack.c.l.b16 %v2656
      %v2898 = vunpack.c.l.b16 %v2666
      %v2899 = vunpack.c.l.b16 %v2680
      %v2900 = vunpack.c.l.b16 %v2690
      %v2901 = vunpack.c.l.b16 %v2704
      %v2902 = vunpack.c.l.b16 %v2714
      %v2903 = vunpack.c.l.b16 %v2728
      %v2904 = vunpack.c.l.b16 %v2738
      %v2905 = vunpack.c.l.b16 %v2752
      %v2906 = vunpack.c.l.b16 %v2762
      %v2907 = vunpack.c.l.b16 %v2776
      %v2908 = vunpack.c.l.b16 %v2786
      %v2909 = vunpack.c.l.b16 %v2800
      %v2910 = vunpack.c.l.b16 %v2810
      %v2911 = vunpack.c.l.b16 %v2824
      %v2912 = vunpack.c.l.b16 %v2834
      %v2913 = vunpack.c.l.b16 %v2848
      %v2914 = vunpack.c.l.b16 %v2858
      %v2915 = vunpack.c.l.b16 %v2872
      %v2916 = vunpack.c.l.b16 %v2882
      %v2917 = vpack.c.b16 %v2886, %v2885
      %v2918 = vpack.c.b16 %v2888, %v2887
      %v2919 = vpack.c.b16 %v2890, %v2889
      %v2920 = vpack.c.b16 %v2892, %v2891
      %v2921 = vpack.c.b16 %v2894, %v2893
      %v2922 = vpack.c.b16 %v2896, %v2895
      %v2923 = vpack.c.b16 %v2898, %v2897
      %v2924 = vpack.c.b16 %v2900, %v2899
      %v2925 = vpack.c.b16 %v2902, %v2901
      %v2926 = vpack.c.b16 %v2904, %v2903
      %v2927 = vpack.c.b16 %v2906, %v2905
      %v2928 = vpack.c.b16 %v2908, %v2907
      %v2929 = vpack.c.b16 %v2910, %v2909
      %v2930 = vpack.c.b16 %v2912, %v2911
      %v2931 = vpack.c.b16 %v2914, %v2913
      %v2932 = vpack.c.b16 %v2916, %v2915
      %v2934 = vsel %vm356, %v2917, 0
      %v2937 = vsel %vm356, %v2918, 0
      %v2940 = vsel %vm356, %v2919, 0
      %v2943 = vsel %vm356, %v2920, 0
      %v2946 = vsel %vm356, %v2921, 0
      %v2949 = vsel %vm356, %v2922, 0
      %v2952 = vsel %vm356, %v2923, 0
      %v2955 = vsel %vm356, %v2924, 0
      %v2958 = vsel %vm356, %v2925, 0
      %v2961 = vsel %vm356, %v2926, 0
      %v2964 = vsel %vm356, %v2927, 0
      %v2967 = vsel %vm356, %v2928, 0
      %v2970 = vsel %vm356, %v2929, 0
      %v2973 = vsel %vm356, %v2930, 0
      %v2976 = vsel %vm356, %v2931, 0
      %v2979 = vsel %vm356, %v2932, 0
      %v2982 = vsel %vm405, %v2884, 0
      %2984 = vmatprep.subr.bf16.mxu0 0
      %2985 = vmatpush1.bf16.msra.mxu0 %v2982
      %2986 = vmatprep.subr.bf16.mxu0 0
      %2987 = vmatpush1.bf16.msra.mxu0 0
      %2988 = vmatprep.subr.bf16.mxu0 0
      %2989 = vmatpush1.bf16.msra.mxu0 0
      %2990 = vmatprep.subr.bf16.mxu0 0
      %2991 = vmatpush1.bf16.msra.mxu0 0
      %2992 = vmatprep.subr.bf16.mxu0 0
      %2993 = vmatpush1.bf16.msra.mxu0 0
      %2994 = vmatprep.subr.bf16.mxu0 0
      %2995 = vmatpush1.bf16.msra.mxu0 0
      %2996 = vmatprep.subr.bf16.mxu0 0
      %2997 = vmatpush1.bf16.msra.mxu0 0
      %2998 = vmatprep.subr.bf16.mxu0 0
      %2999 = vmatpush1.bf16.msra.mxu0 0
      %3000 = vmatprep.subr.bf16.mxu0 0
      %3001 = vmatpush1.bf16.msra.mxu0 0
      %3002 = vmatprep.subr.bf16.mxu0 0
      %3003 = vmatpush1.bf16.msra.mxu0 0
      %3004 = vmatprep.subr.bf16.mxu0 0
      %3005 = vmatpush1.bf16.msra.mxu0 0
      %3006 = vmatprep.subr.bf16.mxu0 0
      %3007 = vmatpush1.bf16.msra.mxu0 0
      %3008 = vmatprep.subr.bf16.mxu0 0
      %3009 = vmatpush1.bf16.msra.mxu0 0
      %3010 = vmatprep.subr.bf16.mxu0 0
      %3011 = vmatpush1.bf16.msra.mxu0 0
      %3012 = vmatprep.subr.bf16.mxu0 0
      %3013 = vmatpush1.bf16.msra.mxu0 0
      %3014 = vmatprep.subr.bf16.mxu0 0
      %3015 = vmatpush1.bf16.msra.mxu0 0
      %3016 = vmatprep.mubr.bf16.mxu0 0
      %3017 = vmatmul.mubr.bf16.gmra.mrb[0].mxu0 %v2934
      %v3018 = vpop.f32.mrb[0].mxu0
      %v3019 = vadd.f32 0.0, %v3018
      %v3020 = vpop.f32.mrb[0].mxu0
      %v3021 = vpop.f32.mrb[0].mxu0
      %v3022 = vadd.f32 0.0, %v3021
      %v3023 = vpop.f32.mrb[0].mxu0
      %3024 = vmatprep.mubr.bf16.mxu0 0
      %3025 = vmatmul.mubr.bf16.gmra.mrb[0].mxu0 %v2937
      %v3026 = vpop.f32.mrb[0].mxu0
      %v3027 = vadd.f32 0.0, %v3026
      %v3028 = vpop.f32.mrb[0].mxu0
      %v3029 = vpop.f32.mrb[0].mxu0
      %v3030 = vadd.f32 0.0, %v3029
      %v3031 = vpop.f32.mrb[0].mxu0
      %3032 = vmatprep.mubr.bf16.mxu0 0
      %3033 = vmatmul.mubr.bf16.gmra.mrb[0].mxu0 %v2940
      %v3034 = vpop.f32.mrb[0].mxu0
      %v3035 = vadd.f32 0.0, %v3034
      %v3036 = vpop.f32.mrb[0].mxu0
      %v3037 = vpop.f32.mrb[0].mxu0
      %v3038 = vadd.f32 0.0, %v3037
      %v3039 = vpop.f32.mrb[0].mxu0
      %3040 = vmatprep.mubr.bf16.mxu0 0
      %3041 = vmatmul.mubr.bf16.gmra.mrb[0].mxu0 %v2943
      %v3042 = vpop.f32.mrb[0].mxu0
      %v3043 = vadd.f32 0.0, %v3042
      %v3044 = vpop.f32.mrb[0].mxu0
      %v3045 = vpop.f32.mrb[0].mxu0
      %v3046 = vadd.f32 0.0, %v3045
      %v3047 = vpop.f32.mrb[0].mxu0
      %3048 = vmatprep.mubr.bf16.mxu0 0
      %3049 = vmatmul.mubr.bf16.gmra.mrb[0].mxu0 %v2946
      %v3050 = vpop.f32.mrb[0].mxu0
      %v3051 = vadd.f32 0.0, %v3050
      %v3052 = vpop.f32.mrb[0].mxu0
      %v3053 = vpop.f32.mrb[0].mxu0
      %v3054 = vadd.f32 0.0, %v3053
      %v3055 = vpop.f32.mrb[0].mxu0
      %3056 = vmatprep.mubr.bf16.mxu0 0
      %3057 = vmatmul.mubr.bf16.gmra.mrb[0].mxu0 %v2949
      %v3058 = vpop.f32.mrb[0].mxu0
      %v3059 = vadd.f32 0.0, %v3058
      %v3060 = vpop.f32.mrb[0].mxu0
      %v3061 = vpop.f32.mrb[0].mxu0
      %v3062 = vadd.f32 0.0, %v3061
      %v3063 = vpop.f32.mrb[0].mxu0
      %3064 = vmatprep.mubr.bf16.mxu0 0
      %3065 = vmatmul.mubr.bf16.gmra.mrb[0].mxu0 %v2952
      %v3066 = vpop.f32.mrb[0].mxu0
      %v3067 = vadd.f32 0.0, %v3066
      %v3068 = vpop.f32.mrb[0].mxu0
      %v3069 = vpop.f32.mrb[0].mxu0
      %v3070 = vadd.f32 0.0, %v3069
      %v3071 = vpop.f32.mrb[0].mxu0
      %3072 = vmatprep.mubr.bf16.mxu0 0
      %3073 = vmatmul.mubr.bf16.gmra.mrb[0].mxu0 %v2955
      %v3074 = vpop.f32.mrb[0].mxu0
      %v3075 = vadd.f32 0.0, %v3074
      %v3076 = vpop.f32.mrb[0].mxu0
      %v3077 = vpop.f32.mrb[0].mxu0
      %v3078 = vadd.f32 0.0, %v3077
      %v3079 = vpop.f32.mrb[0].mxu0
      %3080 = vmatprep.mubr.bf16.mxu0 0
      %3081 = vmatmul.mubr.bf16.gmra.mrb[0].mxu0 %v2958
      %v3082 = vpop.f32.mrb[0].mxu0
      %v3083 = vadd.f32 0.0, %v3082
      %v3084 = vpop.f32.mrb[0].mxu0
      %v3085 = vpop.f32.mrb[0].mxu0
      %v3086 = vadd.f32 0.0, %v3085
      %v3087 = vpop.f32.mrb[0].mxu0
      %3088 = vmatprep.mubr.bf16.mxu0 0
      %3089 = vmatmul.mubr.bf16.gmra.mrb[0].mxu0 %v2961
      %v3090 = vpop.f32.mrb[0].mxu0
      %v3091 = vadd.f32 0.0, %v3090
      %v3092 = vpop.f32.mrb[0].mxu0
      %v3093 = vpop.f32.mrb[0].mxu0
      %v3094 = vadd.f32 0.0, %v3093
      %v3095 = vpop.f32.mrb[0].mxu0
      %3096 = vmatprep.mubr.bf16.mxu0 0
      %3097 = vmatmul.mubr.bf16.gmra.mrb[0].mxu0 %v2964
      %v3098 = vpop.f32.mrb[0].mxu0
      %v3099 = vadd.f32 0.0, %v3098
      %v3100 = vpop.f32.mrb[0].mxu0
      %v3101 = vpop.f32.mrb[0].mxu0
      %v3102 = vadd.f32 0.0, %v3101
      %v3103 = vpop.f32.mrb[0].mxu0
      %3104 = vmatprep.mubr.bf16.mxu0 0
      %3105 = vmatmul.mubr.bf16.gmra.mrb[0].mxu0 %v2967
      %v3106 = vpop.f32.mrb[0].mxu0
      %v3107 = vadd.f32 0.0, %v3106
      %v3108 = vpop.f32.mrb[0].mxu0
      %v3109 = vpop.f32.mrb[0].mxu0
      %v3110 = vadd.f32 0.0, %v3109
      %v3111 = vpop.f32.mrb[0].mxu0
      %3112 = vmatprep.mubr.bf16.mxu0 0
      %3113 = vmatmul.mubr.bf16.gmra.mrb[0].mxu0 %v2970
      %v3114 = vpop.f32.mrb[0].mxu0
      %v3115 = vadd.f32 0.0, %v3114
      %v3116 = vpop.f32.mrb[0].mxu0
      %v3117 = vpop.f32.mrb[0].mxu0
      %v3118 = vadd.f32 0.0, %v3117
      %v3119 = vpop.f32.mrb[0].mxu0
      %3120 = vmatprep.mubr.bf16.mxu0 0
      %3121 = vmatmul.mubr.bf16.gmra.mrb[0].mxu0 %v2973
      %v3122 = vpop.f32.mrb[0].mxu0
      %v3123 = vadd.f32 0.0, %v3122
      %v3124 = vpop.f32.mrb[0].mxu0
      %v3125 = vpop.f32.mrb[0].mxu0
      %v3126 = vadd.f32 0.0, %v3125
      %v3127 = vpop.f32.mrb[0].mxu0
      %3128 = vmatprep.mubr.bf16.mxu0 0
      %3129 = vmatmul.mubr.bf16.gmra.mrb[0].mxu0 %v2976
      %v3130 = vpop.f32.mrb[0].mxu0
      %v3131 = vadd.f32 0.0, %v3130
      %v3132 = vpop.f32.mrb[0].mxu0
      %v3133 = vpop.f32.mrb[0].mxu0
      %v3134 = vadd.f32 0.0, %v3133
      %v3135 = vpop.f32.mrb[0].mxu0
      %3136 = vmatprep.mubr.bf16.mxu0 0
      %3137 = vmatmul.mubr.bf16.gmra.mrb[0].mxu0 %v2979
      %v3138 = vpop.f32.mrb[0].mxu0
      %v3139 = vadd.f32 0.0, %v3138
      %v3140 = vpop.f32.mrb[0].mxu0
      %v3141 = vpop.f32.mrb[0].mxu0
      %v3142 = vadd.f32 0.0, %v3141
      %v3143 = vpop.f32.mrb[0].mxu0
      %3144 = vdwg.mxu0
      %v3145 = vadd.f32 %v2467, %v3019
      %v3146 = vadd.f32 %v2468, %v3022
      %v3147 = vadd.f32 %v2469, %v3027
      %v3148 = vadd.f32 %v2470, %v3030
      %v3149 = vadd.f32 %v2471, %v3035
      %v3150 = vadd.f32 %v2472, %v3038
      %v3151 = vadd.f32 %v2473, %v3043
      %v3152 = vadd.f32 %v2474, %v3046
      %v3153 = vadd.f32 %v2475, %v3051
      %v3154 = vadd.f32 %v2476, %v3054
      %v3155 = vadd.f32 %v2477, %v3059
      %v3156 = vadd.f32 %v2478, %v3062
      %v3157 = vadd.f32 %v2479, %v3067
      %v3158 = vadd.f32 %v2480, %v3070
      %v3159 = vadd.f32 %v2481, %v3075
      %v3160 = vadd.f32 %v2482, %v3078
      %v3161 = vadd.f32 %v2483, %v3083
      %v3162 = vadd.f32 %v2484, %v3086
      %v3163 = vadd.f32 %v2485, %v3091
      %v3164 = vadd.f32 %v2486, %v3094
      %v3165 = vadd.f32 %v2487, %v3099
      %v3166 = vadd.f32 %v2488, %v3102
      %v3167 = vadd.f32 %v2489, %v3107
      %v3168 = vadd.f32 %v2490, %v3110
      %v3169 = vadd.f32 %v2491, %v3115
      %v3170 = vadd.f32 %v2492, %v3118
      %v3171 = vadd.f32 %v2493, %v3123
      %v3172 = vadd.f32 %v2494, %v3126
      %v3173 = vadd.f32 %v2495, %v3131
      %v3174 = vadd.f32 %v2496, %v3134
      %v3175 = vadd.f32 %v2497, %v3139
      %v3176 = vadd.f32 %v2498, %v3142
      %3177 = vst [vmem:[%s170] sm:$0xff] %v3145
      %3178 = vst [vmem:[%s170 + $0x8] sm:$0xff] %v3146
      %3179 = vst [vmem:[%s170 + $0x10] sm:$0xff] %v3147
      %3180 = vst [vmem:[%s170 + $0x18] sm:$0xff] %v3148
      %3181 = vst [vmem:[%s170 + $0x20] sm:$0xff] %v3149
      %3182 = vst [vmem:[%s170 + $0x28] sm:$0xff] %v3150
      %3183 = vst [vmem:[%s170 + $0x30] sm:$0xff] %v3151
      %3184 = vst [vmem:[%s170 + $0x38] sm:$0xff] %v3152
      %3185 = vst [vmem:[%s170 + $0x40] sm:$0xff] %v3153
      %3186 = vst [vmem:[%s170 + $0x48] sm:$0xff] %v3154
      %3187 = vst [vmem:[%s170 + $0x50] sm:$0xff] %v3155
      %3188 = vst [vmem:[%s170 + $0x58] sm:$0xff] %v3156
      %3189 = vst [vmem:[%s170 + $0x60] sm:$0xff] %v3157
      %3190 = vst [vmem:[%s170 + $0x68] sm:$0xff] %v3158
      %3191 = vst [vmem:[%s170 + $0x70] sm:$0xff] %v3159
      %3192 = vst [vmem:[%s170 + $0x78] sm:$0xff] %v3160
      %3193 = vst [vmem:[%s170 + $0x80] sm:$0xff] %v3161
      %3194 = vst [vmem:[%s170 + $0x88] sm:$0xff] %v3162
      %3195 = vst [vmem:[%s170 + $0x90] sm:$0xff] %v3163
      %3196 = vst [vmem:[%s170 + $0x98] sm:$0xff] %v3164
      %3197 = vst [vmem:[%s170 + $0xa0] sm:$0xff] %v3165
      %3198 = vst [vmem:[%s170 + $0xa8] sm:$0xff] %v3166
      %3199 = vst [vmem:[%s170 + $0xb0] sm:$0xff] %v3167
      %3200 = vst [vmem:[%s170 + $0xb8] sm:$0xff] %v3168
      %3201 = vst [vmem:[%s170 + $0xc0] sm:$0xff] %v3169
      %3202 = vst [vmem:[%s170 + $0xc8] sm:$0xff] %v3170
      %3203 = vst [vmem:[%s170 + $0xd0] sm:$0xff] %v3171
      %3204 = vst [vmem:[%s170 + $0xd8] sm:$0xff] %v3172
      %3205 = vst [vmem:[%s170 + $0xe0] sm:$0xff] %v3173
      %3206 = vst [vmem:[%s170 + $0xe8] sm:$0xff] %v3174
      %3207 = vst [vmem:[%s170 + $0xf0] sm:$0xff] %v3175
      %3208 = vst [vmem:[%s170 + $0xf8] sm:$0xff] %v3176
      %v3209 = vld [vmem:[%s1996] sm:$0xe]
      %v3210 = vld [vmem:[%s1996 + $0x4] sm:$0xf]
      %v3211 = vld [vmem:[%s1996 + $0x8] sm:$0x1]
      %v3212 = vld [vmem:[%s1996 + $0xc] sm:$0xe]
      %v3213 = vld [vmem:[%s1996 + $0x10] sm:$0xf]
      %v3214 = vld [vmem:[%s1996 + $0x14] sm:$0x1]
      %v3215 = vld [vmem:[%s1996 + $0x18] sm:$0xe]
      %v3216 = vld [vmem:[%s1996 + $0x1c] sm:$0xf]
      %v3217 = vld [vmem:[%s1996 + $0x20] sm:$0x1]
      %v3218 = vld [vmem:[%s1996 + $0x24] sm:$0xe]
      %v3219 = vld [vmem:[%s1996 + $0x28] sm:$0xf]
      %v3220 = vld [vmem:[%s1996 + $0x2c] sm:$0x1]
      %v3221 = vld [vmem:[%s1996 + $0x30] sm:$0xe]
      %v3222 = vld [vmem:[%s1996 + $0x34] sm:$0xf]
      %v3223 = vld [vmem:[%s1996 + $0x38] sm:$0x1]
      %v3224 = vld [vmem:[%s1996 + $0x3c] sm:$0xe]
      %v3225 = vld [vmem:[%s1996 + $0x40] sm:$0xf]
      %v3226 = vld [vmem:[%s1996 + $0x44] sm:$0x1]
      %v3227 = vld [vmem:[%s1996 + $0x48] sm:$0xe]
      %v3228 = vld [vmem:[%s1996 + $0x4c] sm:$0xf]
      %v3229 = vld [vmem:[%s1996 + $0x50] sm:$0x1]
      %v3230 = vld [vmem:[%s1996 + $0x54] sm:$0xe]
      %v3231 = vld [vmem:[%s1996 + $0x58] sm:$0xf]
      %v3232 = vld [vmem:[%s1996 + $0x5c] sm:$0x1]
      %v3233 = vld [vmem:[%s1996 + $0x60] sm:$0xe]
      %v3234 = vld [vmem:[%s1996 + $0x64] sm:$0xf]
      %v3235 = vld [vmem:[%s1996 + $0x68] sm:$0x1]
      %v3236 = vld [vmem:[%s1996 + $0x6c] sm:$0xe]
      %v3237 = vld [vmem:[%s1996 + $0x70] sm:$0xf]
      %v3238 = vld [vmem:[%s1996 + $0x74] sm:$0x1]
      %v3239 = vld [vmem:[%s1996 + $0x78] sm:$0xe]
      %v3240 = vld [vmem:[%s1996 + $0x7c] sm:$0xf]
      %v3241 = vld [vmem:[%s1996 + $0x80] sm:$0x1]
      %v3242 = vld [vmem:[%s1996 + $0x84] sm:$0xe]
      %v3243 = vld [vmem:[%s1996 + $0x88] sm:$0xf]
      %v3244 = vld [vmem:[%s1996 + $0x8c] sm:$0x1]
      %v3245 = vld [vmem:[%s1996 + $0x90] sm:$0xe]
      %v3246 = vld [vmem:[%s1996 + $0x94] sm:$0xf]
      %v3247 = vld [vmem:[%s1996 + $0x98] sm:$0x1]
      %v3248 = vld [vmem:[%s1996 + $0x9c] sm:$0xe]
      %v3249 = vld [vmem:[%s1996 + $0xa0] sm:$0xf]
      %v3250 = vld [vmem:[%s1996 + $0xa4] sm:$0x1]
      %v3251 = vld [vmem:[%s1996 + $0xa8] sm:$0xe]
      %v3252 = vld [vmem:[%s1996 + $0xac] sm:$0xf]
      %v3253 = vld [vmem:[%s1996 + $0xb0] sm:$0x1]
      %v3254 = vld [vmem:[%s1996 + $0xb4] sm:$0xe]
      %v3255 = vld [vmem:[%s1996 + $0xb8] sm:$0xf]
      %v3256 = vld [vmem:[%s1996 + $0xbc] sm:$0x1]
      %v3257 = vld [vmem:[%s170] sm:$0xff]
      %v3258 = vld [vmem:[%s170 + $0x8] sm:$0xff]
      %v3259 = vld [vmem:[%s170 + $0x10] sm:$0xff]
      %v3260 = vld [vmem:[%s170 + $0x18] sm:$0xff]
      %v3261 = vld [vmem:[%s170 + $0x20] sm:$0xff]
      %v3262 = vld [vmem:[%s170 + $0x28] sm:$0xff]
      %v3263 = vld [vmem:[%s170 + $0x30] sm:$0xff]
      %v3264 = vld [vmem:[%s170 + $0x38] sm:$0xff]
      %v3265 = vld [vmem:[%s170 + $0x40] sm:$0xff]
      %v3266 = vld [vmem:[%s170 + $0x48] sm:$0xff]
      %v3267 = vld [vmem:[%s170 + $0x50] sm:$0xff]
      %v3268 = vld [vmem:[%s170 + $0x58] sm:$0xff]
      %v3269 = vld [vmem:[%s170 + $0x60] sm:$0xff]
      %v3270 = vld [vmem:[%s170 + $0x68] sm:$0xff]
      %v3271 = vld [vmem:[%s170 + $0x70] sm:$0xff]
      %v3272 = vld [vmem:[%s170 + $0x78] sm:$0xff]
      %v3273 = vld [vmem:[%s170 + $0x80] sm:$0xff]
      %v3274 = vld [vmem:[%s170 + $0x88] sm:$0xff]
      %v3275 = vld [vmem:[%s170 + $0x90] sm:$0xff]
      %v3276 = vld [vmem:[%s170 + $0x98] sm:$0xff]
      %v3277 = vld [vmem:[%s170 + $0xa0] sm:$0xff]
      %v3278 = vld [vmem:[%s170 + $0xa8] sm:$0xff]
      %v3279 = vld [vmem:[%s170 + $0xb0] sm:$0xff]
      %v3280 = vld [vmem:[%s170 + $0xb8] sm:$0xff]
      %v3281 = vld [vmem:[%s170 + $0xc0] sm:$0xff]
      %v3282 = vld [vmem:[%s170 + $0xc8] sm:$0xff]
      %v3283 = vld [vmem:[%s170 + $0xd0] sm:$0xff]
      %v3284 = vld [vmem:[%s170 + $0xd8] sm:$0xff]
      %v3285 = vld [vmem:[%s170 + $0xe0] sm:$0xff]
      %v3286 = vld [vmem:[%s170 + $0xe8] sm:$0xff]
      %v3287 = vld [vmem:[%s170 + $0xf0] sm:$0xff]
      %v3288 = vld [vmem:[%s170 + $0xf8] sm:$0xff]
      %v3337 = vrot.slane %v3209, 5
      %v3338 = vrot.slane %v3337, 4
      %v3339 = vrot.slane %v3210, 5
      %v3340 = vsel %vm1557, %v3338, %v3339
      %v3341 = vrot.slane %v3339, 4
      %v3342 = vrot.slane %v3211, 5
      %v3343 = vsel %vm1557, %v3341, %v3342
      %v3344 = vrot.slane %v3212, 5
      %v3345 = vrot.slane %v3344, 4
      %v3346 = vrot.slane %v3213, 5
      %v3347 = vsel %vm1557, %v3345, %v3346
      %v3348 = vrot.slane %v3346, 4
      %v3349 = vrot.slane %v3214, 5
      %v3350 = vsel %vm1557, %v3348, %v3349
      %v3351 = vrot.slane %v3215, 5
      %v3352 = vrot.slane %v3351, 4
      %v3353 = vrot.slane %v3216, 5
      %v3354 = vsel %vm1557, %v3352, %v3353
      %v3355 = vrot.slane %v3353, 4
      %v3356 = vrot.slane %v3217, 5
      %v3357 = vsel %vm1557, %v3355, %v3356
      %v3358 = vrot.slane %v3218, 5
      %v3359 = vrot.slane %v3358, 4
      %v3360 = vrot.slane %v3219, 5
      %v3361 = vsel %vm1557, %v3359, %v3360
      %v3362 = vrot.slane %v3360, 4
      %v3363 = vrot.slane %v3220, 5
      %v3364 = vsel %vm1557, %v3362, %v3363
      %v3365 = vrot.slane %v3221, 5
      %v3366 = vrot.slane %v3365, 4
      %v3367 = vrot.slane %v3222, 5
      %v3368 = vsel %vm1557, %v3366, %v3367
      %v3369 = vrot.slane %v3367, 4
      %v3370 = vrot.slane %v3223, 5
      %v3371 = vsel %vm1557, %v3369, %v3370
      %v3372 = vrot.slane %v3224, 5
      %v3373 = vrot.slane %v3372, 4
      %v3374 = vrot.slane %v3225, 5
      %v3375 = vsel %vm1557, %v3373, %v3374
      %v3376 = vrot.slane %v3374, 4
      %v3377 = vrot.slane %v3226, 5
      %v3378 = vsel %vm1557, %v3376, %v3377
      %v3379 = vrot.slane %v3227, 5
      %v3380 = vrot.slane %v3379, 4
      %v3381 = vrot.slane %v3228, 5
      %v3382 = vsel %vm1557, %v3380, %v3381
      %v3383 = vrot.slane %v3381, 4
      %v3384 = vrot.slane %v3229, 5
      %v3385 = vsel %vm1557, %v3383, %v3384
      %v3386 = vrot.slane %v3230, 5
      %v3387 = vrot.slane %v3386, 4
      %v3388 = vrot.slane %v3231, 5
      %v3389 = vsel %vm1557, %v3387, %v3388
      %v3390 = vrot.slane %v3388, 4
      %v3391 = vrot.slane %v3232, 5
      %v3392 = vsel %vm1557, %v3390, %v3391
      %v3393 = vrot.slane %v3233, 5
      %v3394 = vrot.slane %v3393, 4
      %v3395 = vrot.slane %v3234, 5
      %v3396 = vsel %vm1557, %v3394, %v3395
      %v3397 = vrot.slane %v3395, 4
      %v3398 = vrot.slane %v3235, 5
      %v3399 = vsel %vm1557, %v3397, %v3398
      %v3400 = vrot.slane %v3236, 5
      %v3401 = vrot.slane %v3400, 4
      %v3402 = vrot.slane %v3237, 5
      %v3403 = vsel %vm1557, %v3401, %v3402
      %v3404 = vrot.slane %v3402, 4
      %v3405 = vrot.slane %v3238, 5
      %v3406 = vsel %vm1557, %v3404, %v3405
      %v3407 = vrot.slane %v3239, 5
      %v3408 = vrot.slane %v3407, 4
      %v3409 = vrot.slane %v3240, 5
      %v3410 = vsel %vm1557, %v3408, %v3409
      %v3411 = vrot.slane %v3409, 4
      %v3412 = vrot.slane %v3241, 5
      %v3413 = vsel %vm1557, %v3411, %v3412
      %v3414 = vrot.slane %v3242, 5
      %v3415 = vrot.slane %v3414, 4
      %v3416 = vrot.slane %v3243, 5
      %v3417 = vsel %vm1557, %v3415, %v3416
      %v3418 = vrot.slane %v3416, 4
      %v3419 = vrot.slane %v3244, 5
      %v3420 = vsel %vm1557, %v3418, %v3419
      %v3421 = vrot.slane %v3245, 5
      %v3422 = vrot.slane %v3421, 4
      %v3423 = vrot.slane %v3246, 5
      %v3424 = vsel %vm1557, %v3422, %v3423
      %v3425 = vrot.slane %v3423, 4
      %v3426 = vrot.slane %v3247, 5
      %v3427 = vsel %vm1557, %v3425, %v3426
      %v3428 = vrot.slane %v3248, 5
      %v3429 = vrot.slane %v3428, 4
      %v3430 = vrot.slane %v3249, 5
      %v3431 = vsel %vm1557, %v3429, %v3430
      %v3432 = vrot.slane %v3430, 4
      %v3433 = vrot.slane %v3250, 5
      %v3434 = vsel %vm1557, %v3432, %v3433
      %v3435 = vrot.slane %v3251, 5
      %v3436 = vrot.slane %v3435, 4
      %v3437 = vrot.slane %v3252, 5
      %v3438 = vsel %vm1557, %v3436, %v3437
      %v3439 = vrot.slane %v3437, 4
      %v3440 = vrot.slane %v3253, 5
      %v3441 = vsel %vm1557, %v3439, %v3440
      %v3442 = vrot.slane %v3254, 5
      %v3443 = vrot.slane %v3442, 4
      %v3444 = vrot.slane %v3255, 5
      %v3445 = vsel %vm1557, %v3443, %v3444
      %v3446 = vrot.slane %v3444, 4
      %v3447 = vrot.slane %v3256, 5
      %v3448 = vsel %vm1557, %v3446, %v3447
      %s3449 = scalar_lea.vmem %s1, 10
      %v3450 = vld [vmem:[%s3449] sm:$0x3]
      %v3451 = vunpack.c.l.b16 %v3340
      %v3452 = vunpack.c.l.b16 %v3343
      %v3453 = vunpack.c.l.b16 %v3347
      %v3454 = vunpack.c.l.b16 %v3350
      %v3455 = vunpack.c.l.b16 %v3354
      %v3456 = vunpack.c.l.b16 %v3357
      %v3457 = vunpack.c.l.b16 %v3361
      %v3458 = vunpack.c.l.b16 %v3364
      %v3459 = vunpack.c.l.b16 %v3368
      %v3460 = vunpack.c.l.b16 %v3371
      %v3461 = vunpack.c.l.b16 %v3375
      %v3462 = vunpack.c.l.b16 %v3378
      %v3463 = vunpack.c.l.b16 %v3382
      %v3464 = vunpack.c.l.b16 %v3385
      %v3465 = vunpack.c.l.b16 %v3389
      %v3466 = vunpack.c.l.b16 %v3392
      %v3467 = vunpack.c.l.b16 %v3396
      %v3468 = vunpack.c.l.b16 %v3399
      %v3469 = vunpack.c.l.b16 %v3403
      %v3470 = vunpack.c.l.b16 %v3406
      %v3471 = vunpack.c.l.b16 %v3410
      %v3472 = vunpack.c.l.b16 %v3413
      %v3473 = vunpack.c.l.b16 %v3417
      %v3474 = vunpack.c.l.b16 %v3420
      %v3475 = vunpack.c.l.b16 %v3424
      %v3476 = vunpack.c.l.b16 %v3427
      %v3477 = vunpack.c.l.b16 %v3431
      %v3478 = vunpack.c.l.b16 %v3434
      %v3479 = vunpack.c.l.b16 %v3438
      %v3480 = vunpack.c.l.b16 %v3441
      %v3481 = vunpack.c.l.b16 %v3445
      %v3482 = vunpack.c.l.b16 %v3448
      %v3483 = vpack.c.b16 %v3452, %v3451
      %v3484 = vpack.c.b16 %v3454, %v3453
      %v3485 = vpack.c.b16 %v3456, %v3455
      %v3486 = vpack.c.b16 %v3458, %v3457
      %v3487 = vpack.c.b16 %v3460, %v3459
      %v3488 = vpack.c.b16 %v3462, %v3461
      %v3489 = vpack.c.b16 %v3464, %v3463
      %v3490 = vpack.c.b16 %v3466, %v3465
      %v3491 = vpack.c.b16 %v3468, %v3467
      %v3492 = vpack.c.b16 %v3470, %v3469
      %v3493 = vpack.c.b16 %v3472, %v3471
      %v3494 = vpack.c.b16 %v3474, %v3473
      %v3495 = vpack.c.b16 %v3476, %v3475
      %v3496 = vpack.c.b16 %v3478, %v3477
      %v3497 = vpack.c.b16 %v3480, %v3479
      %v3498 = vpack.c.b16 %v3482, %v3481
      %v3500 = vsel %vm356, %v3483, 0
      %v3503 = vsel %vm356, %v3484, 0
      %v3506 = vsel %vm356, %v3485, 0
      %v3509 = vsel %vm356, %v3486, 0
      %v3512 = vsel %vm356, %v3487, 0
      %v3515 = vsel %vm356, %v3488, 0
      %v3518 = vsel %vm356, %v3489, 0
      %v3521 = vsel %vm356, %v3490, 0
      %v3524 = vsel %vm356, %v3491, 0
      %v3527 = vsel %vm356, %v3492, 0
      %v3530 = vsel %vm356, %v3493, 0
      %v3533 = vsel %vm356, %v3494, 0
      %v3536 = vsel %vm356, %v3495, 0
      %v3539 = vsel %vm356, %v3496, 0
      %v3542 = vsel %vm356, %v3497, 0
      %v3545 = vsel %vm356, %v3498, 0
      %v3548 = vsel %vm405, %v3450, 0
      %3550 = vmatprep.subr.bf16.mxu0 0
      %3551 = vmatpush1.bf16.msra.mxu0 %v3548
      %3552 = vmatprep.subr.bf16.mxu0 0
      %3553 = vmatpush1.bf16.msra.mxu0 0
      %3554 = vmatprep.subr.bf16.mxu0 0
      %3555 = vmatpush1.bf16.msra.mxu0 0
      %3556 = vmatprep.subr.bf16.mxu0 0
      %3557 = vmatpush1.bf16.msra.mxu0 0
      %3558 = vmatprep.subr.bf16.mxu0 0
      %3559 = vmatpush1.bf16.msra.mxu0 0
      %3560 = vmatprep.subr.bf16.mxu0 0
      %3561 = vmatpush1.bf16.msra.mxu0 0
      %3562 = vmatprep.subr.bf16.mxu0 0
      %3563 = vmatpush1.bf16.msra.mxu0 0
      %3564 = vmatprep.subr.bf16.mxu0 0
      %3565 = vmatpush1.bf16.msra.mxu0 0
      %3566 = vmatprep.subr.bf16.mxu0 0
      %3567 = vmatpush1.bf16.msra.mxu0 0
      %3568 = vmatprep.subr.bf16.mxu0 0
      %3569 = vmatpush1.bf16.msra.mxu0 0
      %3570 = vmatprep.subr.bf16.mxu0 0
      %3571 = vmatpush1.bf16.msra.mxu0 0
      %3572 = vmatprep.subr.bf16.mxu0 0
      %3573 = vmatpush1.bf16.msra.mxu0 0
      %3574 = vmatprep.subr.bf16.mxu0 0
      %3575 = vmatpush1.bf16.msra.mxu0 0
      %3576 = vmatprep.subr.bf16.mxu0 0
      %3577 = vmatpush1.bf16.msra.mxu0 0
      %3578 = vmatprep.subr.bf16.mxu0 0
      %3579 = vmatpush1.bf16.msra.mxu0 0
      %3580 = vmatprep.subr.bf16.mxu0 0
      %3581 = vmatpush1.bf16.msra.mxu0 0
      %3582 = vmatprep.mubr.bf16.mxu0 0
      %3583 = vmatmul.mubr.bf16.gmra.mrb[0].mxu0 %v3500
      %v3584 = vpop.f32.mrb[0].mxu0
      %v3585 = vadd.f32 0.0, %v3584
      %v3586 = vpop.f32.mrb[0].mxu0
      %v3587 = vpop.f32.mrb[0].mxu0
      %v3588 = vadd.f32 0.0, %v3587
      %v3589 = vpop.f32.mrb[0].mxu0
      %3590 = vmatprep.mubr.bf16.mxu0 0
      %3591 = vmatmul.mubr.bf16.gmra.mrb[0].mxu0 %v3503
      %v3592 = vpop.f32.mrb[0].mxu0
      %v3593 = vadd.f32 0.0, %v3592
      %v3594 = vpop.f32.mrb[0].mxu0
      %v3595 = vpop.f32.mrb[0].mxu0
      %v3596 = vadd.f32 0.0, %v3595
      %v3597 = vpop.f32.mrb[0].mxu0
      %3598 = vmatprep.mubr.bf16.mxu0 0
      %3599 = vmatmul.mubr.bf16.gmra.mrb[0].mxu0 %v3506
      %v3600 = vpop.f32.mrb[0].mxu0
      %v3601 = vadd.f32 0.0, %v3600
      %v3602 = vpop.f32.mrb[0].mxu0
      %v3603 = vpop.f32.mrb[0].mxu0
      %v3604 = vadd.f32 0.0, %v3603
      %v3605 = vpop.f32.mrb[0].mxu0
      %3606 = vmatprep.mubr.bf16.mxu0 0
      %3607 = vmatmul.mubr.bf16.gmra.mrb[0].mxu0 %v3509
      %v3608 = vpop.f32.mrb[0].mxu0
      %v3609 = vadd.f32 0.0, %v3608
      %v3610 = vpop.f32.mrb[0].mxu0
      %v3611 = vpop.f32.mrb[0].mxu0
      %v3612 = vadd.f32 0.0, %v3611
      %v3613 = vpop.f32.mrb[0].mxu0
      %3614 = vmatprep.mubr.bf16.mxu0 0
      %3615 = vmatmul.mubr.bf16.gmra.mrb[0].mxu0 %v3512
      %v3616 = vpop.f32.mrb[0].mxu0
      %v3617 = vadd.f32 0.0, %v3616
      %v3618 = vpop.f32.mrb[0].mxu0
      %v3619 = vpop.f32.mrb[0].mxu0
      %v3620 = vadd.f32 0.0, %v3619
      %v3621 = vpop.f32.mrb[0].mxu0
      %3622 = vmatprep.mubr.bf16.mxu0 0
      %3623 = vmatmul.mubr.bf16.gmra.mrb[0].mxu0 %v3515
      %v3624 = vpop.f32.mrb[0].mxu0
      %v3625 = vadd.f32 0.0, %v3624
      %v3626 = vpop.f32.mrb[0].mxu0
      %v3627 = vpop.f32.mrb[0].mxu0
      %v3628 = vadd.f32 0.0, %v3627
      %v3629 = vpop.f32.mrb[0].mxu0
      %3630 = vmatprep.mubr.bf16.mxu0 0
      %3631 = vmatmul.mubr.bf16.gmra.mrb[0].mxu0 %v3518
      %v3632 = vpop.f32.mrb[0].mxu0
      %v3633 = vadd.f32 0.0, %v3632
      %v3634 = vpop.f32.mrb[0].mxu0
      %v3635 = vpop.f32.mrb[0].mxu0
      %v3636 = vadd.f32 0.0, %v3635
      %v3637 = vpop.f32.mrb[0].mxu0
      %3638 = vmatprep.mubr.bf16.mxu0 0
      %3639 = vmatmul.mubr.bf16.gmra.mrb[0].mxu0 %v3521
      %v3640 = vpop.f32.mrb[0].mxu0
      %v3641 = vadd.f32 0.0, %v3640
      %v3642 = vpop.f32.mrb[0].mxu0
      %v3643 = vpop.f32.mrb[0].mxu0
      %v3644 = vadd.f32 0.0, %v3643
      %v3645 = vpop.f32.mrb[0].mxu0
      %3646 = vmatprep.mubr.bf16.mxu0 0
      %3647 = vmatmul.mubr.bf16.gmra.mrb[0].mxu0 %v3524
      %v3648 = vpop.f32.mrb[0].mxu0
      %v3649 = vadd.f32 0.0, %v3648
      %v3650 = vpop.f32.mrb[0].mxu0
      %v3651 = vpop.f32.mrb[0].mxu0
      %v3652 = vadd.f32 0.0, %v3651
      %v3653 = vpop.f32.mrb[0].mxu0
      %3654 = vmatprep.mubr.bf16.mxu0 0
      %3655 = vmatmul.mubr.bf16.gmra.mrb[0].mxu0 %v3527
      %v3656 = vpop.f32.mrb[0].mxu0
      %v3657 = vadd.f32 0.0, %v3656
      %v3658 = vpop.f32.mrb[0].mxu0
      %v3659 = vpop.f32.mrb[0].mxu0
      %v3660 = vadd.f32 0.0, %v3659
      %v3661 = vpop.f32.mrb[0].mxu0
      %3662 = vmatprep.mubr.bf16.mxu0 0
      %3663 = vmatmul.mubr.bf16.gmra.mrb[0].mxu0 %v3530
      %v3664 = vpop.f32.mrb[0].mxu0
      %v3665 = vadd.f32 0.0, %v3664
      %v3666 = vpop.f32.mrb[0].mxu0
      %v3667 = vpop.f32.mrb[0].mxu0
      %v3668 = vadd.f32 0.0, %v3667
      %v3669 = vpop.f32.mrb[0].mxu0
      %3670 = vmatprep.mubr.bf16.mxu0 0
      %3671 = vmatmul.mubr.bf16.gmra.mrb[0].mxu0 %v3533
      %v3672 = vpop.f32.mrb[0].mxu0
      %v3673 = vadd.f32 0.0, %v3672
      %v3674 = vpop.f32.mrb[0].mxu0
      %v3675 = vpop.f32.mrb[0].mxu0
      %v3676 = vadd.f32 0.0, %v3675
      %v3677 = vpop.f32.mrb[0].mxu0
      %3678 = vmatprep.mubr.bf16.mxu0 0
      %3679 = vmatmul.mubr.bf16.gmra.mrb[0].mxu0 %v3536
      %v3680 = vpop.f32.mrb[0].mxu0
      %v3681 = vadd.f32 0.0, %v3680
      %v3682 = vpop.f32.mrb[0].mxu0
      %v3683 = vpop.f32.mrb[0].mxu0
      %v3684 = vadd.f32 0.0, %v3683
      %v3685 = vpop.f32.mrb[0].mxu0
      %3686 = vmatprep.mubr.bf16.mxu0 0
      %3687 = vmatmul.mubr.bf16.gmra.mrb[0].mxu0 %v3539
      %v3688 = vpop.f32.mrb[0].mxu0
      %v3689 = vadd.f32 0.0, %v3688
      %v3690 = vpop.f32.mrb[0].mxu0
      %v3691 = vpop.f32.mrb[0].mxu0
      %v3692 = vadd.f32 0.0, %v3691
      %v3693 = vpop.f32.mrb[0].mxu0
      %3694 = vmatprep.mubr.bf16.mxu0 0
      %3695 = vmatmul.mubr.bf16.gmra.mrb[0].mxu0 %v3542
      %v3696 = vpop.f32.mrb[0].mxu0
      %v3697 = vadd.f32 0.0, %v3696
      %v3698 = vpop.f32.mrb[0].mxu0
      %v3699 = vpop.f32.mrb[0].mxu0
      %v3700 = vadd.f32 0.0, %v3699
      %v3701 = vpop.f32.mrb[0].mxu0
      %3702 = vmatprep.mubr.bf16.mxu0 0
      %3703 = vmatmul.mubr.bf16.gmra.mrb[0].mxu0 %v3545
      %v3704 = vpop.f32.mrb[0].mxu0
      %v3705 = vadd.f32 0.0, %v3704
      %v3706 = vpop.f32.mrb[0].mxu0
      %v3707 = vpop.f32.mrb[0].mxu0
      %v3708 = vadd.f32 0.0, %v3707
      %v3709 = vpop.f32.mrb[0].mxu0
      %3710 = vdwg.mxu0
      %v3711 = vadd.f32 %v3257, %v3585
      %v3712 = vadd.f32 %v3258, %v3588
      %v3713 = vadd.f32 %v3259, %v3593
      %v3714 = vadd.f32 %v3260, %v3596
      %v3715 = vadd.f32 %v3261, %v3601
      %v3716 = vadd.f32 %v3262, %v3604
      %v3717 = vadd.f32 %v3263, %v3609
      %v3718 = vadd.f32 %v3264, %v3612
      %v3719 = vadd.f32 %v3265, %v3617
      %v3720 = vadd.f32 %v3266, %v3620
      %v3721 = vadd.f32 %v3267, %v3625
      %v3722 = vadd.f32 %v3268, %v3628
      %v3723 = vadd.f32 %v3269, %v3633
      %v3724 = vadd.f32 %v3270, %v3636
      %v3725 = vadd.f32 %v3271, %v3641
      %v3726 = vadd.f32 %v3272, %v3644
      %v3727 = vadd.f32 %v3273, %v3649
      %v3728 = vadd.f32 %v3274, %v3652
      %v3729 = vadd.f32 %v3275, %v3657
      %v3730 = vadd.f32 %v3276, %v3660
      %v3731 = vadd.f32 %v3277, %v3665
      %v3732 = vadd.f32 %v3278, %v3668
      %v3733 = vadd.f32 %v3279, %v3673
      %v3734 = vadd.f32 %v3280, %v3676
      %v3735 = vadd.f32 %v3281, %v3681
      %v3736 = vadd.f32 %v3282, %v3684
      %v3737 = vadd.f32 %v3283, %v3689
      %v3738 = vadd.f32 %v3284, %v3692
      %v3739 = vadd.f32 %v3285, %v3697
      %v3740 = vadd.f32 %v3286, %v3700
      %v3741 = vadd.f32 %v3287, %v3705
      %v3742 = vadd.f32 %v3288, %v3708
      %3743 = vst [vmem:[%s170] sm:$0xff] %v3711
      %3744 = vst [vmem:[%s170 + $0x8] sm:$0xff] %v3712
      %3745 = vst [vmem:[%s170 + $0x10] sm:$0xff] %v3713
      %3746 = vst [vmem:[%s170 + $0x18] sm:$0xff] %v3714
      %3747 = vst [vmem:[%s170 + $0x20] sm:$0xff] %v3715
      %3748 = vst [vmem:[%s170 + $0x28] sm:$0xff] %v3716
      %3749 = vst [vmem:[%s170 + $0x30] sm:$0xff] %v3717
      %3750 = vst [vmem:[%s170 + $0x38] sm:$0xff] %v3718
      %3751 = vst [vmem:[%s170 + $0x40] sm:$0xff] %v3719
      %3752 = vst [vmem:[%s170 + $0x48] sm:$0xff] %v3720
      %3753 = vst [vmem:[%s170 + $0x50] sm:$0xff] %v3721
      %3754 = vst [vmem:[%s170 + $0x58] sm:$0xff] %v3722
      %3755 = vst [vmem:[%s170 + $0x60] sm:$0xff] %v3723
      %3756 = vst [vmem:[%s170 + $0x68] sm:$0xff] %v3724
      %3757 = vst [vmem:[%s170 + $0x70] sm:$0xff] %v3725
      %3758 = vst [vmem:[%s170 + $0x78] sm:$0xff] %v3726
      %3759 = vst [vmem:[%s170 + $0x80] sm:$0xff] %v3727
      %3760 = vst [vmem:[%s170 + $0x88] sm:$0xff] %v3728
      %3761 = vst [vmem:[%s170 + $0x90] sm:$0xff] %v3729
      %3762 = vst [vmem:[%s170 + $0x98] sm:$0xff] %v3730
      %3763 = vst [vmem:[%s170 + $0xa0] sm:$0xff] %v3731
      %3764 = vst [vmem:[%s170 + $0xa8] sm:$0xff] %v3732
      %3765 = vst [vmem:[%s170 + $0xb0] sm:$0xff] %v3733
      %3766 = vst [vmem:[%s170 + $0xb8] sm:$0xff] %v3734
      %3767 = vst [vmem:[%s170 + $0xc0] sm:$0xff] %v3735
      %3768 = vst [vmem:[%s170 + $0xc8] sm:$0xff] %v3736
      %3769 = vst [vmem:[%s170 + $0xd0] sm:$0xff] %v3737
      %3770 = vst [vmem:[%s170 + $0xd8] sm:$0xff] %v3738
      %3771 = vst [vmem:[%s170 + $0xe0] sm:$0xff] %v3739
      %3772 = vst [vmem:[%s170 + $0xe8] sm:$0xff] %v3740
      %3773 = vst [vmem:[%s170 + $0xf0] sm:$0xff] %v3741
      %3774 = vst [vmem:[%s170 + $0xf8] sm:$0xff] %v3742
      %s3775 = scalar_lea.vmem %s165, 24
      %v3776 = vld [vmem:[%s3775] sm:$0xf]
      %v3777 = vld [vmem:[%s3775 + $0x4] sm:$0xf]
      %v3778 = vld [vmem:[%s3775 + $0xc] sm:$0xf]
      %v3779 = vld [vmem:[%s3775 + $0x10] sm:$0xf]
      %v3780 = vld [vmem:[%s3775 + $0x18] sm:$0xf]
      %v3781 = vld [vmem:[%s3775 + $0x1c] sm:$0xf]
      %v3782 = vld [vmem:[%s3775 + $0x24] sm:$0xf]
      %v3783 = vld [vmem:[%s3775 + $0x28] sm:$0xf]
      %v3784 = vld [vmem:[%s3775 + $0x30] sm:$0xf]
      %v3785 = vld [vmem:[%s3775 + $0x34] sm:$0xf]
      %v3786 = vld [vmem:[%s3775 + $0x3c] sm:$0xf]
      %v3787 = vld [vmem:[%s3775 + $0x40] sm:$0xf]
      %v3788 = vld [vmem:[%s3775 + $0x48] sm:$0xf]
      %v3789 = vld [vmem:[%s3775 + $0x4c] sm:$0xf]
      %v3790 = vld [vmem:[%s3775 + $0x54] sm:$0xf]
      %v3791 = vld [vmem:[%s3775 + $0x58] sm:$0xf]
      %v3792 = vld [vmem:[%s3775 + $0x60] sm:$0xf]
      %v3793 = vld [vmem:[%s3775 + $0x64] sm:$0xf]
      %v3794 = vld [vmem:[%s3775 + $0x6c] sm:$0xf]
      %v3795 = vld [vmem:[%s3775 + $0x70] sm:$0xf]
      %v3796 = vld [vmem:[%s3775 + $0x78] sm:$0xf]
      %v3797 = vld [vmem:[%s3775 + $0x7c] sm:$0xf]
      %v3798 = vld [vmem:[%s3775 + $0x84] sm:$0xf]
      %v3799 = vld [vmem:[%s3775 + $0x88] sm:$0xf]
      %v3800 = vld [vmem:[%s3775 + $0x90] sm:$0xf]
      %v3801 = vld [vmem:[%s3775 + $0x94] sm:$0xf]
      %v3802 = vld [vmem:[%s3775 + $0x9c] sm:$0xf]
      %v3803 = vld [vmem:[%s3775 + $0xa0] sm:$0xf]
      %v3804 = vld [vmem:[%s3775 + $0xa8] sm:$0xf]
      %v3805 = vld [vmem:[%s3775 + $0xac] sm:$0xf]
      %v3806 = vld [vmem:[%s3775 + $0xb4] sm:$0xf]
      %v3807 = vld [vmem:[%s3775 + $0xb8] sm:$0xf]
      %v3808 = vld [vmem:[%s170] sm:$0xff]
      %v3809 = vld [vmem:[%s170 + $0x8] sm:$0xff]
      %v3810 = vld [vmem:[%s170 + $0x10] sm:$0xff]
      %v3811 = vld [vmem:[%s170 + $0x18] sm:$0xff]
      %v3812 = vld [vmem:[%s170 + $0x20] sm:$0xff]
      %v3813 = vld [vmem:[%s170 + $0x28] sm:$0xff]
      %v3814 = vld [vmem:[%s170 + $0x30] sm:$0xff]
      %v3815 = vld [vmem:[%s170 + $0x38] sm:$0xff]
      %v3816 = vld [vmem:[%s170 + $0x40] sm:$0xff]
      %v3817 = vld [vmem:[%s170 + $0x48] sm:$0xff]
      %v3818 = vld [vmem:[%s170 + $0x50] sm:$0xff]
      %v3819 = vld [vmem:[%s170 + $0x58] sm:$0xff]
      %v3820 = vld [vmem:[%s170 + $0x60] sm:$0xff]
      %v3821 = vld [vmem:[%s170 + $0x68] sm:$0xff]
      %v3822 = vld [vmem:[%s170 + $0x70] sm:$0xff]
      %v3823 = vld [vmem:[%s170 + $0x78] sm:$0xff]
      %v3824 = vld [vmem:[%s170 + $0x80] sm:$0xff]
      %v3825 = vld [vmem:[%s170 + $0x88] sm:$0xff]
      %v3826 = vld [vmem:[%s170 + $0x90] sm:$0xff]
      %v3827 = vld [vmem:[%s170 + $0x98] sm:$0xff]
      %v3828 = vld [vmem:[%s170 + $0xa0] sm:$0xff]
      %v3829 = vld [vmem:[%s170 + $0xa8] sm:$0xff]
      %v3830 = vld [vmem:[%s170 + $0xb0] sm:$0xff]
      %v3831 = vld [vmem:[%s170 + $0xb8] sm:$0xff]
      %v3832 = vld [vmem:[%s170 + $0xc0] sm:$0xff]
      %v3833 = vld [vmem:[%s170 + $0xc8] sm:$0xff]
      %v3834 = vld [vmem:[%s170 + $0xd0] sm:$0xff]
      %v3835 = vld [vmem:[%s170 + $0xd8] sm:$0xff]
      %v3836 = vld [vmem:[%s170 + $0xe0] sm:$0xff]
      %v3837 = vld [vmem:[%s170 + $0xe8] sm:$0xff]
      %v3838 = vld [vmem:[%s170 + $0xf0] sm:$0xff]
      %v3839 = vld [vmem:[%s170 + $0xf8] sm:$0xff]
      %s3840 = scalar_lea.vmem %s1, 12
      %v3841 = vld [vmem:[%s3840] sm:$0x3]
      %v3874 = vunpack.c.l.b16 %v3776
      %v3875 = vunpack.c.l.b16 %v3777
      %v3876 = vunpack.c.l.b16 %v3778
      %v3877 = vunpack.c.l.b16 %v3779
      %v3878 = vunpack.c.l.b16 %v3780
      %v3879 = vunpack.c.l.b16 %v3781
      %v3880 = vunpack.c.l.b16 %v3782
      %v3881 = vunpack.c.l.b16 %v3783
      %v3882 = vunpack.c.l.b16 %v3784
      %v3883 = vunpack.c.l.b16 %v3785
      %v3884 = vunpack.c.l.b16 %v3786
      %v3885 = vunpack.c.l.b16 %v3787
      %v3886 = vunpack.c.l.b16 %v3788
      %v3887 = vunpack.c.l.b16 %v3789
      %v3888 = vunpack.c.l.b16 %v3790
      %v3889 = vunpack.c.l.b16 %v3791
      %v3890 = vunpack.c.l.b16 %v3792
      %v3891 = vunpack.c.l.b16 %v3793
      %v3892 = vunpack.c.l.b16 %v3794
      %v3893 = vunpack.c.l.b16 %v3795
      %v3894 = vunpack.c.l.b16 %v3796
      %v3895 = vunpack.c.l.b16 %v3797
      %v3896 = vunpack.c.l.b16 %v3798
      %v3897 = vunpack.c.l.b16 %v3799
      %v3898 = vunpack.c.l.b16 %v3800
      %v3899 = vunpack.c.l.b16 %v3801
      %v3900 = vunpack.c.l.b16 %v3802
      %v3901 = vunpack.c.l.b16 %v3803
      %v3902 = vunpack.c.l.b16 %v3804
      %v3903 = vunpack.c.l.b16 %v3805
      %v3904 = vunpack.c.l.b16 %v3806
      %v3905 = vunpack.c.l.b16 %v3807
      %v3906 = vpack.c.b16 %v3875, %v3874
      %v3907 = vpack.c.b16 %v3877, %v3876
      %v3908 = vpack.c.b16 %v3879, %v3878
      %v3909 = vpack.c.b16 %v3881, %v3880
      %v3910 = vpack.c.b16 %v3883, %v3882
      %v3911 = vpack.c.b16 %v3885, %v3884
      %v3912 = vpack.c.b16 %v3887, %v3886
      %v3913 = vpack.c.b16 %v3889, %v3888
      %v3914 = vpack.c.b16 %v3891, %v3890
      %v3915 = vpack.c.b16 %v3893, %v3892
      %v3916 = vpack.c.b16 %v3895, %v3894
      %v3917 = vpack.c.b16 %v3897, %v3896
      %v3918 = vpack.c.b16 %v3899, %v3898
      %v3919 = vpack.c.b16 %v3901, %v3900
      %v3920 = vpack.c.b16 %v3903, %v3902
      %v3921 = vpack.c.b16 %v3905, %v3904
      %v3923 = vsel %vm356, %v3906, 0
      %v3926 = vsel %vm356, %v3907, 0
      %v3929 = vsel %vm356, %v3908, 0
      %v3932 = vsel %vm356, %v3909, 0
      %v3935 = vsel %vm356, %v3910, 0
      %v3938 = vsel %vm356, %v3911, 0
      %v3941 = vsel %vm356, %v3912, 0
      %v3944 = vsel %vm356, %v3913, 0
      %v3947 = vsel %vm356, %v3914, 0
      %v3950 = vsel %vm356, %v3915, 0
      %v3953 = vsel %vm356, %v3916, 0
      %v3956 = vsel %vm356, %v3917, 0
      %v3959 = vsel %vm356, %v3918, 0
      %v3962 = vsel %vm356, %v3919, 0
      %v3965 = vsel %vm356, %v3920, 0
      %v3968 = vsel %vm356, %v3921, 0
      %v3971 = vsel %vm405, %v3841, 0
      %3973 = vmatprep.subr.bf16.mxu0 0
      %3974 = vmatpush1.bf16.msra.mxu0 %v3971
      %3975 = vmatprep.subr.bf16.mxu0 0
      %3976 = vmatpush1.bf16.msra.mxu0 0
      %3977 = vmatprep.subr.bf16.mxu0 0
      %3978 = vmatpush1.bf16.msra.mxu0 0
      %3979 = vmatprep.subr.bf16.mxu0 0
      %3980 = vmatpush1.bf16.msra.mxu0 0
      %3981 = vmatprep.subr.bf16.mxu0 0
      %3982 = vmatpush1.bf16.msra.mxu0 0
      %3983 = vmatprep.subr.bf16.mxu0 0
      %3984 = vmatpush1.bf16.msra.mxu0 0
      %3985 = vmatprep.subr.bf16.mxu0 0
      %3986 = vmatpush1.bf16.msra.mxu0 0
      %3987 = vmatprep.subr.bf16.mxu0 0
      %3988 = vmatpush1.bf16.msra.mxu0 0
      %3989 = vmatprep.subr.bf16.mxu0 0
      %3990 = vmatpush1.bf16.msra.mxu0 0
      %3991 = vmatprep.subr.bf16.mxu0 0
      %3992 = vmatpush1.bf16.msra.mxu0 0
      %3993 = vmatprep.subr.bf16.mxu0 0
      %3994 = vmatpush1.bf16.msra.mxu0 0
      %3995 = vmatprep.subr.bf16.mxu0 0
      %3996 = vmatpush1.bf16.msra.mxu0 0
      %3997 = vmatprep.subr.bf16.mxu0 0
      %3998 = vmatpush1.bf16.msra.mxu0 0
      %3999 = vmatprep.subr.bf16.mxu0 0
      %4000 = vmatpush1.bf16.msra.mxu0 0
      %4001 = vmatprep.subr.bf16.mxu0 0
      %4002 = vmatpush1.bf16.msra.mxu0 0
      %4003 = vmatprep.subr.bf16.mxu0 0
      %4004 = vmatpush1.bf16.msra.mxu0 0
      %4005 = vmatprep.mubr.bf16.mxu0 0
      %4006 = vmatmul.mubr.bf16.gmra.mrb[0].mxu0 %v3923
      %v4007 = vpop.f32.mrb[0].mxu0
      %v4008 = vadd.f32 0.0, %v4007
      %v4009 = vpop.f32.mrb[0].mxu0
      %v4010 = vpop.f32.mrb[0].mxu0
      %v4011 = vadd.f32 0.0, %v4010
      %v4012 = vpop.f32.mrb[0].mxu0
      %4013 = vmatprep.mubr.bf16.mxu0 0
      %4014 = vmatmul.mubr.bf16.gmra.mrb[0].mxu0 %v3926
      %v4015 = vpop.f32.mrb[0].mxu0
      %v4016 = vadd.f32 0.0, %v4015
      %v4017 = vpop.f32.mrb[0].mxu0
      %v4018 = vpop.f32.mrb[0].mxu0
      %v4019 = vadd.f32 0.0, %v4018
      %v4020 = vpop.f32.mrb[0].mxu0
      %4021 = vmatprep.mubr.bf16.mxu0 0
      %4022 = vmatmul.mubr.bf16.gmra.mrb[0].mxu0 %v3929
      %v4023 = vpop.f32.mrb[0].mxu0
      %v4024 = vadd.f32 0.0, %v4023
      %v4025 = vpop.f32.mrb[0].mxu0
      %v4026 = vpop.f32.mrb[0].mxu0
      %v4027 = vadd.f32 0.0, %v4026
      %v4028 = vpop.f32.mrb[0].mxu0
      %4029 = vmatprep.mubr.bf16.mxu0 0
      %4030 = vmatmul.mubr.bf16.gmra.mrb[0].mxu0 %v3932
      %v4031 = vpop.f32.mrb[0].mxu0
      %v4032 = vadd.f32 0.0, %v4031
      %v4033 = vpop.f32.mrb[0].mxu0
      %v4034 = vpop.f32.mrb[0].mxu0
      %v4035 = vadd.f32 0.0, %v4034
      %v4036 = vpop.f32.mrb[0].mxu0
      %4037 = vmatprep.mubr.bf16.mxu0 0
      %4038 = vmatmul.mubr.bf16.gmra.mrb[0].mxu0 %v3935
      %v4039 = vpop.f32.mrb[0].mxu0
      %v4040 = vadd.f32 0.0, %v4039
      %v4041 = vpop.f32.mrb[0].mxu0
      %v4042 = vpop.f32.mrb[0].mxu0
      %v4043 = vadd.f32 0.0, %v4042
      %v4044 = vpop.f32.mrb[0].mxu0
      %4045 = vmatprep.mubr.bf16.mxu0 0
      %4046 = vmatmul.mubr.bf16.gmra.mrb[0].mxu0 %v3938
      %v4047 = vpop.f32.mrb[0].mxu0
      %v4048 = vadd.f32 0.0, %v4047
      %v4049 = vpop.f32.mrb[0].mxu0
      %v4050 = vpop.f32.mrb[0].mxu0
      %v4051 = vadd.f32 0.0, %v4050
      %v4052 = vpop.f32.mrb[0].mxu0
      %4053 = vmatprep.mubr.bf16.mxu0 0
      %4054 = vmatmul.mubr.bf16.gmra.mrb[0].mxu0 %v3941
      %v4055 = vpop.f32.mrb[0].mxu0
      %v4056 = vadd.f32 0.0, %v4055
      %v4057 = vpop.f32.mrb[0].mxu0
      %v4058 = vpop.f32.mrb[0].mxu0
      %v4059 = vadd.f32 0.0, %v4058
      %v4060 = vpop.f32.mrb[0].mxu0
      %4061 = vmatprep.mubr.bf16.mxu0 0
      %4062 = vmatmul.mubr.bf16.gmra.mrb[0].mxu0 %v3944
      %v4063 = vpop.f32.mrb[0].mxu0
      %v4064 = vadd.f32 0.0, %v4063
      %v4065 = vpop.f32.mrb[0].mxu0
      %v4066 = vpop.f32.mrb[0].mxu0
      %v4067 = vadd.f32 0.0, %v4066
      %v4068 = vpop.f32.mrb[0].mxu0
      %4069 = vmatprep.mubr.bf16.mxu0 0
      %4070 = vmatmul.mubr.bf16.gmra.mrb[0].mxu0 %v3947
      %v4071 = vpop.f32.mrb[0].mxu0
      %v4072 = vadd.f32 0.0, %v4071
      %v4073 = vpop.f32.mrb[0].mxu0
      %v4074 = vpop.f32.mrb[0].mxu0
      %v4075 = vadd.f32 0.0, %v4074
      %v4076 = vpop.f32.mrb[0].mxu0
      %4077 = vmatprep.mubr.bf16.mxu0 0
      %4078 = vmatmul.mubr.bf16.gmra.mrb[0].mxu0 %v3950
      %v4079 = vpop.f32.mrb[0].mxu0
      %v4080 = vadd.f32 0.0, %v4079
      %v4081 = vpop.f32.mrb[0].mxu0
      %v4082 = vpop.f32.mrb[0].mxu0
      %v4083 = vadd.f32 0.0, %v4082
      %v4084 = vpop.f32.mrb[0].mxu0
      %4085 = vmatprep.mubr.bf16.mxu0 0
      %4086 = vmatmul.mubr.bf16.gmra.mrb[0].mxu0 %v3953
      %v4087 = vpop.f32.mrb[0].mxu0
      %v4088 = vadd.f32 0.0, %v4087
      %v4089 = vpop.f32.mrb[0].mxu0
      %v4090 = vpop.f32.mrb[0].mxu0
      %v4091 = vadd.f32 0.0, %v4090
      %v4092 = vpop.f32.mrb[0].mxu0
      %4093 = vmatprep.mubr.bf16.mxu0 0
      %4094 = vmatmul.mubr.bf16.gmra.mrb[0].mxu0 %v3956
      %v4095 = vpop.f32.mrb[0].mxu0
      %v4096 = vadd.f32 0.0, %v4095
      %v4097 = vpop.f32.mrb[0].mxu0
      %v4098 = vpop.f32.mrb[0].mxu0
      %v4099 = vadd.f32 0.0, %v4098
      %v4100 = vpop.f32.mrb[0].mxu0
      %4101 = vmatprep.mubr.bf16.mxu0 0
      %4102 = vmatmul.mubr.bf16.gmra.mrb[0].mxu0 %v3959
      %v4103 = vpop.f32.mrb[0].mxu0
      %v4104 = vadd.f32 0.0, %v4103
      %v4105 = vpop.f32.mrb[0].mxu0
      %v4106 = vpop.f32.mrb[0].mxu0
      %v4107 = vadd.f32 0.0, %v4106
      %v4108 = vpop.f32.mrb[0].mxu0
      %4109 = vmatprep.mubr.bf16.mxu0 0
      %4110 = vmatmul.mubr.bf16.gmra.mrb[0].mxu0 %v3962
      %v4111 = vpop.f32.mrb[0].mxu0
      %v4112 = vadd.f32 0.0, %v4111
      %v4113 = vpop.f32.mrb[0].mxu0
      %v4114 = vpop.f32.mrb[0].mxu0
      %v4115 = vadd.f32 0.0, %v4114
      %v4116 = vpop.f32.mrb[0].mxu0
      %4117 = vmatprep.mubr.bf16.mxu0 0
      %4118 = vmatmul.mubr.bf16.gmra.mrb[0].mxu0 %v3965
      %v4119 = vpop.f32.mrb[0].mxu0
      %v4120 = vadd.f32 0.0, %v4119
      %v4121 = vpop.f32.mrb[0].mxu0
      %v4122 = vpop.f32.mrb[0].mxu0
      %v4123 = vadd.f32 0.0, %v4122
      %v4124 = vpop.f32.mrb[0].mxu0
      %4125 = vmatprep.mubr.bf16.mxu0 0
      %4126 = vmatmul.mubr.bf16.gmra.mrb[0].mxu0 %v3968
      %v4127 = vpop.f32.mrb[0].mxu0
      %v4128 = vadd.f32 0.0, %v4127
      %v4129 = vpop.f32.mrb[0].mxu0
      %v4130 = vpop.f32.mrb[0].mxu0
      %v4131 = vadd.f32 0.0, %v4130
      %v4132 = vpop.f32.mrb[0].mxu0
      %4133 = vdwg.mxu0
      %v4134 = vadd.f32 %v3808, %v4008
      %v4135 = vadd.f32 %v3809, %v4011
      %v4136 = vadd.f32 %v3810, %v4016
      %v4137 = vadd.f32 %v3811, %v4019
      %v4138 = vadd.f32 %v3812, %v4024
      %v4139 = vadd.f32 %v3813, %v4027
      %v4140 = vadd.f32 %v3814, %v4032
      %v4141 = vadd.f32 %v3815, %v4035
      %v4142 = vadd.f32 %v3816, %v4040
      %v4143 = vadd.f32 %v3817, %v4043
      %v4144 = vadd.f32 %v3818, %v4048
      %v4145 = vadd.f32 %v3819, %v4051
      %v4146 = vadd.f32 %v3820, %v4056
      %v4147 = vadd.f32 %v3821, %v4059
      %v4148 = vadd.f32 %v3822, %v4064
      %v4149 = vadd.f32 %v3823, %v4067
      %v4150 = vadd.f32 %v3824, %v4072
      %v4151 = vadd.f32 %v3825, %v4075
      %v4152 = vadd.f32 %v3826, %v4080
      %v4153 = vadd.f32 %v3827, %v4083
      %v4154 = vadd.f32 %v3828, %v4088
      %v4155 = vadd.f32 %v3829, %v4091
      %v4156 = vadd.f32 %v3830, %v4096
      %v4157 = vadd.f32 %v3831, %v4099
      %v4158 = vadd.f32 %v3832, %v4104
      %v4159 = vadd.f32 %v3833, %v4107
      %v4160 = vadd.f32 %v3834, %v4112
      %v4161 = vadd.f32 %v3835, %v4115
      %v4162 = vadd.f32 %v3836, %v4120
      %v4163 = vadd.f32 %v3837, %v4123
      %v4164 = vadd.f32 %v3838, %v4128
      %v4165 = vadd.f32 %v3839, %v4131
      %4166 = vst [vmem:[%s170] sm:$0xff] %v4134
      %4167 = vst [vmem:[%s170 + $0x8] sm:$0xff] %v4135
      %4168 = vst [vmem:[%s170 + $0x10] sm:$0xff] %v4136
      %4169 = vst [vmem:[%s170 + $0x18] sm:$0xff] %v4137
      %4170 = vst [vmem:[%s170 + $0x20] sm:$0xff] %v4138
      %4171 = vst [vmem:[%s170 + $0x28] sm:$0xff] %v4139
      %4172 = vst [vmem:[%s170 + $0x30] sm:$0xff] %v4140
      %4173 = vst [vmem:[%s170 + $0x38] sm:$0xff] %v4141
      %4174 = vst [vmem:[%s170 + $0x40] sm:$0xff] %v4142
      %4175 = vst [vmem:[%s170 + $0x48] sm:$0xff] %v4143
      %4176 = vst [vmem:[%s170 + $0x50] sm:$0xff] %v4144
      %4177 = vst [vmem:[%s170 + $0x58] sm:$0xff] %v4145
      %4178 = vst [vmem:[%s170 + $0x60] sm:$0xff] %v4146
      %4179 = vst [vmem:[%s170 + $0x68] sm:$0xff] %v4147
      %4180 = vst [vmem:[%s170 + $0x70] sm:$0xff] %v4148
      %4181 = vst [vmem:[%s170 + $0x78] sm:$0xff] %v4149
      %4182 = vst [vmem:[%s170 + $0x80] sm:$0xff] %v4150
      %4183 = vst [vmem:[%s170 + $0x88] sm:$0xff] %v4151
      %4184 = vst [vmem:[%s170 + $0x90] sm:$0xff] %v4152
      %4185 = vst [vmem:[%s170 + $0x98] sm:$0xff] %v4153
      %4186 = vst [vmem:[%s170 + $0xa0] sm:$0xff] %v4154
      %4187 = vst [vmem:[%s170 + $0xa8] sm:$0xff] %v4155
      %4188 = vst [vmem:[%s170 + $0xb0] sm:$0xff] %v4156
      %4189 = vst [vmem:[%s170 + $0xb8] sm:$0xff] %v4157
      %4190 = vst [vmem:[%s170 + $0xc0] sm:$0xff] %v4158
      %4191 = vst [vmem:[%s170 + $0xc8] sm:$0xff] %v4159
      %4192 = vst [vmem:[%s170 + $0xd0] sm:$0xff] %v4160
      %4193 = vst [vmem:[%s170 + $0xd8] sm:$0xff] %v4161
      %4194 = vst [vmem:[%s170 + $0xe0] sm:$0xff] %v4162
      %4195 = vst [vmem:[%s170 + $0xe8] sm:$0xff] %v4163
      %4196 = vst [vmem:[%s170 + $0xf0] sm:$0xff] %v4164
      %4197 = vst [vmem:[%s170 + $0xf8] sm:$0xff] %v4165
      %v4198 = vld [vmem:[%s3775] sm:$0xf]
      %v4199 = vld [vmem:[%s3775 + $0x4] sm:$0xf]
      %v4200 = vld [vmem:[%s3775 + $0x8] sm:$0x1]
      %v4201 = vld [vmem:[%s3775 + $0xc] sm:$0xf]
      %v4202 = vld [vmem:[%s3775 + $0x10] sm:$0xf]
      %v4203 = vld [vmem:[%s3775 + $0x14] sm:$0x1]
      %v4204 = vld [vmem:[%s3775 + $0x18] sm:$0xf]
      %v4205 = vld [vmem:[%s3775 + $0x1c] sm:$0xf]
      %v4206 = vld [vmem:[%s3775 + $0x20] sm:$0x1]
      %v4207 = vld [vmem:[%s3775 + $0x24] sm:$0xf]
      %v4208 = vld [vmem:[%s3775 + $0x28] sm:$0xf]
      %v4209 = vld [vmem:[%s3775 + $0x2c] sm:$0x1]
      %v4210 = vld [vmem:[%s3775 + $0x30] sm:$0xf]
      %v4211 = vld [vmem:[%s3775 + $0x34] sm:$0xf]
      %v4212 = vld [vmem:[%s3775 + $0x38] sm:$0x1]
      %v4213 = vld [vmem:[%s3775 + $0x3c] sm:$0xf]
      %v4214 = vld [vmem:[%s3775 + $0x40] sm:$0xf]
      %v4215 = vld [vmem:[%s3775 + $0x44] sm:$0x1]
      %v4216 = vld [vmem:[%s3775 + $0x48] sm:$0xf]
      %v4217 = vld [vmem:[%s3775 + $0x4c] sm:$0xf]
      %v4218 = vld [vmem:[%s3775 + $0x50] sm:$0x1]
      %v4219 = vld [vmem:[%s3775 + $0x54] sm:$0xf]
      %v4220 = vld [vmem:[%s3775 + $0x58] sm:$0xf]
      %v4221 = vld [vmem:[%s3775 + $0x5c] sm:$0x1]
      %v4222 = vld [vmem:[%s3775 + $0x60] sm:$0xf]
      %v4223 = vld [vmem:[%s3775 + $0x64] sm:$0xf]
      %v4224 = vld [vmem:[%s3775 + $0x68] sm:$0x1]
      %v4225 = vld [vmem:[%s3775 + $0x6c] sm:$0xf]
      %v4226 = vld [vmem:[%s3775 + $0x70] sm:$0xf]
      %v4227 = vld [vmem:[%s3775 + $0x74] sm:$0x1]
      %v4228 = vld [vmem:[%s3775 + $0x78] sm:$0xf]
      %v4229 = vld [vmem:[%s3775 + $0x7c] sm:$0xf]
      %v4230 = vld [vmem:[%s3775 + $0x80] sm:$0x1]
      %v4231 = vld [vmem:[%s3775 + $0x84] sm:$0xf]
      %v4232 = vld [vmem:[%s3775 + $0x88] sm:$0xf]
      %v4233 = vld [vmem:[%s3775 + $0x8c] sm:$0x1]
      %v4234 = vld [vmem:[%s3775 + $0x90] sm:$0xf]
      %v4235 = vld [vmem:[%s3775 + $0x94] sm:$0xf]
      %v4236 = vld [vmem:[%s3775 + $0x98] sm:$0x1]
      %v4237 = vld [vmem:[%s3775 + $0x9c] sm:$0xf]
      %v4238 = vld [vmem:[%s3775 + $0xa0] sm:$0xf]
      %v4239 = vld [vmem:[%s3775 + $0xa4] sm:$0x1]
      %v4240 = vld [vmem:[%s3775 + $0xa8] sm:$0xf]
      %v4241 = vld [vmem:[%s3775 + $0xac] sm:$0xf]
      %v4242 = vld [vmem:[%s3775 + $0xb0] sm:$0x1]
      %v4243 = vld [vmem:[%s3775 + $0xb4] sm:$0xf]
      %v4244 = vld [vmem:[%s3775 + $0xb8] sm:$0xf]
      %v4245 = vld [vmem:[%s3775 + $0xbc] sm:$0x1]
      %v4246 = vld [vmem:[%s170] sm:$0xff]
      %v4247 = vld [vmem:[%s170 + $0x8] sm:$0xff]
      %v4248 = vld [vmem:[%s170 + $0x10] sm:$0xff]
      %v4249 = vld [vmem:[%s170 + $0x18] sm:$0xff]
      %v4250 = vld [vmem:[%s170 + $0x20] sm:$0xff]
      %v4251 = vld [vmem:[%s170 + $0x28] sm:$0xff]
      %v4252 = vld [vmem:[%s170 + $0x30] sm:$0xff]
      %v4253 = vld [vmem:[%s170 + $0x38] sm:$0xff]
      %v4254 = vld [vmem:[%s170 + $0x40] sm:$0xff]
      %v4255 = vld [vmem:[%s170 + $0x48] sm:$0xff]
      %v4256 = vld [vmem:[%s170 + $0x50] sm:$0xff]
      %v4257 = vld [vmem:[%s170 + $0x58] sm:$0xff]
      %v4258 = vld [vmem:[%s170 + $0x60] sm:$0xff]
      %v4259 = vld [vmem:[%s170 + $0x68] sm:$0xff]
      %v4260 = vld [vmem:[%s170 + $0x70] sm:$0xff]
      %v4261 = vld [vmem:[%s170 + $0x78] sm:$0xff]
      %v4262 = vld [vmem:[%s170 + $0x80] sm:$0xff]
      %v4263 = vld [vmem:[%s170 + $0x88] sm:$0xff]
      %v4264 = vld [vmem:[%s170 + $0x90] sm:$0xff]
      %v4265 = vld [vmem:[%s170 + $0x98] sm:$0xff]
      %v4266 = vld [vmem:[%s170 + $0xa0] sm:$0xff]
      %v4267 = vld [vmem:[%s170 + $0xa8] sm:$0xff]
      %v4268 = vld [vmem:[%s170 + $0xb0] sm:$0xff]
      %v4269 = vld [vmem:[%s170 + $0xb8] sm:$0xff]
      %v4270 = vld [vmem:[%s170 + $0xc0] sm:$0xff]
      %v4271 = vld [vmem:[%s170 + $0xc8] sm:$0xff]
      %v4272 = vld [vmem:[%s170 + $0xd0] sm:$0xff]
      %v4273 = vld [vmem:[%s170 + $0xd8] sm:$0xff]
      %v4274 = vld [vmem:[%s170 + $0xe0] sm:$0xff]
      %v4275 = vld [vmem:[%s170 + $0xe8] sm:$0xff]
      %v4276 = vld [vmem:[%s170 + $0xf0] sm:$0xff]
      %v4277 = vld [vmem:[%s170 + $0xf8] sm:$0xff]
      %v4279 = vshrl.u32 %v4198, 16
      %v4281 = vrot.slane %v4279, 4
      %v4282 = vshll.u32 %v4198, 16
      %v4284 = vrot.slane %v4282, 5
      %v4285 = vor.u32 %v4281, %v4284
      %v4286 = vrot.slane %v4285, 4
      %v4288 = vshll.u32 %v4199, 16
      %v4290 = vrot.slane %v4288, 5
      %v4291 = vsel %vm716, %v4286, %v4290
      %v4292 = vshrl.u32 %v4199, 16
      %v4294 = vrot.slane %v4292, 4
      %v4295 = vor.u32 %v4294, %v4290
      %v4296 = vrot.slane %v4295, 4
      %v4298 = vshll.u32 %v4200, 16
      %v4300 = vrot.slane %v4298, 5
      %v4301 = vsel %vm716, %v4296, %v4300
      %v4303 = vshrl.u32 %v4201, 16
      %v4305 = vrot.slane %v4303, 4
      %v4306 = vshll.u32 %v4201, 16
      %v4308 = vrot.slane %v4306, 5
      %v4309 = vor.u32 %v4305, %v4308
      %v4310 = vrot.slane %v4309, 4
      %v4312 = vshll.u32 %v4202, 16
      %v4314 = vrot.slane %v4312, 5
      %v4315 = vsel %vm716, %v4310, %v4314
      %v4316 = vshrl.u32 %v4202, 16
      %v4318 = vrot.slane %v4316, 4
      %v4319 = vor.u32 %v4318, %v4314
      %v4320 = vrot.slane %v4319, 4
      %v4322 = vshll.u32 %v4203, 16
      %v4324 = vrot.slane %v4322, 5
      %v4325 = vsel %vm716, %v4320, %v4324
      %v4327 = vshrl.u32 %v4204, 16
      %v4329 = vrot.slane %v4327, 4
      %v4330 = vshll.u32 %v4204, 16
      %v4332 = vrot.slane %v4330, 5
      %v4333 = vor.u32 %v4329, %v4332
      %v4334 = vrot.slane %v4333, 4
      %v4336 = vshll.u32 %v4205, 16
      %v4338 = vrot.slane %v4336, 5
      %v4339 = vsel %vm716, %v4334, %v4338
      %v4340 = vshrl.u32 %v4205, 16
      %v4342 = vrot.slane %v4340, 4
      %v4343 = vor.u32 %v4342, %v4338
      %v4344 = vrot.slane %v4343, 4
      %v4346 = vshll.u32 %v4206, 16
      %v4348 = vrot.slane %v4346, 5
      %v4349 = vsel %vm716, %v4344, %v4348
      %v4351 = vshrl.u32 %v4207, 16
      %v4353 = vrot.slane %v4351, 4
      %v4354 = vshll.u32 %v4207, 16
      %v4356 = vrot.slane %v4354, 5
      %v4357 = vor.u32 %v4353, %v4356
      %v4358 = vrot.slane %v4357, 4
      %v4360 = vshll.u32 %v4208, 16
      %v4362 = vrot.slane %v4360, 5
      %v4363 = vsel %vm716, %v4358, %v4362
      %v4364 = vshrl.u32 %v4208, 16
      %v4366 = vrot.slane %v4364, 4
      %v4367 = vor.u32 %v4366, %v4362
      %v4368 = vrot.slane %v4367, 4
      %v4370 = vshll.u32 %v4209, 16
      %v4372 = vrot.slane %v4370, 5
      %v4373 = vsel %vm716, %v4368, %v4372
      %v4375 = vshrl.u32 %v4210, 16
      %v4377 = vrot.slane %v4375, 4
      %v4378 = vshll.u32 %v4210, 16
      %v4380 = vrot.slane %v4378, 5
      %v4381 = vor.u32 %v4377, %v4380
      %v4382 = vrot.slane %v4381, 4
      %v4384 = vshll.u32 %v4211, 16
      %v4386 = vrot.slane %v4384, 5
      %v4387 = vsel %vm716, %v4382, %v4386
      %v4388 = vshrl.u32 %v4211, 16
      %v4390 = vrot.slane %v4388, 4
      %v4391 = vor.u32 %v4390, %v4386
      %v4392 = vrot.slane %v4391, 4
      %v4394 = vshll.u32 %v4212, 16
      %v4396 = vrot.slane %v4394, 5
      %v4397 = vsel %vm716, %v4392, %v4396
      %v4399 = vshrl.u32 %v4213, 16
      %v4401 = vrot.slane %v4399, 4
      %v4402 = vshll.u32 %v4213, 16
      %v4404 = vrot.slane %v4402, 5
      %v4405 = vor.u32 %v4401, %v4404
      %v4406 = vrot.slane %v4405, 4
      %v4408 = vshll.u32 %v4214, 16
      %v4410 = vrot.slane %v4408, 5
      %v4411 = vsel %vm716, %v4406, %v4410
      %v4412 = vshrl.u32 %v4214, 16
      %v4414 = vrot.slane %v4412, 4
      %v4415 = vor.u32 %v4414, %v4410
      %v4416 = vrot.slane %v4415, 4
      %v4418 = vshll.u32 %v4215, 16
      %v4420 = vrot.slane %v4418, 5
      %v4421 = vsel %vm716, %v4416, %v4420
      %v4423 = vshrl.u32 %v4216, 16
      %v4425 = vrot.slane %v4423, 4
      %v4426 = vshll.u32 %v4216, 16
      %v4428 = vrot.slane %v4426, 5
      %v4429 = vor.u32 %v4425, %v4428
      %v4430 = vrot.slane %v4429, 4
      %v4432 = vshll.u32 %v4217, 16
      %v4434 = vrot.slane %v4432, 5
      %v4435 = vsel %vm716, %v4430, %v4434
      %v4436 = vshrl.u32 %v4217, 16
      %v4438 = vrot.slane %v4436, 4
      %v4439 = vor.u32 %v4438, %v4434
      %v4440 = vrot.slane %v4439, 4
      %v4442 = vshll.u32 %v4218, 16
      %v4444 = vrot.slane %v4442, 5
      %v4445 = vsel %vm716, %v4440, %v4444
      %v4447 = vshrl.u32 %v4219, 16
      %v4449 = vrot.slane %v4447, 4
      %v4450 = vshll.u32 %v4219, 16
      %v4452 = vrot.slane %v4450, 5
      %v4453 = vor.u32 %v4449, %v4452
      %v4454 = vrot.slane %v4453, 4
      %v4456 = vshll.u32 %v4220, 16
      %v4458 = vrot.slane %v4456, 5
      %v4459 = vsel %vm716, %v4454, %v4458
      %v4460 = vshrl.u32 %v4220, 16
      %v4462 = vrot.slane %v4460, 4
      %v4463 = vor.u32 %v4462, %v4458
      %v4464 = vrot.slane %v4463, 4
      %v4466 = vshll.u32 %v4221, 16
      %v4468 = vrot.slane %v4466, 5
      %v4469 = vsel %vm716, %v4464, %v4468
      %v4471 = vshrl.u32 %v4222, 16
      %v4473 = vrot.slane %v4471, 4
      %v4474 = vshll.u32 %v4222, 16
      %v4476 = vrot.slane %v4474, 5
      %v4477 = vor.u32 %v4473, %v4476
      %v4478 = vrot.slane %v4477, 4
      %v4480 = vshll.u32 %v4223, 16
      %v4482 = vrot.slane %v4480, 5
      %v4483 = vsel %vm716, %v4478, %v4482
      %v4484 = vshrl.u32 %v4223, 16
      %v4486 = vrot.slane %v4484, 4
      %v4487 = vor.u32 %v4486, %v4482
      %v4488 = vrot.slane %v4487, 4
      %v4490 = vshll.u32 %v4224, 16
      %v4492 = vrot.slane %v4490, 5
      %v4493 = vsel %vm716, %v4488, %v4492
      %v4495 = vshrl.u32 %v4225, 16
      %v4497 = vrot.slane %v4495, 4
      %v4498 = vshll.u32 %v4225, 16
      %v4500 = vrot.slane %v4498, 5
      %v4501 = vor.u32 %v4497, %v4500
      %v4502 = vrot.slane %v4501, 4
      %v4504 = vshll.u32 %v4226, 16
      %v4506 = vrot.slane %v4504, 5
      %v4507 = vsel %vm716, %v4502, %v4506
      %v4508 = vshrl.u32 %v4226, 16
      %v4510 = vrot.slane %v4508, 4
      %v4511 = vor.u32 %v4510, %v4506
      %v4512 = vrot.slane %v4511, 4
      %v4514 = vshll.u32 %v4227, 16
      %v4516 = vrot.slane %v4514, 5
      %v4517 = vsel %vm716, %v4512, %v4516
      %v4519 = vshrl.u32 %v4228, 16
      %v4521 = vrot.slane %v4519, 4
      %v4522 = vshll.u32 %v4228, 16
      %v4524 = vrot.slane %v4522, 5
      %v4525 = vor.u32 %v4521, %v4524
      %v4526 = vrot.slane %v4525, 4
      %v4528 = vshll.u32 %v4229, 16
      %v4530 = vrot.slane %v4528, 5
      %v4531 = vsel %vm716, %v4526, %v4530
      %v4532 = vshrl.u32 %v4229, 16
      %v4534 = vrot.slane %v4532, 4
      %v4535 = vor.u32 %v4534, %v4530
      %v4536 = vrot.slane %v4535, 4
      %v4538 = vshll.u32 %v4230, 16
      %v4540 = vrot.slane %v4538, 5
      %v4541 = vsel %vm716, %v4536, %v4540
      %v4543 = vshrl.u32 %v4231, 16
      %v4545 = vrot.slane %v4543, 4
      %v4546 = vshll.u32 %v4231, 16
      %v4548 = vrot.slane %v4546, 5
      %v4549 = vor.u32 %v4545, %v4548
      %v4550 = vrot.slane %v4549, 4
      %v4552 = vshll.u32 %v4232, 16
      %v4554 = vrot.slane %v4552, 5
      %v4555 = vsel %vm716, %v4550, %v4554
      %v4556 = vshrl.u32 %v4232, 16
      %v4558 = vrot.slane %v4556, 4
      %v4559 = vor.u32 %v4558, %v4554
      %v4560 = vrot.slane %v4559, 4
      %v4562 = vshll.u32 %v4233, 16
      %v4564 = vrot.slane %v4562, 5
      %v4565 = vsel %vm716, %v4560, %v4564
      %v4567 = vshrl.u32 %v4234, 16
      %v4569 = vrot.slane %v4567, 4
      %v4570 = vshll.u32 %v4234, 16
      %v4572 = vrot.slane %v4570, 5
      %v4573 = vor.u32 %v4569, %v4572
      %v4574 = vrot.slane %v4573, 4
      %v4576 = vshll.u32 %v4235, 16
      %v4578 = vrot.slane %v4576, 5
      %v4579 = vsel %vm716, %v4574, %v4578
      %v4580 = vshrl.u32 %v4235, 16
      %v4582 = vrot.slane %v4580, 4
      %v4583 = vor.u32 %v4582, %v4578
      %v4584 = vrot.slane %v4583, 4
      %v4586 = vshll.u32 %v4236, 16
      %v4588 = vrot.slane %v4586, 5
      %v4589 = vsel %vm716, %v4584, %v4588
      %v4591 = vshrl.u32 %v4237, 16
      %v4593 = vrot.slane %v4591, 4
      %v4594 = vshll.u32 %v4237, 16
      %v4596 = vrot.slane %v4594, 5
      %v4597 = vor.u32 %v4593, %v4596
      %v4598 = vrot.slane %v4597, 4
      %v4600 = vshll.u32 %v4238, 16
      %v4602 = vrot.slane %v4600, 5
      %v4603 = vsel %vm716, %v4598, %v4602
      %v4604 = vshrl.u32 %v4238, 16
      %v4606 = vrot.slane %v4604, 4
      %v4607 = vor.u32 %v4606, %v4602
      %v4608 = vrot.slane %v4607, 4
      %v4610 = vshll.u32 %v4239, 16
      %v4612 = vrot.slane %v4610, 5
      %v4613 = vsel %vm716, %v4608, %v4612
      %v4615 = vshrl.u32 %v4240, 16
      %v4617 = vrot.slane %v4615, 4
      %v4618 = vshll.u32 %v4240, 16
      %v4620 = vrot.slane %v4618, 5
      %v4621 = vor.u32 %v4617, %v4620
      %v4622 = vrot.slane %v4621, 4
      %v4624 = vshll.u32 %v4241, 16
      %v4626 = vrot.slane %v4624, 5
      %v4627 = vsel %vm716, %v4622, %v4626
      %v4628 = vshrl.u32 %v4241, 16
      %v4630 = vrot.slane %v4628, 4
      %v4631 = vor.u32 %v4630, %v4626
      %v4632 = vrot.slane %v4631, 4
      %v4634 = vshll.u32 %v4242, 16
      %v4636 = vrot.slane %v4634, 5
      %v4637 = vsel %vm716, %v4632, %v4636
      %v4639 = vshrl.u32 %v4243, 16
      %v4641 = vrot.slane %v4639, 4
      %v4642 = vshll.u32 %v4243, 16
      %v4644 = vrot.slane %v4642, 5
      %v4645 = vor.u32 %v4641, %v4644
      %v4646 = vrot.slane %v4645, 4
      %v4648 = vshll.u32 %v4244, 16
      %v4650 = vrot.slane %v4648, 5
      %v4651 = vsel %vm716, %v4646, %v4650
      %v4652 = vshrl.u32 %v4244, 16
      %v4654 = vrot.slane %v4652, 4
      %v4655 = vor.u32 %v4654, %v4650
      %v4656 = vrot.slane %v4655, 4
      %v4658 = vshll.u32 %v4245, 16
      %v4660 = vrot.slane %v4658, 5
      %v4661 = vsel %vm716, %v4656, %v4660
      %s4662 = scalar_lea.vmem %s1, 14
      %v4663 = vld [vmem:[%s4662] sm:$0x3]
      %v4664 = vunpack.c.l.b16 %v4291
      %v4665 = vunpack.c.l.b16 %v4301
      %v4666 = vunpack.c.l.b16 %v4315
      %v4667 = vunpack.c.l.b16 %v4325
      %v4668 = vunpack.c.l.b16 %v4339
      %v4669 = vunpack.c.l.b16 %v4349
      %v4670 = vunpack.c.l.b16 %v4363
      %v4671 = vunpack.c.l.b16 %v4373
      %v4672 = vunpack.c.l.b16 %v4387
      %v4673 = vunpack.c.l.b16 %v4397
      %v4674 = vunpack.c.l.b16 %v4411
      %v4675 = vunpack.c.l.b16 %v4421
      %v4676 = vunpack.c.l.b16 %v4435
      %v4677 = vunpack.c.l.b16 %v4445
      %v4678 = vunpack.c.l.b16 %v4459
      %v4679 = vunpack.c.l.b16 %v4469
      %v4680 = vunpack.c.l.b16 %v4483
      %v4681 = vunpack.c.l.b16 %v4493
      %v4682 = vunpack.c.l.b16 %v4507
      %v4683 = vunpack.c.l.b16 %v4517
      %v4684 = vunpack.c.l.b16 %v4531
      %v4685 = vunpack.c.l.b16 %v4541
      %v4686 = vunpack.c.l.b16 %v4555
      %v4687 = vunpack.c.l.b16 %v4565
      %v4688 = vunpack.c.l.b16 %v4579
      %v4689 = vunpack.c.l.b16 %v4589
      %v4690 = vunpack.c.l.b16 %v4603
      %v4691 = vunpack.c.l.b16 %v4613
      %v4692 = vunpack.c.l.b16 %v4627
      %v4693 = vunpack.c.l.b16 %v4637
      %v4694 = vunpack.c.l.b16 %v4651
      %v4695 = vunpack.c.l.b16 %v4661
      %v4696 = vpack.c.b16 %v4665, %v4664
      %v4697 = vpack.c.b16 %v4667, %v4666
      %v4698 = vpack.c.b16 %v4669, %v4668
      %v4699 = vpack.c.b16 %v4671, %v4670
      %v4700 = vpack.c.b16 %v4673, %v4672
      %v4701 = vpack.c.b16 %v4675, %v4674
      %v4702 = vpack.c.b16 %v4677, %v4676
      %v4703 = vpack.c.b16 %v4679, %v4678
      %v4704 = vpack.c.b16 %v4681, %v4680
      %v4705 = vpack.c.b16 %v4683, %v4682
      %v4706 = vpack.c.b16 %v4685, %v4684
      %v4707 = vpack.c.b16 %v4687, %v4686
      %v4708 = vpack.c.b16 %v4689, %v4688
      %v4709 = vpack.c.b16 %v4691, %v4690
      %v4710 = vpack.c.b16 %v4693, %v4692
      %v4711 = vpack.c.b16 %v4695, %v4694
      %v4713 = vsel %vm356, %v4696, 0
      %v4716 = vsel %vm356, %v4697, 0
      %v4719 = vsel %vm356, %v4698, 0
      %v4722 = vsel %vm356, %v4699, 0
      %v4725 = vsel %vm356, %v4700, 0
      %v4728 = vsel %vm356, %v4701, 0
      %v4731 = vsel %vm356, %v4702, 0
      %v4734 = vsel %vm356, %v4703, 0
      %v4737 = vsel %vm356, %v4704, 0
      %v4740 = vsel %vm356, %v4705, 0
      %v4743 = vsel %vm356, %v4706, 0
      %v4746 = vsel %vm356, %v4707, 0
      %v4749 = vsel %vm356, %v4708, 0
      %v4752 = vsel %vm356, %v4709, 0
      %v4755 = vsel %vm356, %v4710, 0
      %v4758 = vsel %vm356, %v4711, 0
      %v4761 = vsel %vm405, %v4663, 0
      %4763 = vmatprep.subr.bf16.mxu0 0
      %4764 = vmatpush1.bf16.msra.mxu0 %v4761
      %4765 = vmatprep.subr.bf16.mxu0 0
      %4766 = vmatpush1.bf16.msra.mxu0 0
      %4767 = vmatprep.subr.bf16.mxu0 0
      %4768 = vmatpush1.bf16.msra.mxu0 0
      %4769 = vmatprep.subr.bf16.mxu0 0
      %4770 = vmatpush1.bf16.msra.mxu0 0
      %4771 = vmatprep.subr.bf16.mxu0 0
      %4772 = vmatpush1.bf16.msra.mxu0 0
      %4773 = vmatprep.subr.bf16.mxu0 0
      %4774 = vmatpush1.bf16.msra.mxu0 0
      %4775 = vmatprep.subr.bf16.mxu0 0
      %4776 = vmatpush1.bf16.msra.mxu0 0
      %4777 = vmatprep.subr.bf16.mxu0 0
      %4778 = vmatpush1.bf16.msra.mxu0 0
      %4779 = vmatprep.subr.bf16.mxu0 0
      %4780 = vmatpush1.bf16.msra.mxu0 0
      %4781 = vmatprep.subr.bf16.mxu0 0
      %4782 = vmatpush1.bf16.msra.mxu0 0
      %4783 = vmatprep.subr.bf16.mxu0 0
      %4784 = vmatpush1.bf16.msra.mxu0 0
      %4785 = vmatprep.subr.bf16.mxu0 0
      %4786 = vmatpush1.bf16.msra.mxu0 0
      %4787 = vmatprep.subr.bf16.mxu0 0
      %4788 = vmatpush1.bf16.msra.mxu0 0
      %4789 = vmatprep.subr.bf16.mxu0 0
      %4790 = vmatpush1.bf16.msra.mxu0 0
      %4791 = vmatprep.subr.bf16.mxu0 0
      %4792 = vmatpush1.bf16.msra.mxu0 0
      %4793 = vmatprep.subr.bf16.mxu0 0
      %4794 = vmatpush1.bf16.msra.mxu0 0
      %4795 = vmatprep.mubr.bf16.mxu0 0
      %4796 = vmatmul.mubr.bf16.gmra.mrb[0].mxu0 %v4713
      %v4797 = vpop.f32.mrb[0].mxu0
      %v4798 = vadd.f32 0.0, %v4797
      %v4799 = vpop.f32.mrb[0].mxu0
      %v4800 = vpop.f32.mrb[0].mxu0
      %v4801 = vadd.f32 0.0, %v4800
      %v4802 = vpop.f32.mrb[0].mxu0
      %4803 = vmatprep.mubr.bf16.mxu0 0
      %4804 = vmatmul.mubr.bf16.gmra.mrb[0].mxu0 %v4716
      %v4805 = vpop.f32.mrb[0].mxu0
      %v4806 = vadd.f32 0.0, %v4805
      %v4807 = vpop.f32.mrb[0].mxu0
      %v4808 = vpop.f32.mrb[0].mxu0
      %v4809 = vadd.f32 0.0, %v4808
      %v4810 = vpop.f32.mrb[0].mxu0
      %4811 = vmatprep.mubr.bf16.mxu0 0
      %4812 = vmatmul.mubr.bf16.gmra.mrb[0].mxu0 %v4719
      %v4813 = vpop.f32.mrb[0].mxu0
      %v4814 = vadd.f32 0.0, %v4813
      %v4815 = vpop.f32.mrb[0].mxu0
      %v4816 = vpop.f32.mrb[0].mxu0
      %v4817 = vadd.f32 0.0, %v4816
      %v4818 = vpop.f32.mrb[0].mxu0
      %4819 = vmatprep.mubr.bf16.mxu0 0
      %4820 = vmatmul.mubr.bf16.gmra.mrb[0].mxu0 %v4722
      %v4821 = vpop.f32.mrb[0].mxu0
      %v4822 = vadd.f32 0.0, %v4821
      %v4823 = vpop.f32.mrb[0].mxu0
      %v4824 = vpop.f32.mrb[0].mxu0
      %v4825 = vadd.f32 0.0, %v4824
      %v4826 = vpop.f32.mrb[0].mxu0
      %4827 = vmatprep.mubr.bf16.mxu0 0
      %4828 = vmatmul.mubr.bf16.gmra.mrb[0].mxu0 %v4725
      %v4829 = vpop.f32.mrb[0].mxu0
      %v4830 = vadd.f32 0.0, %v4829
      %v4831 = vpop.f32.mrb[0].mxu0
      %v4832 = vpop.f32.mrb[0].mxu0
      %v4833 = vadd.f32 0.0, %v4832
      %v4834 = vpop.f32.mrb[0].mxu0
      %4835 = vmatprep.mubr.bf16.mxu0 0
      %4836 = vmatmul.mubr.bf16.gmra.mrb[0].mxu0 %v4728
      %v4837 = vpop.f32.mrb[0].mxu0
      %v4838 = vadd.f32 0.0, %v4837
      %v4839 = vpop.f32.mrb[0].mxu0
      %v4840 = vpop.f32.mrb[0].mxu0
      %v4841 = vadd.f32 0.0, %v4840
      %v4842 = vpop.f32.mrb[0].mxu0
      %4843 = vmatprep.mubr.bf16.mxu0 0
      %4844 = vmatmul.mubr.bf16.gmra.mrb[0].mxu0 %v4731
      %v4845 = vpop.f32.mrb[0].mxu0
      %v4846 = vadd.f32 0.0, %v4845
      %v4847 = vpop.f32.mrb[0].mxu0
      %v4848 = vpop.f32.mrb[0].mxu0
      %v4849 = vadd.f32 0.0, %v4848
      %v4850 = vpop.f32.mrb[0].mxu0
      %4851 = vmatprep.mubr.bf16.mxu0 0
      %4852 = vmatmul.mubr.bf16.gmra.mrb[0].mxu0 %v4734
      %v4853 = vpop.f32.mrb[0].mxu0
      %v4854 = vadd.f32 0.0, %v4853
      %v4855 = vpop.f32.mrb[0].mxu0
      %v4856 = vpop.f32.mrb[0].mxu0
      %v4857 = vadd.f32 0.0, %v4856
      %v4858 = vpop.f32.mrb[0].mxu0
      %4859 = vmatprep.mubr.bf16.mxu0 0
      %4860 = vmatmul.mubr.bf16.gmra.mrb[0].mxu0 %v4737
      %v4861 = vpop.f32.mrb[0].mxu0
      %v4862 = vadd.f32 0.0, %v4861
      %v4863 = vpop.f32.mrb[0].mxu0
      %v4864 = vpop.f32.mrb[0].mxu0
      %v4865 = vadd.f32 0.0, %v4864
      %v4866 = vpop.f32.mrb[0].mxu0
      %4867 = vmatprep.mubr.bf16.mxu0 0
      %4868 = vmatmul.mubr.bf16.gmra.mrb[0].mxu0 %v4740
      %v4869 = vpop.f32.mrb[0].mxu0
      %v4870 = vadd.f32 0.0, %v4869
      %v4871 = vpop.f32.mrb[0].mxu0
      %v4872 = vpop.f32.mrb[0].mxu0
      %v4873 = vadd.f32 0.0, %v4872
      %v4874 = vpop.f32.mrb[0].mxu0
      %4875 = vmatprep.mubr.bf16.mxu0 0
      %4876 = vmatmul.mubr.bf16.gmra.mrb[0].mxu0 %v4743
      %v4877 = vpop.f32.mrb[0].mxu0
      %v4878 = vadd.f32 0.0, %v4877
      %v4879 = vpop.f32.mrb[0].mxu0
      %v4880 = vpop.f32.mrb[0].mxu0
      %v4881 = vadd.f32 0.0, %v4880
      %v4882 = vpop.f32.mrb[0].mxu0
      %4883 = vmatprep.mubr.bf16.mxu0 0
      %4884 = vmatmul.mubr.bf16.gmra.mrb[0].mxu0 %v4746
      %v4885 = vpop.f32.mrb[0].mxu0
      %v4886 = vadd.f32 0.0, %v4885
      %v4887 = vpop.f32.mrb[0].mxu0
      %v4888 = vpop.f32.mrb[0].mxu0
      %v4889 = vadd.f32 0.0, %v4888
      %v4890 = vpop.f32.mrb[0].mxu0
      %4891 = vmatprep.mubr.bf16.mxu0 0
      %4892 = vmatmul.mubr.bf16.gmra.mrb[0].mxu0 %v4749
      %v4893 = vpop.f32.mrb[0].mxu0
      %v4894 = vadd.f32 0.0, %v4893
      %v4895 = vpop.f32.mrb[0].mxu0
      %v4896 = vpop.f32.mrb[0].mxu0
      %v4897 = vadd.f32 0.0, %v4896
      %v4898 = vpop.f32.mrb[0].mxu0
      %4899 = vmatprep.mubr.bf16.mxu0 0
      %4900 = vmatmul.mubr.bf16.gmra.mrb[0].mxu0 %v4752
      %v4901 = vpop.f32.mrb[0].mxu0
      %v4902 = vadd.f32 0.0, %v4901
      %v4903 = vpop.f32.mrb[0].mxu0
      %v4904 = vpop.f32.mrb[0].mxu0
      %v4905 = vadd.f32 0.0, %v4904
      %v4906 = vpop.f32.mrb[0].mxu0
      %4907 = vmatprep.mubr.bf16.mxu0 0
      %4908 = vmatmul.mubr.bf16.gmra.mrb[0].mxu0 %v4755
      %v4909 = vpop.f32.mrb[0].mxu0
      %v4910 = vadd.f32 0.0, %v4909
      %v4911 = vpop.f32.mrb[0].mxu0
      %v4912 = vpop.f32.mrb[0].mxu0
      %v4913 = vadd.f32 0.0, %v4912
      %v4914 = vpop.f32.mrb[0].mxu0
      %4915 = vmatprep.mubr.bf16.mxu0 0
      %4916 = vmatmul.mubr.bf16.gmra.mrb[0].mxu0 %v4758
      %v4917 = vpop.f32.mrb[0].mxu0
      %v4918 = vadd.f32 0.0, %v4917
      %v4919 = vpop.f32.mrb[0].mxu0
      %v4920 = vpop.f32.mrb[0].mxu0
      %v4921 = vadd.f32 0.0, %v4920
      %v4922 = vpop.f32.mrb[0].mxu0
      %4923 = vdwg.mxu0
      %v4924 = vadd.f32 %v4246, %v4798
      %v4925 = vadd.f32 %v4247, %v4801
      %v4926 = vadd.f32 %v4248, %v4806
      %v4927 = vadd.f32 %v4249, %v4809
      %v4928 = vadd.f32 %v4250, %v4814
      %v4929 = vadd.f32 %v4251, %v4817
      %v4930 = vadd.f32 %v4252, %v4822
      %v4931 = vadd.f32 %v4253, %v4825
      %v4932 = vadd.f32 %v4254, %v4830
      %v4933 = vadd.f32 %v4255, %v4833
      %v4934 = vadd.f32 %v4256, %v4838
      %v4935 = vadd.f32 %v4257, %v4841
      %v4936 = vadd.f32 %v4258, %v4846
      %v4937 = vadd.f32 %v4259, %v4849
      %v4938 = vadd.f32 %v4260, %v4854
      %v4939 = vadd.f32 %v4261, %v4857
      %v4940 = vadd.f32 %v4262, %v4862
      %v4941 = vadd.f32 %v4263, %v4865
      %v4942 = vadd.f32 %v4264, %v4870
      %v4943 = vadd.f32 %v4265, %v4873
      %v4944 = vadd.f32 %v4266, %v4878
      %v4945 = vadd.f32 %v4267, %v4881
      %v4946 = vadd.f32 %v4268, %v4886
      %v4947 = vadd.f32 %v4269, %v4889
      %v4948 = vadd.f32 %v4270, %v4894
      %v4949 = vadd.f32 %v4271, %v4897
      %v4950 = vadd.f32 %v4272, %v4902
      %v4951 = vadd.f32 %v4273, %v4905
      %v4952 = vadd.f32 %v4274, %v4910
      %v4953 = vadd.f32 %v4275, %v4913
      %v4954 = vadd.f32 %v4276, %v4918
      %v4955 = vadd.f32 %v4277, %v4921
      %4956 = vst [vmem:[%s170] sm:$0xff] %v4924
      %4957 = vst [vmem:[%s170 + $0x8] sm:$0xff] %v4925
      %4958 = vst [vmem:[%s170 + $0x10] sm:$0xff] %v4926
      %4959 = vst [vmem:[%s170 + $0x18] sm:$0xff] %v4927
      %4960 = vst [vmem:[%s170 + $0x20] sm:$0xff] %v4928
      %4961 = vst [vmem:[%s170 + $0x28] sm:$0xff] %v4929
      %4962 = vst [vmem:[%s170 + $0x30] sm:$0xff] %v4930
      %4963 = vst [vmem:[%s170 + $0x38] sm:$0xff] %v4931
      %4964 = vst [vmem:[%s170 + $0x40] sm:$0xff] %v4932
      %4965 = vst [vmem:[%s170 + $0x48] sm:$0xff] %v4933
      %4966 = vst [vmem:[%s170 + $0x50] sm:$0xff] %v4934
      %4967 = vst [vmem:[%s170 + $0x58] sm:$0xff] %v4935
      %4968 = vst [vmem:[%s170 + $0x60] sm:$0xff] %v4936
      %4969 = vst [vmem:[%s170 + $0x68] sm:$0xff] %v4937
      %4970 = vst [vmem:[%s170 + $0x70] sm:$0xff] %v4938
      %4971 = vst [vmem:[%s170 + $0x78] sm:$0xff] %v4939
      %4972 = vst [vmem:[%s170 + $0x80] sm:$0xff] %v4940
      %4973 = vst [vmem:[%s170 + $0x88] sm:$0xff] %v4941
      %4974 = vst [vmem:[%s170 + $0x90] sm:$0xff] %v4942
      %4975 = vst [vmem:[%s170 + $0x98] sm:$0xff] %v4943
      %4976 = vst [vmem:[%s170 + $0xa0] sm:$0xff] %v4944
      %4977 = vst [vmem:[%s170 + $0xa8] sm:$0xff] %v4945
      %4978 = vst [vmem:[%s170 + $0xb0] sm:$0xff] %v4946
      %4979 = vst [vmem:[%s170 + $0xb8] sm:$0xff] %v4947
      %4980 = vst [vmem:[%s170 + $0xc0] sm:$0xff] %v4948
      %4981 = vst [vmem:[%s170 + $0xc8] sm:$0xff] %v4949
      %4982 = vst [vmem:[%s170 + $0xd0] sm:$0xff] %v4950
      %4983 = vst [vmem:[%s170 + $0xd8] sm:$0xff] %v4951
      %4984 = vst [vmem:[%s170 + $0xe0] sm:$0xff] %v4952
      %4985 = vst [vmem:[%s170 + $0xe8] sm:$0xff] %v4953
      %4986 = vst [vmem:[%s170 + $0xf0] sm:$0xff] %v4954
      %4987 = vst [vmem:[%s170 + $0xf8] sm:$0xff] %v4955
      %v4988 = vld [vmem:[%s3775] sm:$0xe]
      %v4989 = vld [vmem:[%s3775 + $0x4] sm:$0xf]
      %v4990 = vld [vmem:[%s3775 + $0x8] sm:$0x1]
      %v4991 = vld [vmem:[%s3775 + $0xc] sm:$0xe]
      %v4992 = vld [vmem:[%s3775 + $0x10] sm:$0xf]
      %v4993 = vld [vmem:[%s3775 + $0x14] sm:$0x1]
      %v4994 = vld [vmem:[%s3775 + $0x18] sm:$0xe]
      %v4995 = vld [vmem:[%s3775 + $0x1c] sm:$0xf]
      %v4996 = vld [vmem:[%s3775 + $0x20] sm:$0x1]
      %v4997 = vld [vmem:[%s3775 + $0x24] sm:$0xe]
      %v4998 = vld [vmem:[%s3775 + $0x28] sm:$0xf]
      %v4999 = vld [vmem:[%s3775 + $0x2c] sm:$0x1]
      %v5000 = vld [vmem:[%s3775 + $0x30] sm:$0xe]
      %v5001 = vld [vmem:[%s3775 + $0x34] sm:$0xf]
      %v5002 = vld [vmem:[%s3775 + $0x38] sm:$0x1]
      %v5003 = vld [vmem:[%s3775 + $0x3c] sm:$0xe]
      %v5004 = vld [vmem:[%s3775 + $0x40] sm:$0xf]
      %v5005 = vld [vmem:[%s3775 + $0x44] sm:$0x1]
      %v5006 = vld [vmem:[%s3775 + $0x48] sm:$0xe]
      %v5007 = vld [vmem:[%s3775 + $0x4c] sm:$0xf]
      %v5008 = vld [vmem:[%s3775 + $0x50] sm:$0x1]
      %v5009 = vld [vmem:[%s3775 + $0x54] sm:$0xe]
      %v5010 = vld [vmem:[%s3775 + $0x58] sm:$0xf]
      %v5011 = vld [vmem:[%s3775 + $0x5c] sm:$0x1]
      %v5012 = vld [vmem:[%s3775 + $0x60] sm:$0xe]
      %v5013 = vld [vmem:[%s3775 + $0x64] sm:$0xf]
      %v5014 = vld [vmem:[%s3775 + $0x68] sm:$0x1]
      %v5015 = vld [vmem:[%s3775 + $0x6c] sm:$0xe]
      %v5016 = vld [vmem:[%s3775 + $0x70] sm:$0xf]
      %v5017 = vld [vmem:[%s3775 + $0x74] sm:$0x1]
      %v5018 = vld [vmem:[%s3775 + $0x78] sm:$0xe]
      %v5019 = vld [vmem:[%s3775 + $0x7c] sm:$0xf]
      %v5020 = vld [vmem:[%s3775 + $0x80] sm:$0x1]
      %v5021 = vld [vmem:[%s3775 + $0x84] sm:$0xe]
      %v5022 = vld [vmem:[%s3775 + $0x88] sm:$0xf]
      %v5023 = vld [vmem:[%s3775 + $0x8c] sm:$0x1]
      %v5024 = vld [vmem:[%s3775 + $0x90] sm:$0xe]
      %v5025 = vld [vmem:[%s3775 + $0x94] sm:$0xf]
      %v5026 = vld [vmem:[%s3775 + $0x98] sm:$0x1]
      %v5027 = vld [vmem:[%s3775 + $0x9c] sm:$0xe]
      %v5028 = vld [vmem:[%s3775 + $0xa0] sm:$0xf]
      %v5029 = vld [vmem:[%s3775 + $0xa4] sm:$0x1]
      %v5030 = vld [vmem:[%s3775 + $0xa8] sm:$0xe]
      %v5031 = vld [vmem:[%s3775 + $0xac] sm:$0xf]
      %v5032 = vld [vmem:[%s3775 + $0xb0] sm:$0x1]
      %v5033 = vld [vmem:[%s3775 + $0xb4] sm:$0xe]
      %v5034 = vld [vmem:[%s3775 + $0xb8] sm:$0xf]
      %v5035 = vld [vmem:[%s3775 + $0xbc] sm:$0x1]
      %v5036 = vld [vmem:[%s170] sm:$0xff]
      %v5037 = vld [vmem:[%s170 + $0x8] sm:$0xff]
      %v5038 = vld [vmem:[%s170 + $0x10] sm:$0xff]
      %v5039 = vld [vmem:[%s170 + $0x18] sm:$0xff]
      %v5040 = vld [vmem:[%s170 + $0x20] sm:$0xff]
      %v5041 = vld [vmem:[%s170 + $0x28] sm:$0xff]
      %v5042 = vld [vmem:[%s170 + $0x30] sm:$0xff]
      %v5043 = vld [vmem:[%s170 + $0x38] sm:$0xff]
      %v5044 = vld [vmem:[%s170 + $0x40] sm:$0xff]
      %v5045 = vld [vmem:[%s170 + $0x48] sm:$0xff]
      %v5046 = vld [vmem:[%s170 + $0x50] sm:$0xff]
      %v5047 = vld [vmem:[%s170 + $0x58] sm:$0xff]
      %v5048 = vld [vmem:[%s170 + $0x60] sm:$0xff]
      %v5049 = vld [vmem:[%s170 + $0x68] sm:$0xff]
      %v5050 = vld [vmem:[%s170 + $0x70] sm:$0xff]
      %v5051 = vld [vmem:[%s170 + $0x78] sm:$0xff]
      %v5052 = vld [vmem:[%s170 + $0x80] sm:$0xff]
      %v5053 = vld [vmem:[%s170 + $0x88] sm:$0xff]
      %v5054 = vld [vmem:[%s170 + $0x90] sm:$0xff]
      %v5055 = vld [vmem:[%s170 + $0x98] sm:$0xff]
      %v5056 = vld [vmem:[%s170 + $0xa0] sm:$0xff]
      %v5057 = vld [vmem:[%s170 + $0xa8] sm:$0xff]
      %v5058 = vld [vmem:[%s170 + $0xb0] sm:$0xff]
      %v5059 = vld [vmem:[%s170 + $0xb8] sm:$0xff]
      %v5060 = vld [vmem:[%s170 + $0xc0] sm:$0xff]
      %v5061 = vld [vmem:[%s170 + $0xc8] sm:$0xff]
      %v5062 = vld [vmem:[%s170 + $0xd0] sm:$0xff]
      %v5063 = vld [vmem:[%s170 + $0xd8] sm:$0xff]
      %v5064 = vld [vmem:[%s170 + $0xe0] sm:$0xff]
      %v5065 = vld [vmem:[%s170 + $0xe8] sm:$0xff]
      %v5066 = vld [vmem:[%s170 + $0xf0] sm:$0xff]
      %v5067 = vld [vmem:[%s170 + $0xf8] sm:$0xff]
      %v5116 = vrot.slane %v4988, 5
      %v5117 = vrot.slane %v5116, 4
      %v5118 = vrot.slane %v4989, 5
      %v5119 = vsel %vm1557, %v5117, %v5118
      %v5120 = vrot.slane %v5118, 4
      %v5121 = vrot.slane %v4990, 5
      %v5122 = vsel %vm1557, %v5120, %v5121
      %v5123 = vrot.slane %v4991, 5
      %v5124 = vrot.slane %v5123, 4
      %v5125 = vrot.slane %v4992, 5
      %v5126 = vsel %vm1557, %v5124, %v5125
      %v5127 = vrot.slane %v5125, 4
      %v5128 = vrot.slane %v4993, 5
      %v5129 = vsel %vm1557, %v5127, %v5128
      %v5130 = vrot.slane %v4994, 5
      %v5131 = vrot.slane %v5130, 4
      %v5132 = vrot.slane %v4995, 5
      %v5133 = vsel %vm1557, %v5131, %v5132
      %v5134 = vrot.slane %v5132, 4
      %v5135 = vrot.slane %v4996, 5
      %v5136 = vsel %vm1557, %v5134, %v5135
      %v5137 = vrot.slane %v4997, 5
      %v5138 = vrot.slane %v5137, 4
      %v5139 = vrot.slane %v4998, 5
      %v5140 = vsel %vm1557, %v5138, %v5139
      %v5141 = vrot.slane %v5139, 4
      %v5142 = vrot.slane %v4999, 5
      %v5143 = vsel %vm1557, %v5141, %v5142
      %v5144 = vrot.slane %v5000, 5
      %v5145 = vrot.slane %v5144, 4
      %v5146 = vrot.slane %v5001, 5
      %v5147 = vsel %vm1557, %v5145, %v5146
      %v5148 = vrot.slane %v5146, 4
      %v5149 = vrot.slane %v5002, 5
      %v5150 = vsel %vm1557, %v5148, %v5149
      %v5151 = vrot.slane %v5003, 5
      %v5152 = vrot.slane %v5151, 4
      %v5153 = vrot.slane %v5004, 5
      %v5154 = vsel %vm1557, %v5152, %v5153
      %v5155 = vrot.slane %v5153, 4
      %v5156 = vrot.slane %v5005, 5
      %v5157 = vsel %vm1557, %v5155, %v5156
      %v5158 = vrot.slane %v5006, 5
      %v5159 = vrot.slane %v5158, 4
      %v5160 = vrot.slane %v5007, 5
      %v5161 = vsel %vm1557, %v5159, %v5160
      %v5162 = vrot.slane %v5160, 4
      %v5163 = vrot.slane %v5008, 5
      %v5164 = vsel %vm1557, %v5162, %v5163
      %v5165 = vrot.slane %v5009, 5
      %v5166 = vrot.slane %v5165, 4
      %v5167 = vrot.slane %v5010, 5
      %v5168 = vsel %vm1557, %v5166, %v5167
      %v5169 = vrot.slane %v5167, 4
      %v5170 = vrot.slane %v5011, 5
      %v5171 = vsel %vm1557, %v5169, %v5170
      %v5172 = vrot.slane %v5012, 5
      %v5173 = vrot.slane %v5172, 4
      %v5174 = vrot.slane %v5013, 5
      %v5175 = vsel %vm1557, %v5173, %v5174
      %v5176 = vrot.slane %v5174, 4
      %v5177 = vrot.slane %v5014, 5
      %v5178 = vsel %vm1557, %v5176, %v5177
      %v5179 = vrot.slane %v5015, 5
      %v5180 = vrot.slane %v5179, 4
      %v5181 = vrot.slane %v5016, 5
      %v5182 = vsel %vm1557, %v5180, %v5181
      %v5183 = vrot.slane %v5181, 4
      %v5184 = vrot.slane %v5017, 5
      %v5185 = vsel %vm1557, %v5183, %v5184
      %v5186 = vrot.slane %v5018, 5
      %v5187 = vrot.slane %v5186, 4
      %v5188 = vrot.slane %v5019, 5
      %v5189 = vsel %vm1557, %v5187, %v5188
      %v5190 = vrot.slane %v5188, 4
      %v5191 = vrot.slane %v5020, 5
      %v5192 = vsel %vm1557, %v5190, %v5191
      %v5193 = vrot.slane %v5021, 5
      %v5194 = vrot.slane %v5193, 4
      %v5195 = vrot.slane %v5022, 5
      %v5196 = vsel %vm1557, %v5194, %v5195
      %v5197 = vrot.slane %v5195, 4
      %v5198 = vrot.slane %v5023, 5
      %v5199 = vsel %vm1557, %v5197, %v5198
      %v5200 = vrot.slane %v5024, 5
      %v5201 = vrot.slane %v5200, 4
      %v5202 = vrot.slane %v5025, 5
      %v5203 = vsel %vm1557, %v5201, %v5202
      %v5204 = vrot.slane %v5202, 4
      %v5205 = vrot.slane %v5026, 5
      %v5206 = vsel %vm1557, %v5204, %v5205
      %v5207 = vrot.slane %v5027, 5
      %v5208 = vrot.slane %v5207, 4
      %v5209 = vrot.slane %v5028, 5
      %v5210 = vsel %vm1557, %v5208, %v5209
      %v5211 = vrot.slane %v5209, 4
      %v5212 = vrot.slane %v5029, 5
      %v5213 = vsel %vm1557, %v5211, %v5212
      %v5214 = vrot.slane %v5030, 5
      %v5215 = vrot.slane %v5214, 4
      %v5216 = vrot.slane %v5031, 5
      %v5217 = vsel %vm1557, %v5215, %v5216
      %v5218 = vrot.slane %v5216, 4
      %v5219 = vrot.slane %v5032, 5
      %v5220 = vsel %vm1557, %v5218, %v5219
      %v5221 = vrot.slane %v5033, 5
      %v5222 = vrot.slane %v5221, 4
      %v5223 = vrot.slane %v5034, 5
      %v5224 = vsel %vm1557, %v5222, %v5223
      %v5225 = vrot.slane %v5223, 4
      %v5226 = vrot.slane %v5035, 5
      %v5227 = vsel %vm1557, %v5225, %v5226
      %s5228 = scalar_lea.vmem %s1, 16
      %v5229 = vld [vmem:[%s5228] sm:$0x3]
      %v5230 = vunpack.c.l.b16 %v5119
      %v5231 = vunpack.c.l.b16 %v5122
      %v5232 = vunpack.c.l.b16 %v5126
      %v5233 = vunpack.c.l.b16 %v5129
      %v5234 = vunpack.c.l.b16 %v5133
      %v5235 = vunpack.c.l.b16 %v5136
      %v5236 = vunpack.c.l.b16 %v5140
      %v5237 = vunpack.c.l.b16 %v5143
      %v5238 = vunpack.c.l.b16 %v5147
      %v5239 = vunpack.c.l.b16 %v5150
      %v5240 = vunpack.c.l.b16 %v5154
      %v5241 = vunpack.c.l.b16 %v5157
      %v5242 = vunpack.c.l.b16 %v5161
      %v5243 = vunpack.c.l.b16 %v5164
      %v5244 = vunpack.c.l.b16 %v5168
      %v5245 = vunpack.c.l.b16 %v5171
      %v5246 = vunpack.c.l.b16 %v5175
      %v5247 = vunpack.c.l.b16 %v5178
      %v5248 = vunpack.c.l.b16 %v5182
      %v5249 = vunpack.c.l.b16 %v5185
      %v5250 = vunpack.c.l.b16 %v5189
      %v5251 = vunpack.c.l.b16 %v5192
      %v5252 = vunpack.c.l.b16 %v5196
      %v5253 = vunpack.c.l.b16 %v5199
      %v5254 = vunpack.c.l.b16 %v5203
      %v5255 = vunpack.c.l.b16 %v5206
      %v5256 = vunpack.c.l.b16 %v5210
      %v5257 = vunpack.c.l.b16 %v5213
      %v5258 = vunpack.c.l.b16 %v5217
      %v5259 = vunpack.c.l.b16 %v5220
      %v5260 = vunpack.c.l.b16 %v5224
      %v5261 = vunpack.c.l.b16 %v5227
      %v5262 = vpack.c.b16 %v5231, %v5230
      %v5263 = vpack.c.b16 %v5233, %v5232
      %v5264 = vpack.c.b16 %v5235, %v5234
      %v5265 = vpack.c.b16 %v5237, %v5236
      %v5266 = vpack.c.b16 %v5239, %v5238
      %v5267 = vpack.c.b16 %v5241, %v5240
      %v5268 = vpack.c.b16 %v5243, %v5242
      %v5269 = vpack.c.b16 %v5245, %v5244
      %v5270 = vpack.c.b16 %v5247, %v5246
      %v5271 = vpack.c.b16 %v5249, %v5248
      %v5272 = vpack.c.b16 %v5251, %v5250
      %v5273 = vpack.c.b16 %v5253, %v5252
      %v5274 = vpack.c.b16 %v5255, %v5254
      %v5275 = vpack.c.b16 %v5257, %v5256
      %v5276 = vpack.c.b16 %v5259, %v5258
      %v5277 = vpack.c.b16 %v5261, %v5260
      %v5279 = vsel %vm356, %v5262, 0
      %v5282 = vsel %vm356, %v5263, 0
      %v5285 = vsel %vm356, %v5264, 0
      %v5288 = vsel %vm356, %v5265, 0
      %v5291 = vsel %vm356, %v5266, 0
      %v5294 = vsel %vm356, %v5267, 0
      %v5297 = vsel %vm356, %v5268, 0
      %v5300 = vsel %vm356, %v5269, 0
      %v5303 = vsel %vm356, %v5270, 0
      %v5306 = vsel %vm356, %v5271, 0
      %v5309 = vsel %vm356, %v5272, 0
      %v5312 = vsel %vm356, %v5273, 0
      %v5315 = vsel %vm356, %v5274, 0
      %v5318 = vsel %vm356, %v5275, 0
      %v5321 = vsel %vm356, %v5276, 0
      %v5324 = vsel %vm356, %v5277, 0
      %v5327 = vsel %vm405, %v5229, 0
      %5329 = vmatprep.subr.bf16.mxu0 0
      %5330 = vmatpush1.bf16.msra.mxu0 %v5327
      %5331 = vmatprep.subr.bf16.mxu0 0
      %5332 = vmatpush1.bf16.msra.mxu0 0
      %5333 = vmatprep.subr.bf16.mxu0 0
      %5334 = vmatpush1.bf16.msra.mxu0 0
      %5335 = vmatprep.subr.bf16.mxu0 0
      %5336 = vmatpush1.bf16.msra.mxu0 0
      %5337 = vmatprep.subr.bf16.mxu0 0
      %5338 = vmatpush1.bf16.msra.mxu0 0
      %5339 = vmatprep.subr.bf16.mxu0 0
      %5340 = vmatpush1.bf16.msra.mxu0 0
      %5341 = vmatprep.subr.bf16.mxu0 0
      %5342 = vmatpush1.bf16.msra.mxu0 0
      %5343 = vmatprep.subr.bf16.mxu0 0
      %5344 = vmatpush1.bf16.msra.mxu0 0
      %5345 = vmatprep.subr.bf16.mxu0 0
      %5346 = vmatpush1.bf16.msra.mxu0 0
      %5347 = vmatprep.subr.bf16.mxu0 0
      %5348 = vmatpush1.bf16.msra.mxu0 0
      %5349 = vmatprep.subr.bf16.mxu0 0
      %5350 = vmatpush1.bf16.msra.mxu0 0
      %5351 = vmatprep.subr.bf16.mxu0 0
      %5352 = vmatpush1.bf16.msra.mxu0 0
      %5353 = vmatprep.subr.bf16.mxu0 0
      %5354 = vmatpush1.bf16.msra.mxu0 0
      %5355 = vmatprep.subr.bf16.mxu0 0
      %5356 = vmatpush1.bf16.msra.mxu0 0
      %5357 = vmatprep.subr.bf16.mxu0 0
      %5358 = vmatpush1.bf16.msra.mxu0 0
      %5359 = vmatprep.subr.bf16.mxu0 0
      %5360 = vmatpush1.bf16.msra.mxu0 0
      %5361 = vmatprep.mubr.bf16.mxu0 0
      %5362 = vmatmul.mubr.bf16.gmra.mrb[0].mxu0 %v5279
      %v5363 = vpop.f32.mrb[0].mxu0
      %v5364 = vadd.f32 0.0, %v5363
      %v5365 = vpop.f32.mrb[0].mxu0
      %v5366 = vpop.f32.mrb[0].mxu0
      %v5367 = vadd.f32 0.0, %v5366
      %v5368 = vpop.f32.mrb[0].mxu0
      %5369 = vmatprep.mubr.bf16.mxu0 0
      %5370 = vmatmul.mubr.bf16.gmra.mrb[0].mxu0 %v5282
      %v5371 = vpop.f32.mrb[0].mxu0
      %v5372 = vadd.f32 0.0, %v5371
      %v5373 = vpop.f32.mrb[0].mxu0
      %v5374 = vpop.f32.mrb[0].mxu0
      %v5375 = vadd.f32 0.0, %v5374
      %v5376 = vpop.f32.mrb[0].mxu0
      %5377 = vmatprep.mubr.bf16.mxu0 0
      %5378 = vmatmul.mubr.bf16.gmra.mrb[0].mxu0 %v5285
      %v5379 = vpop.f32.mrb[0].mxu0
      %v5380 = vadd.f32 0.0, %v5379
      %v5381 = vpop.f32.mrb[0].mxu0
      %v5382 = vpop.f32.mrb[0].mxu0
      %v5383 = vadd.f32 0.0, %v5382
      %v5384 = vpop.f32.mrb[0].mxu0
      %5385 = vmatprep.mubr.bf16.mxu0 0
      %5386 = vmatmul.mubr.bf16.gmra.mrb[0].mxu0 %v5288
      %v5387 = vpop.f32.mrb[0].mxu0
      %v5388 = vadd.f32 0.0, %v5387
      %v5389 = vpop.f32.mrb[0].mxu0
      %v5390 = vpop.f32.mrb[0].mxu0
      %v5391 = vadd.f32 0.0, %v5390
      %v5392 = vpop.f32.mrb[0].mxu0
      %5393 = vmatprep.mubr.bf16.mxu0 0
      %5394 = vmatmul.mubr.bf16.gmra.mrb[0].mxu0 %v5291
      %v5395 = vpop.f32.mrb[0].mxu0
      %v5396 = vadd.f32 0.0, %v5395
      %v5397 = vpop.f32.mrb[0].mxu0
      %v5398 = vpop.f32.mrb[0].mxu0
      %v5399 = vadd.f32 0.0, %v5398
      %v5400 = vpop.f32.mrb[0].mxu0
      %5401 = vmatprep.mubr.bf16.mxu0 0
      %5402 = vmatmul.mubr.bf16.gmra.mrb[0].mxu0 %v5294
      %v5403 = vpop.f32.mrb[0].mxu0
      %v5404 = vadd.f32 0.0, %v5403
      %v5405 = vpop.f32.mrb[0].mxu0
      %v5406 = vpop.f32.mrb[0].mxu0
      %v5407 = vadd.f32 0.0, %v5406
      %v5408 = vpop.f32.mrb[0].mxu0
      %5409 = vmatprep.mubr.bf16.mxu0 0
      %5410 = vmatmul.mubr.bf16.gmra.mrb[0].mxu0 %v5297
      %v5411 = vpop.f32.mrb[0].mxu0
      %v5412 = vadd.f32 0.0, %v5411
      %v5413 = vpop.f32.mrb[0].mxu0
      %v5414 = vpop.f32.mrb[0].mxu0
      %v5415 = vadd.f32 0.0, %v5414
      %v5416 = vpop.f32.mrb[0].mxu0
      %5417 = vmatprep.mubr.bf16.mxu0 0
      %5418 = vmatmul.mubr.bf16.gmra.mrb[0].mxu0 %v5300
      %v5419 = vpop.f32.mrb[0].mxu0
      %v5420 = vadd.f32 0.0, %v5419
      %v5421 = vpop.f32.mrb[0].mxu0
      %v5422 = vpop.f32.mrb[0].mxu0
      %v5423 = vadd.f32 0.0, %v5422
      %v5424 = vpop.f32.mrb[0].mxu0
      %5425 = vmatprep.mubr.bf16.mxu0 0
      %5426 = vmatmul.mubr.bf16.gmra.mrb[0].mxu0 %v5303
      %v5427 = vpop.f32.mrb[0].mxu0
      %v5428 = vadd.f32 0.0, %v5427
      %v5429 = vpop.f32.mrb[0].mxu0
      %v5430 = vpop.f32.mrb[0].mxu0
      %v5431 = vadd.f32 0.0, %v5430
      %v5432 = vpop.f32.mrb[0].mxu0
      %5433 = vmatprep.mubr.bf16.mxu0 0
      %5434 = vmatmul.mubr.bf16.gmra.mrb[0].mxu0 %v5306
      %v5435 = vpop.f32.mrb[0].mxu0
      %v5436 = vadd.f32 0.0, %v5435
      %v5437 = vpop.f32.mrb[0].mxu0
      %v5438 = vpop.f32.mrb[0].mxu0
      %v5439 = vadd.f32 0.0, %v5438
      %v5440 = vpop.f32.mrb[0].mxu0
      %5441 = vmatprep.mubr.bf16.mxu0 0
      %5442 = vmatmul.mubr.bf16.gmra.mrb[0].mxu0 %v5309
      %v5443 = vpop.f32.mrb[0].mxu0
      %v5444 = vadd.f32 0.0, %v5443
      %v5445 = vpop.f32.mrb[0].mxu0
      %v5446 = vpop.f32.mrb[0].mxu0
      %v5447 = vadd.f32 0.0, %v5446
      %v5448 = vpop.f32.mrb[0].mxu0
      %5449 = vmatprep.mubr.bf16.mxu0 0
      %5450 = vmatmul.mubr.bf16.gmra.mrb[0].mxu0 %v5312
      %v5451 = vpop.f32.mrb[0].mxu0
      %v5452 = vadd.f32 0.0, %v5451
      %v5453 = vpop.f32.mrb[0].mxu0
      %v5454 = vpop.f32.mrb[0].mxu0
      %v5455 = vadd.f32 0.0, %v5454
      %v5456 = vpop.f32.mrb[0].mxu0
      %5457 = vmatprep.mubr.bf16.mxu0 0
      %5458 = vmatmul.mubr.bf16.gmra.mrb[0].mxu0 %v5315
      %v5459 = vpop.f32.mrb[0].mxu0
      %v5460 = vadd.f32 0.0, %v5459
      %v5461 = vpop.f32.mrb[0].mxu0
      %v5462 = vpop.f32.mrb[0].mxu0
      %v5463 = vadd.f32 0.0, %v5462
      %v5464 = vpop.f32.mrb[0].mxu0
      %5465 = vmatprep.mubr.bf16.mxu0 0
      %5466 = vmatmul.mubr.bf16.gmra.mrb[0].mxu0 %v5318
      %v5467 = vpop.f32.mrb[0].mxu0
      %v5468 = vadd.f32 0.0, %v5467
      %v5469 = vpop.f32.mrb[0].mxu0
      %v5470 = vpop.f32.mrb[0].mxu0
      %v5471 = vadd.f32 0.0, %v5470
      %v5472 = vpop.f32.mrb[0].mxu0
      %5473 = vmatprep.mubr.bf16.mxu0 0
      %5474 = vmatmul.mubr.bf16.gmra.mrb[0].mxu0 %v5321
      %v5475 = vpop.f32.mrb[0].mxu0
      %v5476 = vadd.f32 0.0, %v5475
      %v5477 = vpop.f32.mrb[0].mxu0
      %v5478 = vpop.f32.mrb[0].mxu0
      %v5479 = vadd.f32 0.0, %v5478
      %v5480 = vpop.f32.mrb[0].mxu0
      %5481 = vmatprep.mubr.bf16.mxu0 0
      %5482 = vmatmul.mubr.bf16.gmra.mrb[0].mxu0 %v5324
      %v5483 = vpop.f32.mrb[0].mxu0
      %v5484 = vadd.f32 0.0, %v5483
      %v5485 = vpop.f32.mrb[0].mxu0
      %v5486 = vpop.f32.mrb[0].mxu0
      %v5487 = vadd.f32 0.0, %v5486
      %v5488 = vpop.f32.mrb[0].mxu0
      %5489 = vdwg.mxu0
      %v5490 = vadd.f32 %v5036, %v5364
      %v5491 = vadd.f32 %v5037, %v5367
      %v5492 = vadd.f32 %v5038, %v5372
      %v5493 = vadd.f32 %v5039, %v5375
      %v5494 = vadd.f32 %v5040, %v5380
      %v5495 = vadd.f32 %v5041, %v5383
      %v5496 = vadd.f32 %v5042, %v5388
      %v5497 = vadd.f32 %v5043, %v5391
      %v5498 = vadd.f32 %v5044, %v5396
      %v5499 = vadd.f32 %v5045, %v5399
      %v5500 = vadd.f32 %v5046, %v5404
      %v5501 = vadd.f32 %v5047, %v5407
      %v5502 = vadd.f32 %v5048, %v5412
      %v5503 = vadd.f32 %v5049, %v5415
      %v5504 = vadd.f32 %v5050, %v5420
      %v5505 = vadd.f32 %v5051, %v5423
      %v5506 = vadd.f32 %v5052, %v5428
      %v5507 = vadd.f32 %v5053, %v5431
      %v5508 = vadd.f32 %v5054, %v5436
      %v5509 = vadd.f32 %v5055, %v5439
      %v5510 = vadd.f32 %v5056, %v5444
      %v5511 = vadd.f32 %v5057, %v5447
      %v5512 = vadd.f32 %v5058, %v5452
      %v5513 = vadd.f32 %v5059, %v5455
      %v5514 = vadd.f32 %v5060, %v5460
      %v5515 = vadd.f32 %v5061, %v5463
      %v5516 = vadd.f32 %v5062, %v5468
      %v5517 = vadd.f32 %v5063, %v5471
      %v5518 = vadd.f32 %v5064, %v5476
      %v5519 = vadd.f32 %v5065, %v5479
      %v5520 = vadd.f32 %v5066, %v5484
      %v5521 = vadd.f32 %v5067, %v5487
      %5522 = vst [vmem:[%s170] sm:$0xff] %v5490
      %5523 = vst [vmem:[%s170 + $0x8] sm:$0xff] %v5491
      %5524 = vst [vmem:[%s170 + $0x10] sm:$0xff] %v5492
      %5525 = vst [vmem:[%s170 + $0x18] sm:$0xff] %v5493
      %5526 = vst [vmem:[%s170 + $0x20] sm:$0xff] %v5494
      %5527 = vst [vmem:[%s170 + $0x28] sm:$0xff] %v5495
      %5528 = vst [vmem:[%s170 + $0x30] sm:$0xff] %v5496
      %5529 = vst [vmem:[%s170 + $0x38] sm:$0xff] %v5497
      %5530 = vst [vmem:[%s170 + $0x40] sm:$0xff] %v5498
      %5531 = vst [vmem:[%s170 + $0x48] sm:$0xff] %v5499
      %5532 = vst [vmem:[%s170 + $0x50] sm:$0xff] %v5500
      %5533 = vst [vmem:[%s170 + $0x58] sm:$0xff] %v5501
      %5534 = vst [vmem:[%s170 + $0x60] sm:$0xff] %v5502
      %5535 = vst [vmem:[%s170 + $0x68] sm:$0xff] %v5503
      %5536 = vst [vmem:[%s170 + $0x70] sm:$0xff] %v5504
      %5537 = vst [vmem:[%s170 + $0x78] sm:$0xff] %v5505
      %5538 = vst [vmem:[%s170 + $0x80] sm:$0xff] %v5506
      %5539 = vst [vmem:[%s170 + $0x88] sm:$0xff] %v5507
      %5540 = vst [vmem:[%s170 + $0x90] sm:$0xff] %v5508
      %5541 = vst [vmem:[%s170 + $0x98] sm:$0xff] %v5509
      %5542 = vst [vmem:[%s170 + $0xa0] sm:$0xff] %v5510
      %5543 = vst [vmem:[%s170 + $0xa8] sm:$0xff] %v5511
      %5544 = vst [vmem:[%s170 + $0xb0] sm:$0xff] %v5512
      %5545 = vst [vmem:[%s170 + $0xb8] sm:$0xff] %v5513
      %5546 = vst [vmem:[%s170 + $0xc0] sm:$0xff] %v5514
      %5547 = vst [vmem:[%s170 + $0xc8] sm:$0xff] %v5515
      %5548 = vst [vmem:[%s170 + $0xd0] sm:$0xff] %v5516
      %5549 = vst [vmem:[%s170 + $0xd8] sm:$0xff] %v5517
      %5550 = vst [vmem:[%s170 + $0xe0] sm:$0xff] %v5518
      %5551 = vst [vmem:[%s170 + $0xe8] sm:$0xff] %v5519
      %5552 = vst [vmem:[%s170 + $0xf0] sm:$0xff] %v5520
      %5553 = vst [vmem:[%s170 + $0xf8] sm:$0xff] %v5521
      %p5554 = scmp.lt.s32.totalorder %s14, 1
      %s5555 = scalar_select %p5554, %s14, 1
      %s5556 = smul.addr %s5555, 32
      %s5557 = smul.addr %s5556, 8
      %s5558 = scalar_lea.vmem %s3, %s5557
      // Predicated region
      $region33: #{a_call__.1} parent=31 // pred_check
        %p5559 = pneg %p100
      $region34: #{a_call__.1} parent=31 // pred_check_branch
        %5561 = sbr.rel (%p5559) target = $region36
      $region35: #{a_call__.1} parent=31 // pred_region
        _
      $region36: #{a_call__.1} parent=31 // pred_fallthru
        _
    $region32: #{a_call__.1} parent=5 // pred_fallthru
      _
    %p5562 = scmp.le.s32.totalorder 2, %s9
    // Predicated region
    $region37: #{a_call__.1} parent=5 // pred_check
      %p5563 = pneg %p5562
    $region38: #{a_call__.1} parent=5 // pred_check_branch
      %5565 = sbr.rel (%p5563) target = $region40
    $region39: #{a_call__.1} parent=5 // pred_region
      %s5566 = ssub.s32 %s9, 2
      // Predicated region
      $region41: #{a_call__.1} parent=39 // pred_check
        %p5567 = pneg %p106
      $region42: #{a_call__.1} parent=39 // pred_check_branch
        %5569 = sbr.rel (%p5567) target = $region44
      $region43: #{a_call__.1} parent=39 // pred_region
        %p5570 = scmp.lt.s32.totalorder %s15, 1
        %s5571 = scalar_select %p5570, %s15, 1
        %s5572 = smul.addr %s5571, 32
        %s5573 = smul.addr %s5572, 8
        %s5574 = scalar_lea.vmem %s3, %s5573
      $region44: #{a_call__.1} parent=39 // pred_fallthru
        _
    $region40: #{a_call__.1} parent=5 // pred_fallthru
      _
  $region6: #{a_call__.1} parent=0 // loop_footer
    %s13 = sadd.s32 1, %s9
  $region7: #{a_call__.1} parent=0 // loop_footer_branch
    %8 = sbr.rel target = $region3
  $region8: #{a_call__.1} parent=0 // loop_exit
    _

</llo_original>
